<compile_context>
chip_gen: v7x
topology: tpu7x:2x2x1
jax: 0.10.0
libtpu: 0.0.40
codegen_flags: <defaults>
</compile_context>

<pallas_src>
import functools

import numpy as np
import jax
import jax.numpy as jnp
from jax.experimental import pallas as pl
from jax.experimental.pallas import tpu as pltpu


# ----------------------------- Pallas kernel --------------------------------


def _roi_align_rotated_2d_kernel(
    tile_batch_ref,   # scalar-prefetch (SMEM): (T,) int32, used only by feature index_map
    n_used_ref,       # scalar-prefetch (SMEM): (1,) int32, number of active tiles
    idx_ref,          # (1, S, LANES) int32   base-corner flat index y_low*W + x_low
    planes_ref,       # (1, 3, S, LANES) f32  rows: [ly, lx*m, m]  (m = valid/count)
    feat_ref,         # (1, C, H*W)           feature block of this tile's image
    out_ref,          # (1, C, LANES) f32
    *,
    H, W, S,
):
    del tile_batch_ref
    HW = H * W
    LANES = out_ref.shape[-1]
    t = pl.program_id(0)

    @pl.when(t < n_used_ref[0])
    def _active():
        idx_all = idx_ref[0]                       # (S, LANES) int32
        planes = planes_ref[0]                     # (3, S, LANES) f32
        ly_all = planes[0]
        lxm_all = planes[1]
        m_all = planes[2]
        hxm_all = m_all - lxm_all                  # (1-lx)*valid/count  (cheap row math)
        hy_all = 1.0 - ly_all

        hw_iota = jax.lax.broadcasted_iota(jnp.int32, (HW, LANES), 0)

        # Sparse interpolation matrix: for sample s, the four bilinear corner
        # weights sit at rows idx, idx+1, idx+W, idx+W+1 of column (roi, bin).
        # ONE integer compare per sample; the x/y neighbours are derived with
        # XLU rolls (wrapped placements always carry an exactly-zero lx/ly
        # weight thanks to the border clamping done in the wrapper in f32).
        acc = [None, None]                         # even/odd partials (break the add chain)
        for s in range(S):                         # static unroll, S = sampling_ratio**2
            eq = hw_iota == idx_all[s:s + 1, :]
            ch = jnp.where(eq, hxm_all[s:s + 1, :], 0.0)       # hxm at idx
            cl = jnp.where(eq, lxm_all[s:s + 1, :], 0.0)       # lxm at idx
            colx = ch + pltpu.roll(cl, 1, axis=0)              # + lxm at idx+1
            contrib = (hy_all[s:s + 1, :] * colx
                       + ly_all[s:s + 1, :] * pltpu.roll(colx, W, axis=0))
            k = s & 1
            acc[k] = contrib if acc[k] is None else acc[k] + contrib
        wmat = acc[0] if acc[1] is None else acc[0] + acc[1]   # (HW, LANES) f32

        feat = feat_ref[0]                                     # (C, HW)
        out = jnp.dot(feat, wmat.astype(feat.dtype),           # single MXU matmul
                      preferred_element_type=jnp.float32)      # (C, LANES) f32 acc
        out_ref[0] = out.astype(out_ref.dtype)

    @pl.when(t >= n_used_ref[0])
    def _inactive():
        out_ref[...] = jnp.zeros_like(out_ref)


# ------------------------------- wrapper -------------------------------------


def _tpu_vmem_capacity_bytes():
    try:
        return int(pltpu.get_tpu_info().vmem_capacity_bytes)
    except Exception:
        pass
    try:
        kind = jax.devices()[0].device_kind.lower()
    except Exception:
        kind = ""
    return (64 << 20) if "v7" in kind else (128 << 20)


def roi_align_rotated_2d(features, rois, output_size, spatial_scale,
                         sampling_ratio, aligned=True, order=1,
                         lanes_target=None, prefer_bf16_matmul=True):
    if isinstance(output_size, int):
        out_h = out_w = int(output_size)
    else:
        assert len(output_size) == 2
        out_h, out_w = int(output_size[0]), int(output_size[1])

    # TODO(synk): order=0 (nearest) interpolation path not implemented.
    assert order == 1, "only order=1 (bilinear) is implemented in the Pallas kernel"
    # TODO(synk): adaptive per-ROI sampling (sampling_ratio<=0 -> ceil(roi/bin))
    # needs data-dependent sample counts; require an explicit positive ratio.
    assert sampling_ratio > 0, "Pallas path requires a positive sampling_ratio"

    N, C, H, W = (int(d) for d in features.shape)
    num_rois = int(rois.shape[0])
    assert num_rois > 0
    HW = H * W
    P = out_h * out_w
    gh = gw = int(sampling_ratio)
    S = gh * gw
    count = float(max(S, 1))

    vmem_cap = _tpu_vmem_capacity_bytes()

    # bf16 is the full-rate MXU dtype on v5e/v6e/v7x and halves feature DMA/VMEM;
    # accumulation stays f32 in the MXU and in the pallas output.
    if features.dtype == jnp.bfloat16 or prefer_bf16_matmul:
        mxu_dtype = jnp.bfloat16
    else:
        mxu_dtype = jnp.float32
    mxu_bytes = jnp.dtype(mxu_dtype).itemsize

    # ---- tile geometry: R ROIs per grid step, lane-dense last dim -----------
    if lanes_target is None:
        # Bigger tiles (fewer grid steps, larger MXU N) when VMEM is plentiful
        # (v5e/v6e: 128 MiB) and the f32 (HW, LANES) temporaries stay small;
        # stay at 256 on v7x (64 MiB/TC) or for large feature maps.
        lanes_target = 512 if (vmem_cap >= (96 << 20)
                               and HW * 512 * 4 * 5 <= (24 << 20)) else 256
    R = max(1, int(lanes_target) // P)
    LANES = ((R * P + 127) // 128) * 128
    # Static tile bound: sum_i ceil(count_i/R) <= min(num_rois, ceil(num_rois/R)+N).
    T = min(num_rois, (num_rois + R - 1) // R + N)
    CAP = T * R

    f32 = jnp.float32
    rois_f = jnp.asarray(rois, dtype=f32)
    b_idx = rois_f[:, 0].astype(jnp.int32)

    # ---- per-ROI geometry (tiny, pure JAX, kept in f32) ----------------------
    off = 0.5 if aligned else 0.0
    cx = rois_f[:, 1] * spatial_scale - off
    cy = rois_f[:, 2] * spatial_scale - off
    rw = rois_f[:, 3] * spatial_scale
    rh = rois_f[:, 4] * spatial_scale
    if not aligned:                              # legacy mmdetection behaviour
        rw = jnp.maximum(rw, 1.0)
        rh = jnp.maximum(rh, 1.0)
    theta = rois_f[:, 5]
    cos_t, sin_t = jnp.cos(theta), jnp.sin(theta)
    bin_h, bin_w = rh / out_h, rw / out_w

    p = jnp.arange(P, dtype=jnp.int32)
    ph = (p // out_w).astype(f32)[None, None, :]        # (1, 1, P)
    pw = (p % out_w).astype(f32)[None, None, :]
    sidx = jnp.arange(S, dtype=jnp.int32)
    iy = (sidx // gw).astype(f32)[None, :, None]        # (1, S, 1)
    ix = (sidx % gw).astype(f32)[None, :, None]

    def rr(v):                                          # (n,) -> (n, 1, 1)
        return v[:, None, None]

    yy = rr(-0.5 * rh) + ph * rr(bin_h) + (iy + 0.5) * rr(bin_h / gh)
    xx = rr(-0.5 * rw) + pw * rr(bin_w) + (ix + 0.5) * rr(bin_w / gw)
    y = yy * rr(cos_t) - xx * rr(sin_t) + rr(cy)        # (num_rois, S, P)
    x = yy * rr(sin_t) + xx * rr(cos_t) + rr(cx)

    valid = jnp.logical_not((y < -1.0) | (y > float(H)) |
                            (x < -1.0) | (x > float(W)))
    y = jnp.maximum(y, 0.0)
    x = jnp.maximum(x, 0.0)
    y_low = jnp.floor(y).astype(jnp.int32)
    x_low = jnp.floor(x).astype(jnp.int32)
    y_cl = y_low >= H - 1
    x_cl = x_low >= W - 1
    y_low = jnp.where(y_cl, H - 1, y_low)
    x_low = jnp.where(x_cl, W - 1, x_low)
    # Border clamping makes ly/lx exactly 0.0 there -> the roll wrap-around
    # placements in the kernel always carry zero weight (kept in f32).
    y = jnp.where(y_cl, y_low.astype(f32), y)
    x = jnp.where(x_cl, x_low.astype(f32), x)

    ly = y - y_low.astype(f32)
    lx = x - x_low.astype(f32)
    m = valid.astype(f32) * (1.0 / count)
    lxm = lx * m
    idx00 = y_low * W + x_low                   # (num_rois, S, P) int32

    # ---- sort ROIs by batch and pack R per tile (one image per tile) --------
    order_s = jnp.argsort(b_idx)
    sorted_b = b_idx[order_s]
    counts = jnp.bincount(b_idx, length=N).astype(jnp.int32)
    padded_counts = ((counts + R - 1) // R) * R
    seg_starts = jnp.concatenate(
        [jnp.zeros((1,), jnp.int32), jnp.cumsum(padded_counts)[:-1].astype(jnp.int32)])
    sort_starts = jnp.concatenate(
        [jnp.zeros((1,), jnp.int32), jnp.cumsum(counts)[:-1].astype(jnp.int32)])
    rank = jnp.arange(num_rois, dtype=jnp.int32) - sort_starts[sorted_b]
    dest_sorted = seg_starts[sorted_b] + rank           # padded slot of sorted ROI
    dest = jnp.zeros((num_rois,), jnp.int32).at[order_s].set(dest_sorted)

    # Number of tiles actually holding ROIs (runtime); statically n_used <= T,
    # and max(dest) < n_used*R <= T*R, so the scatters below never drop ROIs.
    n_used = (jnp.sum(padded_counts) // R).astype(jnp.int32)
    tile_ids = jnp.arange(T, dtype=jnp.int32)
    tile_batch = jnp.zeros((T,), jnp.int32).at[dest // R].set(b_idx)
    # Unused tiles point at the last used image so the feature index_map stays
    # monotone and never DMAs back to image 0.
    tile_batch = jnp.where(tile_ids < n_used, tile_batch, jnp.max(b_idx))
    n_used_arr = jnp.reshape(n_used, (1,))

    # ---- pack parameter planes: single stacked scatter, lane-dense layout ---
    idx_t = jnp.zeros((CAP, S, P), jnp.int32).at[dest].set(idx00)
    idx_t = idx_t.reshape(T, R, S, P).transpose(0, 2, 1, 3).reshape(T, S, R * P)

    planes = jnp.stack([ly, lxm, m], axis=0)            # (3, num_rois, S, P)
    planes_t = jnp.zeros((3, CAP, S, P), f32).at[:, dest].set(planes)
    planes_t = (planes_t.reshape(3, T, R, S, P)
                .transpose(1, 0, 3, 2, 4)
                .reshape(T, 3, S, R * P))
    if LANES != R * P:
        pad = LANES - R * P
        idx_t = jnp.pad(idx_t, ((0, 0), (0, 0), (0, pad)))
        planes_t = jnp.pad(planes_t, ((0, 0), (0, 0), (0, 0), (0, pad)))

    feat_flat = features.reshape(N, C, HW).astype(mxu_dtype)

    # ---- pallas call ---------------------------------------------------------
    kernel = functools.partial(_roi_align_rotated_2d_kernel, H=H, W=W, S=S)

    feat_block_bytes = C * HW * mxu_bytes
    # Single-buffer the feature block when it is large relative to VMEM: its
    # DMA is already elided for consecutive same-image tiles, so losing the
    # second buffer costs ~nothing and halves the largest resident buffer
    # (important within v7x's 64 MiB/TC budget).
    single_buffer_feat = 2 * feat_block_bytes > (vmem_cap // 3)
    feat_map = lambda t, tb, nu: (tb[t], 0, 0)
    if single_buffer_feat:
        feat_spec = pl.BlockSpec((1, C, HW), feat_map, pipeline_mode=pl.Buffered(1))
    else:
        feat_spec = pl.BlockSpec((1, C, HW), feat_map)

    grid_spec = pltpu.PrefetchScalarGridSpec(
        num_scalar_prefetch=2,                   # tile->batch map, #active tiles
        grid=(T,),
        in_specs=[
            pl.BlockSpec((1, S, LANES), lambda t, tb, nu: (t, 0, 0)),        # idx00
            pl.BlockSpec((1, 3, S, LANES), lambda t, tb, nu: (t, 0, 0, 0)),  # ly/lxm/m
            feat_spec,                                                       # features
        ],
        out_specs=pl.BlockSpec((1, C, LANES), lambda t, tb, nu: (t, 0, 0)),
    )

    flops = 2 * C * HW * LANES * T
    bytes_accessed = int(N * C * HW * mxu_bytes
                         + T * (4 * S * LANES * 4 + C * LANES * 4))
    cost = pl.CostEstimate(flops=flops, transcendentals=0,
                           bytes_accessed=bytes_accessed)

    feat_bufs = 1 if single_buffer_feat else 2
    vmem_need = (feat_bufs * feat_block_bytes        # pipelined feature block(s)
                 + 2 * 4 * S * LANES * 4             # double-buffered param planes
                 + 2 * C * LANES * 4                 # double-buffered output block
                 + 5 * HW * LANES * 4                # wmat / select f32 temporaries
                 + C * LANES * 4)                    # matmul result
    # Always set the scoped-VMEM limit explicitly (v5e's default is only ~16 MiB),
    # clamped to the physical per-core capacity minus headroom.
    vmem_limit = int(min(max(32 << 20, int(1.4 * vmem_need) + (1 << 20)),
                         int(0.9 * vmem_cap)))
    # TODO(synk): for detection-sized C*H*W feature maps add C- and HW-tiling
    # grid axes (wmat in VMEM scratch / f32 accumulator finalized on the last
    # HW step) instead of only raising the VMEM limit.

    out_padded = pl.pallas_call(
        kernel,
        out_shape=jax.ShapeDtypeStruct((T, C, LANES), jnp.float32),
        grid_spec=grid_spec,
        compiler_params=pltpu.CompilerParams(
            dimension_semantics=("parallel",),       # shards T across TCs on v7x
            vmem_limit_bytes=vmem_limit),
        cost_estimate=cost,
    )(tile_batch, n_used_arr, idx_t, planes_t, feat_flat)

    # ---- unpack: tiles -> original ROI order ---------------------------------
    out = out_padded[:, :, :R * P].reshape(T, C, R, P).transpose(0, 2, 1, 3)
    out = out.reshape(CAP, C, P)[dest]
    return out.reshape(num_rois, C, out_h, out_w).astype(features.dtype)


class RoIAlignRotated:
    """JAX/Pallas port of medvision's RoIAlignRotated (2D forward only)."""

    def __init__(self, output_size, spatial_scale, sampling_ratio=-1, aligned=True):
        self.output_size = tuple(output_size)
        self.spatial_scale = float(spatial_scale)
        self.sampling_ratio = int(sampling_ratio)
        self.aligned = bool(aligned)
        self.dim = len(self.output_size)
        # TODO(synk): 3D RoIAlignRotated (rois of shape (n, 10)) not implemented.
        assert self.dim == 2, "only the 2D RoIAlignRotated forward is implemented"

    def __call__(self, features, rois, order=1):
        assert order in (0, 1)
        sampling_ratio = 1 if order == 0 else self.sampling_ratio
        return roi_align_rotated_2d(features, rois, self.output_size,
                                    self.spatial_scale, sampling_ratio,
                                    self.aligned, order)


# --------------------------- pure-numpy reference ----------------------------


def _bilinear_ref(img, y, x, H, W):
    if y < -1.0 or y > H or x < -1.0 or x > W:
        return np.zeros(img.shape[0], dtype=np.float64)
    y = max(y, 0.0)
    x = max(x, 0.0)
    y_low, x_low = int(y), int(x)
    if y_low >= H - 1:
        y_high = y_low = H - 1
        y = float(y_low)
    else:
        y_high = y_low + 1
    if x_low >= W - 1:
        x_high = x_low = W - 1
        x = float(x_low)
    else:
        x_high = x_low + 1
    ly, lx = y - y_low, x - x_low
    hy, hx = 1.0 - ly, 1.0 - lx
    return (hy * hx * img[:, y_low, x_low] + hy * lx * img[:, y_low, x_high]
            + ly * hx * img[:, y_high, x_low] + ly * lx * img[:, y_high, x_high])


def _roi_align_rotated_2d_ref(features, rois, output_size, spatial_scale,
                              sampling_ratio, aligned):
    feats = np.asarray(features, dtype=np.float64)
    rois_np = np.asarray(rois, dtype=np.float64)
    N, C, H, W = feats.shape
    out_h, out_w = output_size
    n = rois_np.shape[0]
    out = np.zeros((n, C, out_h, out_w), dtype=np.float64)
    off = 0.5 if aligned else 0.0
    for i in range(n):
        b = int(rois_np[i, 0])
        cx = rois_np[i, 1] * spatial_scale - off
        cy = rois_np[i, 2] * spatial_scale - off
        rw = rois_np[i, 3] * spatial_scale
        rh = rois_np[i, 4] * spatial_scale
        th = rois_np[i, 5]
        if not aligned:
            rw, rh = max(rw, 1.0), max(rh, 1.0)
        bh, bw = rh / out_h, rw / out_w
        gh = gw = sampling_ratio
        rsh, rsw = -rh / 2.0, -rw / 2.0
        ct, st = np.cos(th), np.sin(th)
        count = max(gh * gw, 1)
        for ph in range(out_h):
            for pw in range(out_w):
                acc = np.zeros(C, dtype=np.float64)
                for iy in range(gh):
                    yy = rsh + ph * bh + (iy + 0.5) * bh / gh
                    for ix in range(gw):
                        xx = rsw + pw * bw + (ix + 0.5) * bw / gw
                        y = yy * ct - xx * st + cy
                        x = yy * st + xx * ct + cx
                        acc += _bilinear_ref(feats[b], y, x, H, W)
                out[i, :, ph, pw] = acc / count
    return out


# ----------------------------------- main ------------------------------------


if __name__ == "__main__":
    key = jax.random.PRNGKey(0)
    N, C, H, W = 2, 4, 16, 16
    features = jax.random.normal(key, (N, C, H, W), dtype=jnp.float32)

    # rois: (batch_index, center_x, center_y, w, h, angle[rad])
    rois = jnp.array(
        [
            [0.0, 7.5, 8.5, 10.0, 6.0, 0.3],
            [1.0, 4.0, 12.0, 6.0, 9.0, -0.7],
            [0.0, 12.0, 3.5, 5.0, 5.0, 1.1],
            [1.0, 9.0, 6.0, 8.0, 4.0, 2.2],
            [0.0, 3.0, 3.0, 4.0, 7.0, -1.4],
            [1.0, 13.0, 13.0, 7.0, 7.0, 0.9],
            [0.0, 8.0, 8.0, 14.0, 12.0, 3.0],
        ],
        dtype=jnp.float32,
    )

    configs = [
        dict(output_size=(7, 7), spatial_scale=1.0, sampling_ratio=2, aligned=True),
        dict(output_size=(5, 6), spatial_scale=0.5, sampling_ratio=3, aligned=False),
    ]
    for cfg in configs:
        layer = RoIAlignRotated(output_size=cfg["output_size"],
                                spatial_scale=cfg["spatial_scale"],
                                sampling_ratio=cfg["sampling_ratio"],
                                aligned=cfg["aligned"])
        out = layer(features, rois, order=1)
        out = jax.block_until_ready(out)
        assert out.shape == (rois.shape[0], C) + tuple(cfg["output_size"])
        ref = _roi_align_rotated_2d_ref(np.asarray(features), np.asarray(rois),
                                        cfg["output_size"], cfg["spatial_scale"],
                                        cfg["sampling_ratio"], cfg["aligned"])
        np.testing.assert_allclose(np.asarray(out, dtype=np.float64), ref,
                                   rtol=1e-2, atol=1e-2)

    print("KERNEL_OK")
</pallas_src>

<mosaic_0001>
module attributes {stable_mosaic.version = 11 : i64} {
  func.func @_roi_align_rotated_2d_kernel(%arg0: i32, %arg1: memref<3xi32, #tpu.memory_space<smem>>, %arg2: memref<1xi32, #tpu.memory_space<smem>>, %arg3: memref<1x4x512xi32, #tpu.memory_space<vmem>>, %arg4: memref<1x3x4x512xf32, #tpu.memory_space<vmem>>, %arg5: memref<1x4x256xbf16, #tpu.memory_space<vmem>>, %arg6: memref<1x4x512xf32, #tpu.memory_space<vmem>>) attributes {dimension_semantics = [#tpu.dimension_semantics<parallel>], iteration_bounds = array<i64: 3>, scalar_prefetch = 2 : i64, scratch_operands = 0 : i64, tpu.core_type = #tpu.core_type<tc>, window_params = [{transform_indices = @transform_0, window_bounds = array<i64: 1, 4, 512>}, {transform_indices = @transform_1, window_bounds = array<i64: 1, 3, 4, 512>}, {transform_indices = @transform_2, window_bounds = array<i64: 1, 4, 256>}, {transform_indices = @transform_3, window_bounds = array<i64: 1, 4, 512>}]} {
    %c0 = arith.constant 0 : index
    %0 = memref.load %arg2[%c0] : memref<1xi32, #tpu.memory_space<smem>>
    %1 = arith.cmpi slt, %arg0, %0 : i32
    %2 = arith.extui %1 : i1 to i32
    %c0_i32 = arith.constant 0 : i32
    %3 = arith.cmpi ne, %2, %c0_i32 : i32
    scf.if %3 {
      %c0_2 = arith.constant 0 : index
      %c0_3 = arith.constant 0 : index
      %c0_4 = arith.constant 0 : index
      %8 = vector.load %arg3[%c0_2, %c0_3, %c0_4] : memref<1x4x512xi32, #tpu.memory_space<vmem>>, vector<1x4x512xi32>
      %9 = vector.shape_cast %8 : vector<1x4x512xi32> to vector<4x512xi32>
      %c0_5 = arith.constant 0 : index
      %c0_6 = arith.constant 0 : index
      %c0_7 = arith.constant 0 : index
      %c0_8 = arith.constant 0 : index
      %10 = vector.load %arg4[%c0_5, %c0_6, %c0_7, %c0_8] : memref<1x3x4x512xf32, #tpu.memory_space<vmem>>, vector<1x3x4x512xf32>
      %11 = vector.shape_cast %10 : vector<1x3x4x512xf32> to vector<3x4x512xf32>
      %12 = vector.extract_strided_slice %11 {offsets = [0, 0, 0], sizes = [1, 4, 512], strides = [1, 1, 1]} : vector<3x4x512xf32> to vector<1x4x512xf32>
      %13 = vector.shape_cast %12 : vector<1x4x512xf32> to vector<4x512xf32>
      %14 = vector.extract_strided_slice %11 {offsets = [1, 0, 0], sizes = [1, 4, 512], strides = [1, 1, 1]} : vector<3x4x512xf32> to vector<1x4x512xf32>
      %15 = vector.shape_cast %14 : vector<1x4x512xf32> to vector<4x512xf32>
      %16 = vector.extract_strided_slice %11 {offsets = [2, 0, 0], sizes = [1, 4, 512], strides = [1, 1, 1]} : vector<3x4x512xf32> to vector<1x4x512xf32>
      %17 = vector.shape_cast %16 : vector<1x4x512xf32> to vector<4x512xf32>
      %18 = arith.subf %17, %15 : vector<4x512xf32>
      %cst = arith.constant 1.000000e+00 : f32
      %19 = vector.broadcast %cst : f32 to vector<4x512xf32>
      %20 = arith.subf %19, %13 : vector<4x512xf32>
      %21 = tpu.iota {dimensions = array<i32: 0>} : vector<256x512xi32>
      %22 = vector.extract_strided_slice %9 {offsets = [0, 0], sizes = [1, 512], strides = [1, 1]} : vector<4x512xi32> to vector<1x512xi32>
      %23 = vector.broadcast %22 : vector<1x512xi32> to vector<256x512xi32>
      %24 = arith.cmpi eq, %21, %23 : vector<256x512xi32>
      %25 = vector.extract_strided_slice %18 {offsets = [0, 0], sizes = [1, 512], strides = [1, 1]} : vector<4x512xf32> to vector<1x512xf32>
      %cst_9 = arith.constant 0.000000e+00 : f32
      %26 = vector.shape_cast %25 : vector<1x512xf32> to vector<1x512xf32>
      %27 = vector.broadcast %26 : vector<1x512xf32> to vector<256x512xf32>
      %28 = vector.broadcast %cst_9 : f32 to vector<256x512xf32>
      %29 = arith.select %24, %27, %28 : vector<256x512xi1>, vector<256x512xf32>
      %30 = vector.extract_strided_slice %15 {offsets = [0, 0], sizes = [1, 512], strides = [1, 1]} : vector<4x512xf32> to vector<1x512xf32>
      %cst_10 = arith.constant 0.000000e+00 : f32
      %31 = vector.shape_cast %30 : vector<1x512xf32> to vector<1x512xf32>
      %32 = vector.broadcast %31 : vector<1x512xf32> to vector<256x512xf32>
      %33 = vector.broadcast %cst_10 : f32 to vector<256x512xf32>
      %34 = arith.select %24, %32, %33 : vector<256x512xi1>, vector<256x512xf32>
      %c1_i32 = arith.constant 1 : i32
      %35 = tpu.dynamic_rotate %34 by %c1_i32 dim 0 : vector<256x512xf32>, i32 -> vector<256x512xf32>
      %36 = arith.addf %29, %35 : vector<256x512xf32>
      %37 = vector.extract_strided_slice %20 {offsets = [0, 0], sizes = [1, 512], strides = [1, 1]} : vector<4x512xf32> to vector<1x512xf32>
      %38 = vector.broadcast %37 : vector<1x512xf32> to vector<256x512xf32>
      %39 = arith.mulf %38, %36 : vector<256x512xf32>
      %40 = vector.extract_strided_slice %13 {offsets = [0, 0], sizes = [1, 512], strides = [1, 1]} : vector<4x512xf32> to vector<1x512xf32>
      %c16_i32 = arith.constant 16 : i32
      %41 = tpu.dynamic_rotate %36 by %c16_i32 dim 0 : vector<256x512xf32>, i32 -> vector<256x512xf32>
      %42 = vector.broadcast %40 : vector<1x512xf32> to vector<256x512xf32>
      %43 = arith.mulf %42, %41 : vector<256x512xf32>
      %44 = arith.addf %39, %43 : vector<256x512xf32>
      %45 = vector.extract_strided_slice %9 {offsets = [1, 0], sizes = [1, 512], strides = [1, 1]} : vector<4x512xi32> to vector<1x512xi32>
      %46 = vector.broadcast %45 : vector<1x512xi32> to vector<256x512xi32>
      %47 = arith.cmpi eq, %21, %46 : vector<256x512xi32>
      %48 = vector.extract_strided_slice %18 {offsets = [1, 0], sizes = [1, 512], strides = [1, 1]} : vector<4x512xf32> to vector<1x512xf32>
      %cst_11 = arith.constant 0.000000e+00 : f32
      %49 = vector.shape_cast %48 : vector<1x512xf32> to vector<1x512xf32>
      %50 = vector.broadcast %49 : vector<1x512xf32> to vector<256x512xf32>
      %51 = vector.broadcast %cst_11 : f32 to vector<256x512xf32>
      %52 = arith.select %47, %50, %51 : vector<256x512xi1>, vector<256x512xf32>
      %53 = vector.extract_strided_slice %15 {offsets = [1, 0], sizes = [1, 512], strides = [1, 1]} : vector<4x512xf32> to vector<1x512xf32>
      %cst_12 = arith.constant 0.000000e+00 : f32
      %54 = vector.shape_cast %53 : vector<1x512xf32> to vector<1x512xf32>
      %55 = vector.broadcast %54 : vector<1x512xf32> to vector<256x512xf32>
      %56 = vector.broadcast %cst_12 : f32 to vector<256x512xf32>
      %57 = arith.select %47, %55, %56 : vector<256x512xi1>, vector<256x512xf32>
      %c1_i32_13 = arith.constant 1 : i32
      %58 = tpu.dynamic_rotate %57 by %c1_i32_13 dim 0 : vector<256x512xf32>, i32 -> vector<256x512xf32>
      %59 = arith.addf %52, %58 : vector<256x512xf32>
      %60 = vector.extract_strided_slice %20 {offsets = [1, 0], sizes = [1, 512], strides = [1, 1]} : vector<4x512xf32> to vector<1x512xf32>
      %61 = vector.broadcast %60 : vector<1x512xf32> to vector<256x512xf32>
      %62 = arith.mulf %61, %59 : vector<256x512xf32>
      %63 = vector.extract_strided_slice %13 {offsets = [1, 0], sizes = [1, 512], strides = [1, 1]} : vector<4x512xf32> to vector<1x512xf32>
      %c16_i32_14 = arith.constant 16 : i32
      %64 = tpu.dynamic_rotate %59 by %c16_i32_14 dim 0 : vector<256x512xf32>, i32 -> vector<256x512xf32>
      %65 = vector.broadcast %63 : vector<1x512xf32> to vector<256x512xf32>
      %66 = arith.mulf %65, %64 : vector<256x512xf32>
      %67 = arith.addf %62, %66 : vector<256x512xf32>
      %68 = vector.extract_strided_slice %9 {offsets = [2, 0], sizes = [1, 512], strides = [1, 1]} : vector<4x512xi32> to vector<1x512xi32>
      %69 = vector.broadcast %68 : vector<1x512xi32> to vector<256x512xi32>
      %70 = arith.cmpi eq, %21, %69 : vector<256x512xi32>
      %71 = vector.extract_strided_slice %18 {offsets = [2, 0], sizes = [1, 512], strides = [1, 1]} : vector<4x512xf32> to vector<1x512xf32>
      %cst_15 = arith.constant 0.000000e+00 : f32
      %72 = vector.shape_cast %71 : vector<1x512xf32> to vector<1x512xf32>
      %73 = vector.broadcast %72 : vector<1x512xf32> to vector<256x512xf32>
      %74 = vector.broadcast %cst_15 : f32 to vector<256x512xf32>
      %75 = arith.select %70, %73, %74 : vector<256x512xi1>, vector<256x512xf32>
      %76 = vector.extract_strided_slice %15 {offsets = [2, 0], sizes = [1, 512], strides = [1, 1]} : vector<4x512xf32> to vector<1x512xf32>
      %cst_16 = arith.constant 0.000000e+00 : f32
      %77 = vector.shape_cast %76 : vector<1x512xf32> to vector<1x512xf32>
      %78 = vector.broadcast %77 : vector<1x512xf32> to vector<256x512xf32>
      %79 = vector.broadcast %cst_16 : f32 to vector<256x512xf32>
      %80 = arith.select %70, %78, %79 : vector<256x512xi1>, vector<256x512xf32>
      %c1_i32_17 = arith.constant 1 : i32
      %81 = tpu.dynamic_rotate %80 by %c1_i32_17 dim 0 : vector<256x512xf32>, i32 -> vector<256x512xf32>
      %82 = arith.addf %75, %81 : vector<256x512xf32>
      %83 = vector.extract_strided_slice %20 {offsets = [2, 0], sizes = [1, 512], strides = [1, 1]} : vector<4x512xf32> to vector<1x512xf32>
      %84 = vector.broadcast %83 : vector<1x512xf32> to vector<256x512xf32>
      %85 = arith.mulf %84, %82 : vector<256x512xf32>
      %86 = vector.extract_strided_slice %13 {offsets = [2, 0], sizes = [1, 512], strides = [1, 1]} : vector<4x512xf32> to vector<1x512xf32>
      %c16_i32_18 = arith.constant 16 : i32
      %87 = tpu.dynamic_rotate %82 by %c16_i32_18 dim 0 : vector<256x512xf32>, i32 -> vector<256x512xf32>
      %88 = vector.broadcast %86 : vector<1x512xf32> to vector<256x512xf32>
      %89 = arith.mulf %88, %87 : vector<256x512xf32>
      %90 = arith.addf %85, %89 : vector<256x512xf32>
      %91 = arith.addf %44, %90 : vector<256x512xf32>
      %92 = vector.extract_strided_slice %9 {offsets = [3, 0], sizes = [1, 512], strides = [1, 1]} : vector<4x512xi32> to vector<1x512xi32>
      %93 = vector.broadcast %92 : vector<1x512xi32> to vector<256x512xi32>
      %94 = arith.cmpi eq, %21, %93 : vector<256x512xi32>
      %95 = vector.extract_strided_slice %18 {offsets = [3, 0], sizes = [1, 512], strides = [1, 1]} : vector<4x512xf32> to vector<1x512xf32>
      %cst_19 = arith.constant 0.000000e+00 : f32
      %96 = vector.shape_cast %95 : vector<1x512xf32> to vector<1x512xf32>
      %97 = vector.broadcast %96 : vector<1x512xf32> to vector<256x512xf32>
      %98 = vector.broadcast %cst_19 : f32 to vector<256x512xf32>
      %99 = arith.select %94, %97, %98 : vector<256x512xi1>, vector<256x512xf32>
      %100 = vector.extract_strided_slice %15 {offsets = [3, 0], sizes = [1, 512], strides = [1, 1]} : vector<4x512xf32> to vector<1x512xf32>
      %cst_20 = arith.constant 0.000000e+00 : f32
      %101 = vector.shape_cast %100 : vector<1x512xf32> to vector<1x512xf32>
      %102 = vector.broadcast %101 : vector<1x512xf32> to vector<256x512xf32>
      %103 = vector.broadcast %cst_20 : f32 to vector<256x512xf32>
      %104 = arith.select %94, %102, %103 : vector<256x512xi1>, vector<256x512xf32>
      %c1_i32_21 = arith.constant 1 : i32
      %105 = tpu.dynamic_rotate %104 by %c1_i32_21 dim 0 : vector<256x512xf32>, i32 -> vector<256x512xf32>
      %106 = arith.addf %99, %105 : vector<256x512xf32>
      %107 = vector.extract_strided_slice %20 {offsets = [3, 0], sizes = [1, 512], strides = [1, 1]} : vector<4x512xf32> to vector<1x512xf32>
      %108 = vector.broadcast %107 : vector<1x512xf32> to vector<256x512xf32>
      %109 = arith.mulf %108, %106 : vector<256x512xf32>
      %110 = vector.extract_strided_slice %13 {offsets = [3, 0], sizes = [1, 512], strides = [1, 1]} : vector<4x512xf32> to vector<1x512xf32>
      %c16_i32_22 = arith.constant 16 : i32
      %111 = tpu.dynamic_rotate %106 by %c16_i32_22 dim 0 : vector<256x512xf32>, i32 -> vector<256x512xf32>
      %112 = vector.broadcast %110 : vector<1x512xf32> to vector<256x512xf32>
      %113 = arith.mulf %112, %111 : vector<256x512xf32>
      %114 = arith.addf %109, %113 : vector<256x512xf32>
      %115 = arith.addf %67, %114 : vector<256x512xf32>
      %116 = arith.addf %91, %115 : vector<256x512xf32>
      %c0_23 = arith.constant 0 : index
      %c0_24 = arith.constant 0 : index
      %c0_25 = arith.constant 0 : index
      %117 = vector.load %arg5[%c0_23, %c0_24, %c0_25] : memref<1x4x256xbf16, #tpu.memory_space<vmem>>, vector<1x4x256xbf16>
      %118 = vector.shape_cast %117 : vector<1x4x256xbf16> to vector<4x256xbf16>
      %119 = arith.truncf %116 : vector<256x512xf32> to vector<256x512xbf16>
      %cst_26 = arith.constant dense<0.000000e+00> : vector<4x512xf32>
      %120 = tpu.matmul %118, %119, %cst_26 {dimension_numbers = #tpu.dot_dimension_numbers<[1], [0], [0], [1], [0, 0, 1, 1], [], []>} : vector<4x256xbf16>, vector<256x512xbf16>, vector<4x512xf32> -> vector<4x512xf32>
      %c0_27 = arith.constant 0 : index
      %c0_28 = arith.constant 0 : index
      %c0_29 = arith.constant 0 : index
      %121 = vector.load %arg6[%c0_27, %c0_28, %c0_29] : memref<1x4x512xf32, #tpu.memory_space<vmem>>, vector<1x4x512xf32>
      %122 = vector.shape_cast %121 : vector<1x4x512xf32> to vector<4x512xf32>
      %123 = vector.shape_cast %120 : vector<4x512xf32> to vector<1x4x512xf32>
      tpu.vector_store %arg6[%c0_27, %c0_28, %c0_29], %123 {strides = array<i32>} : memref<1x4x512xf32, #tpu.memory_space<vmem>>, vector<1x4x512xf32>,
    } else {
    }
    %c0_0 = arith.constant 0 : index
    %4 = memref.load %arg2[%c0_0] : memref<1xi32, #tpu.memory_space<smem>>
    %5 = arith.cmpi sge, %arg0, %4 : i32
    %6 = arith.extui %5 : i1 to i32
    %c0_i32_1 = arith.constant 0 : i32
    %7 = arith.cmpi ne, %6, %c0_i32_1 : i32
    scf.if %7 {
      %cst = arith.constant 0.000000e+00 : f32
      %8 = vector.broadcast %cst : f32 to vector<1x4x512xf32>
      %c0_2 = arith.constant 0 : index
      %c0_3 = arith.constant 0 : index
      %c0_4 = arith.constant 0 : index
      %9 = vector.load %arg6[%c0_2, %c0_3, %c0_4] : memref<1x4x512xf32, #tpu.memory_space<vmem>>, vector<1x4x512xf32>
      tpu.vector_store %arg6[%c0_2, %c0_3, %c0_4], %8 {strides = array<i32>} : memref<1x4x512xf32, #tpu.memory_space<vmem>>, vector<1x4x512xf32>,
    } else {
    }
    return
  }
  func.func @transform_0(%arg0: i32, %arg1: memref<3xi32, #tpu.memory_space<smem>>, %arg2: memref<1xi32, #tpu.memory_space<smem>>) -> (i32, i32, i32) {
    %c0_i32 = arith.constant 0 : i32
    %c0_i32_0 = arith.constant 0 : i32
    %c0_i32_1 = arith.constant 0 : i32
    return %arg0, %c0_i32, %c0_i32_0 : i32, i32, i32
  }
  func.func @transform_1(%arg0: i32, %arg1: memref<3xi32, #tpu.memory_space<smem>>, %arg2: memref<1xi32, #tpu.memory_space<smem>>) -> (i32, i32, i32, i32) {
    %c0_i32 = arith.constant 0 : i32
    %c0_i32_0 = arith.constant 0 : i32
    %c0_i32_1 = arith.constant 0 : i32
    %c0_i32_2 = arith.constant 0 : i32
    return %arg0, %c0_i32, %c0_i32_0, %c0_i32_1 : i32, i32, i32, i32
  }
  func.func @transform_2(%arg0: i32, %arg1: memref<3xi32, #tpu.memory_space<smem>>, %arg2: memref<1xi32, #tpu.memory_space<smem>>) -> (i32, i32, i32) {
    %0 = arith.index_cast %arg0 : i32 to index
    %1 = memref.load %arg1[%0] : memref<3xi32, #tpu.memory_space<smem>>
    %c0_i32 = arith.constant 0 : i32
    %c0_i32_0 = arith.constant 0 : i32
    %c0_i32_1 = arith.constant 0 : i32
    return %1, %c0_i32, %c0_i32_0 : i32, i32, i32
  }
  func.func @transform_3(%arg0: i32, %arg1: memref<3xi32, #tpu.memory_space<smem>>, %arg2: memref<1xi32, #tpu.memory_space<smem>>) -> (i32, i32, i32) {
    %c0_i32 = arith.constant 0 : i32
    %c0_i32_0 = arith.constant 0 : i32
    %c0_i32_1 = arith.constant 0 : i32
    return %arg0, %c0_i32, %c0_i32_0 : i32, i32, i32
  }
}

</mosaic_0001>

<llo_original>
// kernel: tpu_custom_call.1
$region0: #{tpu_custom_call.1}
  #allocation0 [shape = 'u32[]', space=smem, size = 0x4, offset = 0x4, fixed_abs, tag = 'smem constant byte address 0x4 - core index']
  #allocation1 [shape = 'u32[144,128]{1,0:T(1,128)}', space=vmem, size = 0x12000, scoped, tag = 'internal scratch']
  #allocation2 [shape = 's32[1]{0}', space=sflag, size = 0x4, scoped, tag = 'scoped memory for tpu_custom_call.1']
  #allocation3 [shape = 'u8[512]{0}', space=smem, size = 0x200, scoped, tag = 'prefetched SMEM operand 0']
  #allocation4 [shape = 's32[1]{0:T(128)S(6)}', space=smem, size = 0x200, scoped, tag = 'prefetched SMEM operand 1']
  %s0 = inlined_call_operand.vmem [shape: s32[3], index: 0, kind: input, shape index: {}]
  %s1 = inlined_call_operand.<no memory space> [shape: s32[1], index: 1, kind: input, shape index: {}]
  %s2 = inlined_call_operand.hbm [shape: s32[3,4,512], index: 2, kind: input, shape index: {}]
  %s3 = inlined_call_operand.hbm [shape: f32[3,3,4,512], index: 3, kind: input, shape index: {}]
  %s4 = inlined_call_operand.vmem [shape: bf16[2,4,256], index: 4, kind: input, shape index: {}]
  %s5 = inlined_call_operand.hbm [shape: f32[3,4,512], index: 5, kind: output, shape index: {}]
  %s6 = sld [smem:[#allocation0]]
  $region61: #{tpu_custom_call.1} parent=0
    _
  %s8 = ssub.s32 1, %s6
  %s9 = scalar_select 0, %s8, %s6
  %s10 = sshll.u32 %s0, 4
  %s11 = int_to_ptr.vmem [resolvable:$true] %s10
  %13 = dma.vmem_to_smem %s11, 16, [#allocation3], [#allocation2]
  %14 = sst [smem:[#allocation4]] %s1
  %15 = dma.done [#allocation2], 16
  %16 = sfence
  $region1: #{tpu_custom_call.1} parent=0
    #allocation5 [shape = 'u8[16384]{0}', space=vmem, size = 0x4000, scoped, tag = 'input window, operand 2']
    #allocation6 [shape = 's32[2]{0}', space=sflag, size = 0x8, scoped, tag = 'scoped memory for tpu_custom_call.1']
    #allocation7 [shape = 's32[2]{0}', space=sflag, size = 0x8, scoped, tag = 'scoped memory for tpu_custom_call.1']
    #allocation8 [shape = 'u8[49152]{0}', space=vmem, size = 0xc000, scoped, tag = 'input window, operand 3']
    #allocation9 [shape = 's32[2]{0}', space=sflag, size = 0x8, scoped, tag = 'scoped memory for tpu_custom_call.1']
    #allocation10 [shape = 'u8[16384]{0}', space=vmem, size = 0x4000, scoped, tag = 'output window, operand 0']
    %17 = vsyncpa [#allocation6], 0
    %s18 = scalar_lea.sflag [#allocation6], 1
    %19 = vsyncpa %s18, 0
    %20 = vsyncpa [#allocation9], 0
    %s21 = scalar_lea.sflag [#allocation9], 1
    %22 = vsyncpa %s21, 0
    %23 = vsyncpa [#allocation7], 0
    %s24 = scalar_lea.sflag [#allocation7], 1
    %25 = vsyncpa %s24, 0
    loop: start=0, step=1, limit=5
    $region2: #{tpu_custom_call.1} parent=1 // loop_pre_header
      _
    $region3: #{tpu_custom_call.1} parent=1 // loop_header
      %s27 = sphi 0, %s31
      %p28 = scmp.ge.s32.totalorder %s27, 5
      %s37 = sphi 0, %s39
      %s40 = sphi 0, %s37
      %s41 = sphi 0, %s40
      %s57 = sphi 0, %s41
      %s63 = sphi 0, %s65
      %s66 = sphi 0, %s63
      %s67 = sphi 0, %s66
      %s83 = sphi 0, %s67
      %s91 = sphi 0, %s93
      %s94 = sphi 0, %s91
      %s95 = sphi 0, %s94
      %s111 = sphi 0, %s95
      %s117 = sphi 0, %s119
      %s120 = sphi 0, %s117
      %s121 = sphi 0, %s120
      %s137 = sphi 0, %s121
    $region4: #{tpu_custom_call.1} parent=1 // loop_header_branch
      %30 = sbr.rel (%p28) target = $region8
    $region5: #{tpu_custom_call.1} parent=1 // loop_body
      %s32 = ssub.s32 %s27, 1
      %s33 = ssub.s32 %s27, 2
      %s34 = sadd.s32 %s27, 1
      %s35 = ssub.s32 %s27, %s34
      %p36 = scmp.eq.s32.totalorder %s35, 0
      %s38 = sadd.s32 %s37, 1
      %s39 = scalar_select %p36, %s37, %s38
      %p42 = pneg %p36
      %p43 = scmp.eq.s32.totalorder %s27, 2
      %p44 = por %p42, %p43
      %p45 = scmp.ne.s32.totalorder %s37, %s40
      %p46 = scmp.eq.s32.totalorder %s27, 0
      %p47 = por %p45, %p46
      %p48 = scmp.ne.s32.totalorder %s37, %s40
      %p49 = scmp.eq.s32.totalorder %s32, 2
      %p50 = por %p48, %p49
      %p51 = scmp.ne.s32.totalorder %s40, %s41
      %p52 = scmp.eq.s32.totalorder %s32, 0
      %p53 = por %p51, %p52
      %p54 = scmp.ne.s32.totalorder %s40, %s41
      %p55 = scmp.eq.s32.totalorder %s33, 2
      %p56 = por %p54, %p55
      %p58 = scmp.ne.s32.totalorder %s41, %s57
      %p59 = scmp.eq.s32.totalorder %s33, 0
      %p60 = por %p58, %p59
      %s61 = ssub.s32 %s27, %s34
      %p62 = scmp.eq.s32.totalorder %s61, 0
      %s64 = sadd.s32 %s63, 1
      %s65 = scalar_select %p62, %s63, %s64
      %p68 = pneg %p62
      %p69 = scmp.eq.s32.totalorder %s27, 2
      %p70 = por %p68, %p69
      %p71 = scmp.ne.s32.totalorder %s63, %s66
      %p72 = scmp.eq.s32.totalorder %s27, 0
      %p73 = por %p71, %p72
      %p74 = scmp.ne.s32.totalorder %s63, %s66
      %p75 = scmp.eq.s32.totalorder %s32, 2
      %p76 = por %p74, %p75
      %p77 = scmp.ne.s32.totalorder %s66, %s67
      %p78 = scmp.eq.s32.totalorder %s32, 0
      %p79 = por %p77, %p78
      %p80 = scmp.ne.s32.totalorder %s66, %s67
      %p81 = scmp.eq.s32.totalorder %s33, 2
      %p82 = por %p80, %p81
      %p84 = scmp.ne.s32.totalorder %s67, %s83
      %p85 = scmp.eq.s32.totalorder %s33, 0
      %p86 = por %p84, %p85
      %s87 = sld [smem:[#allocation3 + %s27]]
      %s88 = sld [smem:[#allocation3 + %s34]]
      %s89 = ssub.s32 %s87, %s88
      %p90 = scmp.eq.s32.totalorder %s89, 0
      %s92 = sadd.s32 %s91, 1
      %s93 = scalar_select %p90, %s91, %s92
      %p96 = pneg %p90
      %p97 = scmp.eq.s32.totalorder %s27, 2
      %p98 = por %p96, %p97
      %p99 = scmp.ne.s32.totalorder %s91, %s94
      %p100 = scmp.eq.s32.totalorder %s27, 0
      %p101 = por %p99, %p100
      %p102 = scmp.ne.s32.totalorder %s91, %s94
      %p103 = scmp.eq.s32.totalorder %s32, 2
      %p104 = por %p102, %p103
      %p105 = scmp.ne.s32.totalorder %s94, %s95
      %p106 = scmp.eq.s32.totalorder %s32, 0
      %p107 = por %p105, %p106
      %p108 = scmp.ne.s32.totalorder %s94, %s95
      %p109 = scmp.eq.s32.totalorder %s33, 2
      %p110 = por %p108, %p109
      %p112 = scmp.ne.s32.totalorder %s95, %s111
      %p113 = scmp.eq.s32.totalorder %s33, 0
      %p114 = por %p112, %p113
      %s115 = ssub.s32 %s27, %s34
      %p116 = scmp.eq.s32.totalorder %s115, 0
      %s118 = sadd.s32 %s117, 1
      %s119 = scalar_select %p116, %s117, %s118
      %p122 = pneg %p116
      %p123 = scmp.eq.s32.totalorder %s27, 2
      %p124 = por %p122, %p123
      %p125 = scmp.ne.s32.totalorder %s117, %s120
      %p126 = scmp.eq.s32.totalorder %s27, 0
      %p127 = por %p125, %p126
      %p128 = scmp.ne.s32.totalorder %s117, %s120
      %p129 = scmp.eq.s32.totalorder %s32, 2
      %p130 = por %p128, %p129
      %p131 = scmp.ne.s32.totalorder %s120, %s121
      %p132 = scmp.eq.s32.totalorder %s32, 0
      %p133 = por %p131, %p132
      %p134 = scmp.ne.s32.totalorder %s120, %s121
      %p135 = scmp.eq.s32.totalorder %s33, 2
      %p136 = por %p134, %p135
      %p138 = scmp.ne.s32.totalorder %s121, %s137
      %p139 = scmp.eq.s32.totalorder %s33, 0
      %p140 = por %p138, %p139
      %p141 = scmp.le.s32.totalorder 1, %s27
      %p142 = scmp.lt.s32.totalorder %s27, 4
      %p143 = pnand %p141, %p142
      %p144 = pneg %p143
      // Predicated region
      $region9: #{tpu_custom_call.1} parent=5 // pred_check
        _
      $region10: #{tpu_custom_call.1} parent=5 // pred_check_branch
        %146 = sbr.rel (%p143) target = $region12
      $region11: #{tpu_custom_call.1} parent=5 // pred_region
        %s147 = ssub.s32 %s27, 1
      $region12: #{tpu_custom_call.1} parent=5 // pred_fallthru
        _
      %p148 = scmp.lt.s32.totalorder %s27, 3
      // Predicated region
      $region13: #{tpu_custom_call.1} parent=5 // pred_check
        %p149 = pneg %p148
      $region14: #{tpu_custom_call.1} parent=5 // pred_check_branch
        %151 = sbr.rel (%p149) target = $region16
      $region15: #{tpu_custom_call.1} parent=5 // pred_region
        // Predicated region
        $region17: #{tpu_custom_call.1} parent=15 // pred_check
          %p152 = pneg %p47
        $region18: #{tpu_custom_call.1} parent=15 // pred_check_branch
          %154 = sbr.rel (%p152) target = $region20
        $region19: #{tpu_custom_call.1} parent=15 // pred_region
          %s155 = sand.u32 %s37, 1
          %s156 = scalar_lea.sflag [#allocation6], %s155
          %s157 = sand.u32 %s37, 1
          %s158 = smul.addr %s157, 16
          %s159 = scalar_lea.vmem [#allocation5], %s158
          %s161 = ssub.s32 256, 256
          %162 = vsyncadd %s156, %s161
          %s163 = smul.addr %s27, 4
          %s164 = smul.addr %s163, 64
          %s165 = scalar_lea.hbm %s2, %s164
          %s167 = sshll.u32 %s159, 4
          %s168 = int_to_ptr.vmem [resolvable:$true] %s167
          %170 = dma.hbm_to_vmem [thread:$0]  %s165, 256, %s168, %s156
        $region20: #{tpu_custom_call.1} parent=15 // pred_fallthru
          _
        // Predicated region
        $region21: #{tpu_custom_call.1} parent=15 // pred_check
          %p171 = pneg %p73
        $region22: #{tpu_custom_call.1} parent=15 // pred_check_branch
          %173 = sbr.rel (%p171) target = $region24
        $region23: #{tpu_custom_call.1} parent=15 // pred_region
          %s174 = sand.u32 %s63, 1
          %s175 = scalar_lea.sflag [#allocation9], %s174
          %s176 = sand.u32 %s63, 1
          %s177 = smul.addr %s176, 48
          %s178 = scalar_lea.vmem [#allocation8], %s177
          %s180 = ssub.s32 768, 768
          %181 = vsyncadd %s175, %s180
          %s182 = smul.addr %s27, 12
          %s183 = smul.addr %s182, 64
          %s184 = scalar_lea.hbm %s3, %s183
          %s185 = sshll.u32 %s178, 4
          %s186 = int_to_ptr.vmem [resolvable:$true] %s185
          %191 = dma.hbm_to_vmem [thread:$0]  %s184, 768, %s186, %s175, 256, 256, 16
        $region24: #{tpu_custom_call.1} parent=15 // pred_fallthru
          _
        // Predicated region
        $region25: #{tpu_custom_call.1} parent=15 // pred_check
          %p192 = pneg %p101
        $region26: #{tpu_custom_call.1} parent=15 // pred_check_branch
          %194 = sbr.rel (%p192) target = $region28
        $region27: #{tpu_custom_call.1} parent=15 // pred_region
          %s195 = sld [smem:[#allocation3 + %s27]]
          %p196 = scmp.lt.s32.totalorder %s195, 1
          %s197 = scalar_select %p196, %s195, 1
          %s198 = smul.addr %s197, 2
          %s199 = smul.addr %s198, 2
          %s200 = scalar_lea.vmem %s4, %s199
          %s201 = sld [smem:[#allocation3 + %s27]]
        $region28: #{tpu_custom_call.1} parent=15 // pred_fallthru
          _
      $region16: #{tpu_custom_call.1} parent=5 // pred_fallthru
        _
      %p202 = scmp.le.s32.totalorder 1, %s27
      %p203 = scmp.lt.s32.totalorder %s27, 4
      %p204 = pnand %p202, %p203
      %p205 = pneg %p204
      // Predicated region
      $region29: #{tpu_custom_call.1} parent=5 // pred_check
        _
      $region30: #{tpu_custom_call.1} parent=5 // pred_check_branch
        %207 = sbr.rel (%p204) target = $region32
      $region31: #{tpu_custom_call.1} parent=5 // pred_region
        %s208 = ssub.s32 %s27, 1
        %s209 = sand.u32 %s40, 1
        %s210 = scalar_lea.sflag [#allocation6], %s209
        %s211 = sand.u32 %s40, 1
        %s212 = smul.addr %s211, 16
        %s213 = scalar_lea.vmem [#allocation5], %s212
        // Predicated region
        $region33: #{tpu_custom_call.1} parent=31 // pred_check
          %p214 = pneg %p53
        $region34: #{tpu_custom_call.1} parent=31 // pred_check_branch
          %216 = sbr.rel (%p214) target = $region36
        $region35: #{tpu_custom_call.1} parent=31 // pred_region
          %217 = dma.done %s210, 256
        $region36: #{tpu_custom_call.1} parent=31 // pred_fallthru
          _
        %s218 = sand.u32 %s66, 1
        %s219 = scalar_lea.sflag [#allocation9], %s218
        %s220 = sand.u32 %s66, 1
        %s221 = smul.addr %s220, 48
        %s222 = scalar_lea.vmem [#allocation8], %s221
        // Predicated region
        $region37: #{tpu_custom_call.1} parent=31 // pred_check
          %p223 = pneg %p79
        $region38: #{tpu_custom_call.1} parent=31 // pred_check_branch
          %225 = sbr.rel (%p223) target = $region40
        $region39: #{tpu_custom_call.1} parent=31 // pred_region
          %226 = dma.done %s219, 768
        $region40: #{tpu_custom_call.1} parent=31 // pred_fallthru
          _
        %s227 = sand.u32 %s40, 1
        %s228 = scalar_lea.sflag [#allocation6], %s227
        %s229 = sand.u32 %s40, 1
        %s230 = smul.addr %s229, 16
        %s231 = scalar_lea.vmem [#allocation5], %s230
        %p232 = pneg %p53
        %p233 = pneg %p50
        %s234 = sand.u32 %s66, 1
        %s235 = scalar_lea.sflag [#allocation9], %s234
        %s236 = sand.u32 %s66, 1
        %s237 = smul.addr %s236, 48
        %s238 = scalar_lea.vmem [#allocation8], %s237
        %p239 = pneg %p79
        %p240 = pneg %p76
        %s241 = sld [smem:[#allocation3 + %s32]]
        %p242 = scmp.lt.s32.totalorder %s241, 1
        %s243 = scalar_select %p242, %s241, 1
        %s244 = smul.addr %s243, 2
        %s245 = smul.addr %s244, 2
        %s246 = scalar_lea.vmem %s4, %s245
        %p247 = pneg %p107
        %p248 = pneg %p104
        %p249 = pneg %p133
        %p250 = pneg %p130
        %s251 = sand.u32 %s120, 1
        %s252 = scalar_lea.sflag [#allocation7], %s251
        %s253 = sand.u32 %s120, 1
        %s254 = smul.addr %s253, 16
        %s255 = scalar_lea.vmem [#allocation10], %s254
        %s256 = sld [smem:[#allocation3 + %s32]]
        %p257 = scmp.lt.s32.totalorder %s256, 1
        %s258 = scalar_select %p257, %s256, 1
        %s259 = smul.addr %s258, 2
        %s260 = smul.addr %s259, 2
        %s261 = scalar_lea.vmem %s4, %s260
        %s262 = sld [smem:[#allocation3 + %s32]]
        %s263 = sld [smem:[#allocation4]]
        %p264 = scmp.lt.s32.totalorder %s32, %s263
        // Predicated region
        $region41: #{tpu_custom_call.1} parent=31 // pred_check
          %p265 = pneg %p264
        $region42: #{tpu_custom_call.1} parent=31 // pred_check_branch
          %267 = sbr.rel (%p265) target = $region44
        $region43: #{tpu_custom_call.1} parent=31 // pred_region
          %v268 = vld [vmem:[%s213] sm:$0xff]
          %v269 = vld [vmem:[%s213 + $0x8] sm:$0xff]
          %v270 = vld [vmem:[%s222] sm:$0xff]
          %v271 = vld [vmem:[%s222 + $0x8] sm:$0xff]
          %v272 = vld [vmem:[%s222 + $0x10] sm:$0xff]
          %v273 = vld [vmem:[%s222 + $0x18] sm:$0xff]
          %v274 = vld [vmem:[%s222 + $0x20] sm:$0xff]
          %v275 = vld [vmem:[%s222 + $0x28] sm:$0xff]
          %v276 = vsub.f32 %v274, %v272
          %v277 = vsub.f32 %v275, %v273
          %v278 = vsub.f32 1.0, %v270
          %v279 = vsub.f32 1.0, %v271
          %v280 = vlaneseq
          %v281 = vshrl.u32 %v280, 7
          %v282 = vadd.s32 %v281, 8
          %v283 = vadd.s32 %v281, 16
          %v284 = vadd.s32 %v281, 24
          %v285 = vadd.s32 %v281, 32
          %v286 = vadd.s32 %v281, 40
          %v287 = vadd.s32 %v281, 48
          %v288 = vadd.s32 %v281, 56
          %v289 = vadd.s32 %v281, 64
          %v290 = vadd.s32 %v281, 72
          %v291 = vadd.s32 %v281, 80
          %v292 = vadd.s32 %v281, 88
          %v293 = vadd.s32 %v281, 96
          %v294 = vadd.s32 %v281, 104
          %v295 = vadd.s32 %v281, 112
          %v296 = vadd.s32 %v281, 120
          %v297 = vadd.s32 %v281, 128
          %v298 = vadd.s32 %v281, 136
          %v299 = vadd.s32 %v281, 144
          %v300 = vadd.s32 %v281, 152
          %v301 = vadd.s32 %v281, 160
          %v302 = vadd.s32 %v281, 168
          %v303 = vadd.s32 %v281, 176
          %v304 = vadd.s32 %v281, 184
          %v305 = vadd.s32 %v281, 192
          %v306 = vadd.s32 %v281, 200
          %v307 = vadd.s32 %v281, 208
          %v308 = vadd.s32 %v281, 216
          %v309 = vadd.s32 %v281, 224
          %v310 = vadd.s32 %v281, 232
          %v311 = vadd.s32 %v281, 240
          %v312 = vadd.s32 %v281, 248
          %v313 = vlaneseq
          %v314 = vshrl.u32 %v313, 7
          %v315 = vsub.s32 0, %v314
          %v316 = vrot.slane %v268, %v315
          %v317 = vlaneseq
          %v318 = vshrl.u32 %v317, 7
          %v319 = vsub.s32 4, %v318
          %v320 = vrot.slane %v268, %v319
          %v321 = vlaneseq
          %v322 = vshrl.u32 %v321, 7
          %v323 = vsub.s32 0, %v322
          %v324 = vrot.slane %v269, %v323
          %v325 = vlaneseq
          %v326 = vshrl.u32 %v325, 7
          %v327 = vsub.s32 4, %v326
          %v328 = vrot.slane %v269, %v327
          %v329 = vlaneseq
          %v330 = vshrl.u32 %v329, 7
          %v331 = vsub.s32 0, %v330
          %v332 = vrot.slane %v316, %v331
          %v333 = vlaneseq
          %v334 = vshrl.u32 %v333, 7
          %v335 = vsub.s32 0, %v334
          %v336 = vrot.slane %v320, %v335
          %v337 = vlaneseq
          %v338 = vshrl.u32 %v337, 7
          %v339 = vsub.s32 0, %v338
          %v340 = vrot.slane %v324, %v339
          %v341 = vlaneseq
          %v342 = vshrl.u32 %v341, 7
          %v343 = vsub.s32 0, %v342
          %v344 = vrot.slane %v328, %v343
          %vm345 = vcmp.eq.s32.totalorder %v281, %v332
          %vm346 = vcmp.eq.s32.totalorder %v281, %v336
          %vm347 = vcmp.eq.s32.totalorder %v281, %v340
          %vm348 = vcmp.eq.s32.totalorder %v281, %v344
          %vm349 = vcmp.eq.s32.totalorder %v282, %v332
          %vm350 = vcmp.eq.s32.totalorder %v282, %v336
          %vm351 = vcmp.eq.s32.totalorder %v282, %v340
          %vm352 = vcmp.eq.s32.totalorder %v282, %v344
          %vm353 = vcmp.eq.s32.totalorder %v283, %v332
          %vm354 = vcmp.eq.s32.totalorder %v283, %v336
          %vm355 = vcmp.eq.s32.totalorder %v283, %v340
          %vm356 = vcmp.eq.s32.totalorder %v283, %v344
          %vm357 = vcmp.eq.s32.totalorder %v284, %v332
          %vm358 = vcmp.eq.s32.totalorder %v284, %v336
          %vm359 = vcmp.eq.s32.totalorder %v284, %v340
          %vm360 = vcmp.eq.s32.totalorder %v284, %v344
          %vm361 = vcmp.eq.s32.totalorder %v285, %v332
          %vm362 = vcmp.eq.s32.totalorder %v285, %v336
          %vm363 = vcmp.eq.s32.totalorder %v285, %v340
          %vm364 = vcmp.eq.s32.totalorder %v285, %v344
          %vm365 = vcmp.eq.s32.totalorder %v286, %v332
          %vm366 = vcmp.eq.s32.totalorder %v286, %v336
          %vm367 = vcmp.eq.s32.totalorder %v286, %v340
          %vm368 = vcmp.eq.s32.totalorder %v286, %v344
          %vm369 = vcmp.eq.s32.totalorder %v287, %v332
          %vm370 = vcmp.eq.s32.totalorder %v287, %v336
          %vm371 = vcmp.eq.s32.totalorder %v287, %v340
          %vm372 = vcmp.eq.s32.totalorder %v287, %v344
          %vm373 = vcmp.eq.s32.totalorder %v288, %v332
          %vm374 = vcmp.eq.s32.totalorder %v288, %v336
          %vm375 = vcmp.eq.s32.totalorder %v288, %v340
          %vm376 = vcmp.eq.s32.totalorder %v288, %v344
          %vm377 = vcmp.eq.s32.totalorder %v289, %v332
          %vm378 = vcmp.eq.s32.totalorder %v289, %v336
          %vm379 = vcmp.eq.s32.totalorder %v289, %v340
          %vm380 = vcmp.eq.s32.totalorder %v289, %v344
          %vm381 = vcmp.eq.s32.totalorder %v290, %v332
          %vm382 = vcmp.eq.s32.totalorder %v290, %v336
          %vm383 = vcmp.eq.s32.totalorder %v290, %v340
          %vm384 = vcmp.eq.s32.totalorder %v290, %v344
          %vm385 = vcmp.eq.s32.totalorder %v291, %v332
          %vm386 = vcmp.eq.s32.totalorder %v291, %v336
          %vm387 = vcmp.eq.s32.totalorder %v291, %v340
          %vm388 = vcmp.eq.s32.totalorder %v291, %v344
          %vm389 = vcmp.eq.s32.totalorder %v292, %v332
          %vm390 = vcmp.eq.s32.totalorder %v292, %v336
          %vm391 = vcmp.eq.s32.totalorder %v292, %v340
          %vm392 = vcmp.eq.s32.totalorder %v292, %v344
          %vm393 = vcmp.eq.s32.totalorder %v293, %v332
          %vm394 = vcmp.eq.s32.totalorder %v293, %v336
          %vm395 = vcmp.eq.s32.totalorder %v293, %v340
          %vm396 = vcmp.eq.s32.totalorder %v293, %v344
          %vm397 = vcmp.eq.s32.totalorder %v294, %v332
          %vm398 = vcmp.eq.s32.totalorder %v294, %v336
          %vm399 = vcmp.eq.s32.totalorder %v294, %v340
          %vm400 = vcmp.eq.s32.totalorder %v294, %v344
          %vm401 = vcmp.eq.s32.totalorder %v295, %v332
          %vm402 = vcmp.eq.s32.totalorder %v295, %v336
          %vm403 = vcmp.eq.s32.totalorder %v295, %v340
          %vm404 = vcmp.eq.s32.totalorder %v295, %v344
          %vm405 = vcmp.eq.s32.totalorder %v296, %v332
          %vm406 = vcmp.eq.s32.totalorder %v296, %v336
          %vm407 = vcmp.eq.s32.totalorder %v296, %v340
          %vm408 = vcmp.eq.s32.totalorder %v296, %v344
          %vm409 = vcmp.eq.s32.totalorder %v297, %v332
          %vm410 = vcmp.eq.s32.totalorder %v297, %v336
          %vm411 = vcmp.eq.s32.totalorder %v297, %v340
          %vm412 = vcmp.eq.s32.totalorder %v297, %v344
          %vm413 = vcmp.eq.s32.totalorder %v298, %v332
          %vm414 = vcmp.eq.s32.totalorder %v298, %v336
          %vm415 = vcmp.eq.s32.totalorder %v298, %v340
          %vm416 = vcmp.eq.s32.totalorder %v298, %v344
          %vm417 = vcmp.eq.s32.totalorder %v299, %v332
          %vm418 = vcmp.eq.s32.totalorder %v299, %v336
          %vm419 = vcmp.eq.s32.totalorder %v299, %v340
          %vm420 = vcmp.eq.s32.totalorder %v299, %v344
          %vm421 = vcmp.eq.s32.totalorder %v300, %v332
          %vm422 = vcmp.eq.s32.totalorder %v300, %v336
          %vm423 = vcmp.eq.s32.totalorder %v300, %v340
          %vm424 = vcmp.eq.s32.totalorder %v300, %v344
          %vm425 = vcmp.eq.s32.totalorder %v301, %v332
          %vm426 = vcmp.eq.s32.totalorder %v301, %v336
          %vm427 = vcmp.eq.s32.totalorder %v301, %v340
          %vm428 = vcmp.eq.s32.totalorder %v301, %v344
          %vm429 = vcmp.eq.s32.totalorder %v302, %v332
          %vm430 = vcmp.eq.s32.totalorder %v302, %v336
          %vm431 = vcmp.eq.s32.totalorder %v302, %v340
          %vm432 = vcmp.eq.s32.totalorder %v302, %v344
          %vm433 = vcmp.eq.s32.totalorder %v303, %v332
          %vm434 = vcmp.eq.s32.totalorder %v303, %v336
          %vm435 = vcmp.eq.s32.totalorder %v303, %v340
          %vm436 = vcmp.eq.s32.totalorder %v303, %v344
          %vm437 = vcmp.eq.s32.totalorder %v304, %v332
          %vm438 = vcmp.eq.s32.totalorder %v304, %v336
          %vm439 = vcmp.eq.s32.totalorder %v304, %v340
          %vm440 = vcmp.eq.s32.totalorder %v304, %v344
          %vm441 = vcmp.eq.s32.totalorder %v305, %v332
          %vm442 = vcmp.eq.s32.totalorder %v305, %v336
          %vm443 = vcmp.eq.s32.totalorder %v305, %v340
          %vm444 = vcmp.eq.s32.totalorder %v305, %v344
          %vm445 = vcmp.eq.s32.totalorder %v306, %v332
          %vm446 = vcmp.eq.s32.totalorder %v306, %v336
          %vm447 = vcmp.eq.s32.totalorder %v306, %v340
          %vm448 = vcmp.eq.s32.totalorder %v306, %v344
          %vm449 = vcmp.eq.s32.totalorder %v307, %v332
          %vm450 = vcmp.eq.s32.totalorder %v307, %v336
          %vm451 = vcmp.eq.s32.totalorder %v307, %v340
          %vm452 = vcmp.eq.s32.totalorder %v307, %v344
          %vm453 = vcmp.eq.s32.totalorder %v308, %v332
          %vm454 = vcmp.eq.s32.totalorder %v308, %v336
          %vm455 = vcmp.eq.s32.totalorder %v308, %v340
          %vm456 = vcmp.eq.s32.totalorder %v308, %v344
          %vm457 = vcmp.eq.s32.totalorder %v309, %v332
          %vm458 = vcmp.eq.s32.totalorder %v309, %v336
          %vm459 = vcmp.eq.s32.totalorder %v309, %v340
          %vm460 = vcmp.eq.s32.totalorder %v309, %v344
          %vm461 = vcmp.eq.s32.totalorder %v310, %v332
          %vm462 = vcmp.eq.s32.totalorder %v310, %v336
          %vm463 = vcmp.eq.s32.totalorder %v310, %v340
          %vm464 = vcmp.eq.s32.totalorder %v310, %v344
          %vm465 = vcmp.eq.s32.totalorder %v311, %v332
          %vm466 = vcmp.eq.s32.totalorder %v311, %v336
          %vm467 = vcmp.eq.s32.totalorder %v311, %v340
          %vm468 = vcmp.eq.s32.totalorder %v311, %v344
          %vm469 = vcmp.eq.s32.totalorder %v312, %v332
          %vm470 = vcmp.eq.s32.totalorder %v312, %v336
          %vm471 = vcmp.eq.s32.totalorder %v312, %v340
          %vm472 = vcmp.eq.s32.totalorder %v312, %v344
          %v475 = vlaneseq
          %v476 = vshrl.u32 %v475, 7
          %v477 = vsub.s32 0, %v476
          %v478 = vrot.slane %v276, %v477
          %v479 = vlaneseq
          %v480 = vshrl.u32 %v479, 7
          %v481 = vsub.s32 4, %v480
          %v482 = vrot.slane %v276, %v481
          %v483 = vlaneseq
          %v484 = vshrl.u32 %v483, 7
          %v485 = vsub.s32 0, %v484
          %v486 = vrot.slane %v277, %v485
          %v487 = vlaneseq
          %v488 = vshrl.u32 %v487, 7
          %v489 = vsub.s32 4, %v488
          %v490 = vrot.slane %v277, %v489
          %v495 = vlaneseq
          %v496 = vshrl.u32 %v495, 7
          %v497 = vsub.s32 0, %v496
          %v498 = vrot.slane %v478, %v497
          %v499 = vlaneseq
          %v500 = vshrl.u32 %v499, 7
          %v501 = vsub.s32 0, %v500
          %v502 = vrot.slane %v482, %v501
          %v503 = vlaneseq
          %v504 = vshrl.u32 %v503, 7
          %v505 = vsub.s32 0, %v504
          %v506 = vrot.slane %v486, %v505
          %v507 = vlaneseq
          %v508 = vshrl.u32 %v507, 7
          %v509 = vsub.s32 0, %v508
          %v510 = vrot.slane %v490, %v509
          %v511 = vsel %vm345, %v498, 0.0
          %v512 = vsel %vm346, %v502, 0.0
          %v513 = vsel %vm347, %v506, 0.0
          %v514 = vsel %vm348, %v510, 0.0
          %v515 = vsel %vm349, %v498, 0.0
          %v516 = vsel %vm350, %v502, 0.0
          %v517 = vsel %vm351, %v506, 0.0
          %v518 = vsel %vm352, %v510, 0.0
          %v519 = vsel %vm353, %v498, 0.0
          %v520 = vsel %vm354, %v502, 0.0
          %v521 = vsel %vm355, %v506, 0.0
          %v522 = vsel %vm356, %v510, 0.0
          %v523 = vsel %vm357, %v498, 0.0
          %v524 = vsel %vm358, %v502, 0.0
          %v525 = vsel %vm359, %v506, 0.0
          %v526 = vsel %vm360, %v510, 0.0
          %v527 = vsel %vm361, %v498, 0.0
          %v528 = vsel %vm362, %v502, 0.0
          %v529 = vsel %vm363, %v506, 0.0
          %v530 = vsel %vm364, %v510, 0.0
          %v531 = vsel %vm365, %v498, 0.0
          %v532 = vsel %vm366, %v502, 0.0
          %v533 = vsel %vm367, %v506, 0.0
          %v534 = vsel %vm368, %v510, 0.0
          %v535 = vsel %vm369, %v498, 0.0
          %v536 = vsel %vm370, %v502, 0.0
          %v537 = vsel %vm371, %v506, 0.0
          %v538 = vsel %vm372, %v510, 0.0
          %v539 = vsel %vm373, %v498, 0.0
          %v540 = vsel %vm374, %v502, 0.0
          %v541 = vsel %vm375, %v506, 0.0
          %v542 = vsel %vm376, %v510, 0.0
          %v543 = vsel %vm377, %v498, 0.0
          %v544 = vsel %vm378, %v502, 0.0
          %v545 = vsel %vm379, %v506, 0.0
          %v546 = vsel %vm380, %v510, 0.0
          %v547 = vsel %vm381, %v498, 0.0
          %v548 = vsel %vm382, %v502, 0.0
          %v549 = vsel %vm383, %v506, 0.0
          %v550 = vsel %vm384, %v510, 0.0
          %v551 = vsel %vm385, %v498, 0.0
          %v552 = vsel %vm386, %v502, 0.0
          %v553 = vsel %vm387, %v506, 0.0
          %v554 = vsel %vm388, %v510, 0.0
          %v555 = vsel %vm389, %v498, 0.0
          %v556 = vsel %vm390, %v502, 0.0
          %v557 = vsel %vm391, %v506, 0.0
          %v558 = vsel %vm392, %v510, 0.0
          %v559 = vsel %vm393, %v498, 0.0
          %v560 = vsel %vm394, %v502, 0.0
          %v561 = vsel %vm395, %v506, 0.0
          %v562 = vsel %vm396, %v510, 0.0
          %v563 = vsel %vm397, %v498, 0.0
          %v564 = vsel %vm398, %v502, 0.0
          %v565 = vsel %vm399, %v506, 0.0
          %v566 = vsel %vm400, %v510, 0.0
          %v567 = vsel %vm401, %v498, 0.0
          %v568 = vsel %vm402, %v502, 0.0
          %v569 = vsel %vm403, %v506, 0.0
          %v570 = vsel %vm404, %v510, 0.0
          %v571 = vsel %vm405, %v498, 0.0
          %v572 = vsel %vm406, %v502, 0.0
          %v573 = vsel %vm407, %v506, 0.0
          %v574 = vsel %vm408, %v510, 0.0
          %v575 = vsel %vm409, %v498, 0.0
          %v576 = vsel %vm410, %v502, 0.0
          %v577 = vsel %vm411, %v506, 0.0
          %v578 = vsel %vm412, %v510, 0.0
          %v579 = vsel %vm413, %v498, 0.0
          %v580 = vsel %vm414, %v502, 0.0
          %v581 = vsel %vm415, %v506, 0.0
          %v582 = vsel %vm416, %v510, 0.0
          %v583 = vsel %vm417, %v498, 0.0
          %v584 = vsel %vm418, %v502, 0.0
          %v585 = vsel %vm419, %v506, 0.0
          %v586 = vsel %vm420, %v510, 0.0
          %v587 = vsel %vm421, %v498, 0.0
          %v588 = vsel %vm422, %v502, 0.0
          %v589 = vsel %vm423, %v506, 0.0
          %v590 = vsel %vm424, %v510, 0.0
          %v591 = vsel %vm425, %v498, 0.0
          %v592 = vsel %vm426, %v502, 0.0
          %v593 = vsel %vm427, %v506, 0.0
          %v594 = vsel %vm428, %v510, 0.0
          %v595 = vsel %vm429, %v498, 0.0
          %v596 = vsel %vm430, %v502, 0.0
          %v597 = vsel %vm431, %v506, 0.0
          %v598 = vsel %vm432, %v510, 0.0
          %v599 = vsel %vm433, %v498, 0.0
          %v600 = vsel %vm434, %v502, 0.0
          %v601 = vsel %vm435, %v506, 0.0
          %v602 = vsel %vm436, %v510, 0.0
          %v603 = vsel %vm437, %v498, 0.0
          %v604 = vsel %vm438, %v502, 0.0
          %v605 = vsel %vm439, %v506, 0.0
          %v606 = vsel %vm440, %v510, 0.0
          %v607 = vsel %vm441, %v498, 0.0
          %v608 = vsel %vm442, %v502, 0.0
          %v609 = vsel %vm443, %v506, 0.0
          %v610 = vsel %vm444, %v510, 0.0
          %v611 = vsel %vm445, %v498, 0.0
          %v612 = vsel %vm446, %v502, 0.0
          %v613 = vsel %vm447, %v506, 0.0
          %v614 = vsel %vm448, %v510, 0.0
          %v615 = vsel %vm449, %v498, 0.0
          %v616 = vsel %vm450, %v502, 0.0
          %v617 = vsel %vm451, %v506, 0.0
          %v618 = vsel %vm452, %v510, 0.0
          %v619 = vsel %vm453, %v498, 0.0
          %v620 = vsel %vm454, %v502, 0.0
          %v621 = vsel %vm455, %v506, 0.0
          %v622 = vsel %vm456, %v510, 0.0
          %v623 = vsel %vm457, %v498, 0.0
          %v624 = vsel %vm458, %v502, 0.0
          %v625 = vsel %vm459, %v506, 0.0
          %v626 = vsel %vm460, %v510, 0.0
          %v627 = vsel %vm461, %v498, 0.0
          %v628 = vsel %vm462, %v502, 0.0
          %v629 = vsel %vm463, %v506, 0.0
          %v630 = vsel %vm464, %v510, 0.0
          %v631 = vsel %vm465, %v498, 0.0
          %v632 = vsel %vm466, %v502, 0.0
          %v633 = vsel %vm467, %v506, 0.0
          %v634 = vsel %vm468, %v510, 0.0
          %v635 = vsel %vm469, %v498, 0.0
          %v636 = vsel %vm470, %v502, 0.0
          %v637 = vsel %vm471, %v506, 0.0
          %v638 = vsel %vm472, %v510, 0.0
          %v641 = vlaneseq
          %v642 = vshrl.u32 %v641, 7
          %v643 = vsub.s32 0, %v642
          %v644 = vrot.slane %v272, %v643
          %v645 = vlaneseq
          %v646 = vshrl.u32 %v645, 7
          %v647 = vsub.s32 4, %v646
          %v648 = vrot.slane %v272, %v647
          %v649 = vlaneseq
          %v650 = vshrl.u32 %v649, 7
          %v651 = vsub.s32 0, %v650
          %v652 = vrot.slane %v273, %v651
          %v653 = vlaneseq
          %v654 = vshrl.u32 %v653, 7
          %v655 = vsub.s32 4, %v654
          %v656 = vrot.slane %v273, %v655
          %v661 = vlaneseq
          %v662 = vshrl.u32 %v661, 7
          %v663 = vsub.s32 0, %v662
          %v664 = vrot.slane %v644, %v663
          %v665 = vlaneseq
          %v666 = vshrl.u32 %v665, 7
          %v667 = vsub.s32 0, %v666
          %v668 = vrot.slane %v648, %v667
          %v669 = vlaneseq
          %v670 = vshrl.u32 %v669, 7
          %v671 = vsub.s32 0, %v670
          %v672 = vrot.slane %v652, %v671
          %v673 = vlaneseq
          %v674 = vshrl.u32 %v673, 7
          %v675 = vsub.s32 0, %v674
          %v676 = vrot.slane %v656, %v675
          %v677 = vsel %vm345, %v664, 0.0
          %v678 = vsel %vm346, %v668, 0.0
          %v679 = vsel %vm347, %v672, 0.0
          %v680 = vsel %vm348, %v676, 0.0
          %v681 = vsel %vm349, %v664, 0.0
          %v682 = vsel %vm350, %v668, 0.0
          %v683 = vsel %vm351, %v672, 0.0
          %v684 = vsel %vm352, %v676, 0.0
          %v685 = vsel %vm353, %v664, 0.0
          %v686 = vsel %vm354, %v668, 0.0
          %v687 = vsel %vm355, %v672, 0.0
          %v688 = vsel %vm356, %v676, 0.0
          %v689 = vsel %vm357, %v664, 0.0
          %v690 = vsel %vm358, %v668, 0.0
          %v691 = vsel %vm359, %v672, 0.0
          %v692 = vsel %vm360, %v676, 0.0
          %v693 = vsel %vm361, %v664, 0.0
          %v694 = vsel %vm362, %v668, 0.0
          %v695 = vsel %vm363, %v672, 0.0
          %v696 = vsel %vm364, %v676, 0.0
          %v697 = vsel %vm365, %v664, 0.0
          %v698 = vsel %vm366, %v668, 0.0
          %v699 = vsel %vm367, %v672, 0.0
          %v700 = vsel %vm368, %v676, 0.0
          %v701 = vsel %vm369, %v664, 0.0
          %v702 = vsel %vm370, %v668, 0.0
          %v703 = vsel %vm371, %v672, 0.0
          %v704 = vsel %vm372, %v676, 0.0
          %v705 = vsel %vm373, %v664, 0.0
          %v706 = vsel %vm374, %v668, 0.0
          %v707 = vsel %vm375, %v672, 0.0
          %v708 = vsel %vm376, %v676, 0.0
          %v709 = vsel %vm377, %v664, 0.0
          %v710 = vsel %vm378, %v668, 0.0
          %v711 = vsel %vm379, %v672, 0.0
          %v712 = vsel %vm380, %v676, 0.0
          %v713 = vsel %vm381, %v664, 0.0
          %v714 = vsel %vm382, %v668, 0.0
          %v715 = vsel %vm383, %v672, 0.0
          %v716 = vsel %vm384, %v676, 0.0
          %v717 = vsel %vm385, %v664, 0.0
          %v718 = vsel %vm386, %v668, 0.0
          %v719 = vsel %vm387, %v672, 0.0
          %v720 = vsel %vm388, %v676, 0.0
          %v721 = vsel %vm389, %v664, 0.0
          %v722 = vsel %vm390, %v668, 0.0
          %v723 = vsel %vm391, %v672, 0.0
          %v724 = vsel %vm392, %v676, 0.0
          %v725 = vsel %vm393, %v664, 0.0
          %v726 = vsel %vm394, %v668, 0.0
          %v727 = vsel %vm395, %v672, 0.0
          %v728 = vsel %vm396, %v676, 0.0
          %v729 = vsel %vm397, %v664, 0.0
          %v730 = vsel %vm398, %v668, 0.0
          %v731 = vsel %vm399, %v672, 0.0
          %v732 = vsel %vm400, %v676, 0.0
          %v733 = vsel %vm401, %v664, 0.0
          %v734 = vsel %vm402, %v668, 0.0
          %v735 = vsel %vm403, %v672, 0.0
          %v736 = vsel %vm404, %v676, 0.0
          %v737 = vsel %vm405, %v664, 0.0
          %v738 = vsel %vm406, %v668, 0.0
          %v739 = vsel %vm407, %v672, 0.0
          %v740 = vsel %vm408, %v676, 0.0
          %v741 = vsel %vm409, %v664, 0.0
          %v742 = vsel %vm410, %v668, 0.0
          %v743 = vsel %vm411, %v672, 0.0
          %v744 = vsel %vm412, %v676, 0.0
          %v745 = vsel %vm413, %v664, 0.0
          %v746 = vsel %vm414, %v668, 0.0
          %v747 = vsel %vm415, %v672, 0.0
          %v748 = vsel %vm416, %v676, 0.0
          %v749 = vsel %vm417, %v664, 0.0
          %v750 = vsel %vm418, %v668, 0.0
          %v751 = vsel %vm419, %v672, 0.0
          %v752 = vsel %vm420, %v676, 0.0
          %v753 = vsel %vm421, %v664, 0.0
          %v754 = vsel %vm422, %v668, 0.0
          %v755 = vsel %vm423, %v672, 0.0
          %v756 = vsel %vm424, %v676, 0.0
          %v757 = vsel %vm425, %v664, 0.0
          %v758 = vsel %vm426, %v668, 0.0
          %v759 = vsel %vm427, %v672, 0.0
          %v760 = vsel %vm428, %v676, 0.0
          %v761 = vsel %vm429, %v664, 0.0
          %v762 = vsel %vm430, %v668, 0.0
          %v763 = vsel %vm431, %v672, 0.0
          %v764 = vsel %vm432, %v676, 0.0
          %v765 = vsel %vm433, %v664, 0.0
          %v766 = vsel %vm434, %v668, 0.0
          %v767 = vsel %vm435, %v672, 0.0
          %v768 = vsel %vm436, %v676, 0.0
          %v769 = vsel %vm437, %v664, 0.0
          %v770 = vsel %vm438, %v668, 0.0
          %v771 = vsel %vm439, %v672, 0.0
          %v772 = vsel %vm440, %v676, 0.0
          %v773 = vsel %vm441, %v664, 0.0
          %v774 = vsel %vm442, %v668, 0.0
          %v775 = vsel %vm443, %v672, 0.0
          %v776 = vsel %vm444, %v676, 0.0
          %v777 = vsel %vm445, %v664, 0.0
          %v778 = vsel %vm446, %v668, 0.0
          %v779 = vsel %vm447, %v672, 0.0
          %v780 = vsel %vm448, %v676, 0.0
          %v781 = vsel %vm449, %v664, 0.0
          %v782 = vsel %vm450, %v668, 0.0
          %v783 = vsel %vm451, %v672, 0.0
          %v784 = vsel %vm452, %v676, 0.0
          %v785 = vsel %vm453, %v664, 0.0
          %v786 = vsel %vm454, %v668, 0.0
          %v787 = vsel %vm455, %v672, 0.0
          %v788 = vsel %vm456, %v676, 0.0
          %v789 = vsel %vm457, %v664, 0.0
          %v790 = vsel %vm458, %v668, 0.0
          %v791 = vsel %vm459, %v672, 0.0
          %v792 = vsel %vm460, %v676, 0.0
          %v793 = vsel %vm461, %v664, 0.0
          %v794 = vsel %vm462, %v668, 0.0
          %v795 = vsel %vm463, %v672, 0.0
          %v796 = vsel %vm464, %v676, 0.0
          %v797 = vsel %vm465, %v664, 0.0
          %v798 = vsel %vm466, %v668, 0.0
          %v799 = vsel %vm467, %v672, 0.0
          %v800 = vsel %vm468, %v676, 0.0
          %v801 = vsel %vm469, %v664, 0.0
          %v802 = vsel %vm470, %v668, 0.0
          %v803 = vsel %vm471, %v672, 0.0
          %v804 = vsel %vm472, %v676, 0.0
          %v805 = vrot.slane %v677, 7
          %v806 = vrot.slane %v678, 7
          %v807 = vrot.slane %v679, 7
          %v808 = vrot.slane %v680, 7
          %v809 = vrot.slane %v681, 7
          %v810 = vrot.slane %v682, 7
          %v811 = vrot.slane %v683, 7
          %v812 = vrot.slane %v684, 7
          %v813 = vrot.slane %v685, 7
          %v814 = vrot.slane %v686, 7
          %v815 = vrot.slane %v687, 7
          %v816 = vrot.slane %v688, 7
          %v817 = vrot.slane %v689, 7
          %v818 = vrot.slane %v690, 7
          %v819 = vrot.slane %v691, 7
          %v820 = vrot.slane %v692, 7
          %v821 = vrot.slane %v693, 7
          %v822 = vrot.slane %v694, 7
          %v823 = vrot.slane %v695, 7
          %v824 = vrot.slane %v696, 7
          %v825 = vrot.slane %v697, 7
          %v826 = vrot.slane %v698, 7
          %v827 = vrot.slane %v699, 7
          %v828 = vrot.slane %v700, 7
          %v829 = vrot.slane %v701, 7
          %v830 = vrot.slane %v702, 7
          %v831 = vrot.slane %v703, 7
          %v832 = vrot.slane %v704, 7
          %v833 = vrot.slane %v705, 7
          %v834 = vrot.slane %v706, 7
          %v835 = vrot.slane %v707, 7
          %v836 = vrot.slane %v708, 7
          %v837 = vrot.slane %v709, 7
          %v838 = vrot.slane %v710, 7
          %v839 = vrot.slane %v711, 7
          %v840 = vrot.slane %v712, 7
          %v841 = vrot.slane %v713, 7
          %v842 = vrot.slane %v714, 7
          %v843 = vrot.slane %v715, 7
          %v844 = vrot.slane %v716, 7
          %v845 = vrot.slane %v717, 7
          %v846 = vrot.slane %v718, 7
          %v847 = vrot.slane %v719, 7
          %v848 = vrot.slane %v720, 7
          %v849 = vrot.slane %v721, 7
          %v850 = vrot.slane %v722, 7
          %v851 = vrot.slane %v723, 7
          %v852 = vrot.slane %v724, 7
          %v853 = vrot.slane %v725, 7
          %v854 = vrot.slane %v726, 7
          %v855 = vrot.slane %v727, 7
          %v856 = vrot.slane %v728, 7
          %v857 = vrot.slane %v729, 7
          %v858 = vrot.slane %v730, 7
          %v859 = vrot.slane %v731, 7
          %v860 = vrot.slane %v732, 7
          %v861 = vrot.slane %v733, 7
          %v862 = vrot.slane %v734, 7
          %v863 = vrot.slane %v735, 7
          %v864 = vrot.slane %v736, 7
          %v865 = vrot.slane %v737, 7
          %v866 = vrot.slane %v738, 7
          %v867 = vrot.slane %v739, 7
          %v868 = vrot.slane %v740, 7
          %v869 = vrot.slane %v741, 7
          %v870 = vrot.slane %v742, 7
          %v871 = vrot.slane %v743, 7
          %v872 = vrot.slane %v744, 7
          %v873 = vrot.slane %v745, 7
          %v874 = vrot.slane %v746, 7
          %v875 = vrot.slane %v747, 7
          %v876 = vrot.slane %v748, 7
          %v877 = vrot.slane %v749, 7
          %v878 = vrot.slane %v750, 7
          %v879 = vrot.slane %v751, 7
          %v880 = vrot.slane %v752, 7
          %v881 = vrot.slane %v753, 7
          %v882 = vrot.slane %v754, 7
          %v883 = vrot.slane %v755, 7
          %v884 = vrot.slane %v756, 7
          %v885 = vrot.slane %v757, 7
          %v886 = vrot.slane %v758, 7
          %v887 = vrot.slane %v759, 7
          %v888 = vrot.slane %v760, 7
          %v889 = vrot.slane %v761, 7
          %v890 = vrot.slane %v762, 7
          %v891 = vrot.slane %v763, 7
          %v892 = vrot.slane %v764, 7
          %v893 = vrot.slane %v765, 7
          %v894 = vrot.slane %v766, 7
          %v895 = vrot.slane %v767, 7
          %v896 = vrot.slane %v768, 7
          %v897 = vrot.slane %v769, 7
          %v898 = vrot.slane %v770, 7
          %v899 = vrot.slane %v771, 7
          %v900 = vrot.slane %v772, 7
          %v901 = vrot.slane %v773, 7
          %v902 = vrot.slane %v774, 7
          %v903 = vrot.slane %v775, 7
          %v904 = vrot.slane %v776, 7
          %v905 = vrot.slane %v777, 7
          %v906 = vrot.slane %v778, 7
          %v907 = vrot.slane %v779, 7
          %v908 = vrot.slane %v780, 7
          %v909 = vrot.slane %v781, 7
          %v910 = vrot.slane %v782, 7
          %v911 = vrot.slane %v783, 7
          %v912 = vrot.slane %v784, 7
          %v913 = vrot.slane %v785, 7
          %v914 = vrot.slane %v786, 7
          %v915 = vrot.slane %v787, 7
          %v916 = vrot.slane %v788, 7
          %v917 = vrot.slane %v789, 7
          %v918 = vrot.slane %v790, 7
          %v919 = vrot.slane %v791, 7
          %v920 = vrot.slane %v792, 7
          %v921 = vrot.slane %v793, 7
          %v922 = vrot.slane %v794, 7
          %v923 = vrot.slane %v795, 7
          %v924 = vrot.slane %v796, 7
          %v925 = vrot.slane %v797, 7
          %v926 = vrot.slane %v798, 7
          %v927 = vrot.slane %v799, 7
          %v928 = vrot.slane %v800, 7
          %v929 = vrot.slane %v801, 7
          %v930 = vrot.slane %v802, 7
          %v931 = vrot.slane %v803, 7
          %v932 = vrot.slane %v804, 7
          %vm933 = vcmp.lt.s32.totalorder %v281, 1
          %v934 = vsel %vm933, %v925, %v929
          %v935 = vsel %vm933, %v926, %v930
          %v936 = vsel %vm933, %v927, %v931
          %v937 = vsel %vm933, %v928, %v932
          %v938 = vsel %vm933, %v921, %v925
          %v939 = vsel %vm933, %v922, %v926
          %v940 = vsel %vm933, %v923, %v927
          %v941 = vsel %vm933, %v924, %v928
          %v942 = vsel %vm933, %v917, %v921
          %v943 = vsel %vm933, %v918, %v922
          %v944 = vsel %vm933, %v919, %v923
          %v945 = vsel %vm933, %v920, %v924
          %v946 = vsel %vm933, %v913, %v917
          %v947 = vsel %vm933, %v914, %v918
          %v948 = vsel %vm933, %v915, %v919
          %v949 = vsel %vm933, %v916, %v920
          %v950 = vsel %vm933, %v909, %v913
          %v951 = vsel %vm933, %v910, %v914
          %v952 = vsel %vm933, %v911, %v915
          %v953 = vsel %vm933, %v912, %v916
          %v954 = vsel %vm933, %v905, %v909
          %v955 = vsel %vm933, %v906, %v910
          %v956 = vsel %vm933, %v907, %v911
          %v957 = vsel %vm933, %v908, %v912
          %v958 = vsel %vm933, %v901, %v905
          %v959 = vsel %vm933, %v902, %v906
          %v960 = vsel %vm933, %v903, %v907
          %v961 = vsel %vm933, %v904, %v908
          %v962 = vsel %vm933, %v897, %v901
          %v963 = vsel %vm933, %v898, %v902
          %v964 = vsel %vm933, %v899, %v903
          %v965 = vsel %vm933, %v900, %v904
          %v966 = vsel %vm933, %v893, %v897
          %v967 = vsel %vm933, %v894, %v898
          %v968 = vsel %vm933, %v895, %v899
          %v969 = vsel %vm933, %v896, %v900
          %v970 = vsel %vm933, %v889, %v893
          %v971 = vsel %vm933, %v890, %v894
          %v972 = vsel %vm933, %v891, %v895
          %v973 = vsel %vm933, %v892, %v896
          %v974 = vsel %vm933, %v885, %v889
          %v975 = vsel %vm933, %v886, %v890
          %v976 = vsel %vm933, %v887, %v891
          %v977 = vsel %vm933, %v888, %v892
          %v978 = vsel %vm933, %v881, %v885
          %v979 = vsel %vm933, %v882, %v886
          %v980 = vsel %vm933, %v883, %v887
          %v981 = vsel %vm933, %v884, %v888
          %v982 = vsel %vm933, %v877, %v881
          %v983 = vsel %vm933, %v878, %v882
          %v984 = vsel %vm933, %v879, %v883
          %v985 = vsel %vm933, %v880, %v884
          %v986 = vsel %vm933, %v873, %v877
          %v987 = vsel %vm933, %v874, %v878
          %v988 = vsel %vm933, %v875, %v879
          %v989 = vsel %vm933, %v876, %v880
          %v990 = vsel %vm933, %v869, %v873
          %v991 = vsel %vm933, %v870, %v874
          %v992 = vsel %vm933, %v871, %v875
          %v993 = vsel %vm933, %v872, %v876
          %v994 = vsel %vm933, %v865, %v869
          %v995 = vsel %vm933, %v866, %v870
          %v996 = vsel %vm933, %v867, %v871
          %v997 = vsel %vm933, %v868, %v872
          %v998 = vsel %vm933, %v861, %v865
          %v999 = vsel %vm933, %v862, %v866
          %v1000 = vsel %vm933, %v863, %v867
          %v1001 = vsel %vm933, %v864, %v868
          %v1002 = vsel %vm933, %v857, %v861
          %v1003 = vsel %vm933, %v858, %v862
          %v1004 = vsel %vm933, %v859, %v863
          %v1005 = vsel %vm933, %v860, %v864
          %v1006 = vsel %vm933, %v853, %v857
          %v1007 = vsel %vm933, %v854, %v858
          %v1008 = vsel %vm933, %v855, %v859
          %v1009 = vsel %vm933, %v856, %v860
          %v1010 = vsel %vm933, %v849, %v853
          %v1011 = vsel %vm933, %v850, %v854
          %v1012 = vsel %vm933, %v851, %v855
          %v1013 = vsel %vm933, %v852, %v856
          %v1014 = vsel %vm933, %v845, %v849
          %v1015 = vsel %vm933, %v846, %v850
          %v1016 = vsel %vm933, %v847, %v851
          %v1017 = vsel %vm933, %v848, %v852
          %v1018 = vsel %vm933, %v841, %v845
          %v1019 = vsel %vm933, %v842, %v846
          %v1020 = vsel %vm933, %v843, %v847
          %v1021 = vsel %vm933, %v844, %v848
          %v1022 = vsel %vm933, %v837, %v841
          %v1023 = vsel %vm933, %v838, %v842
          %v1024 = vsel %vm933, %v839, %v843
          %v1025 = vsel %vm933, %v840, %v844
          %v1026 = vsel %vm933, %v833, %v837
          %v1027 = vsel %vm933, %v834, %v838
          %v1028 = vsel %vm933, %v835, %v839
          %v1029 = vsel %vm933, %v836, %v840
          %v1030 = vsel %vm933, %v829, %v833
          %v1031 = vsel %vm933, %v830, %v834
          %v1032 = vsel %vm933, %v831, %v835
          %v1033 = vsel %vm933, %v832, %v836
          %v1034 = vsel %vm933, %v825, %v829
          %v1035 = vsel %vm933, %v826, %v830
          %v1036 = vsel %vm933, %v827, %v831
          %v1037 = vsel %vm933, %v828, %v832
          %v1038 = vsel %vm933, %v821, %v825
          %v1039 = vsel %vm933, %v822, %v826
          %v1040 = vsel %vm933, %v823, %v827
          %v1041 = vsel %vm933, %v824, %v828
          %v1042 = vsel %vm933, %v817, %v821
          %v1043 = vsel %vm933, %v818, %v822
          %v1044 = vsel %vm933, %v819, %v823
          %v1045 = vsel %vm933, %v820, %v824
          %v1046 = vsel %vm933, %v813, %v817
          %v1047 = vsel %vm933, %v814, %v818
          %v1048 = vsel %vm933, %v815, %v819
          %v1049 = vsel %vm933, %v816, %v820
          %v1050 = vsel %vm933, %v809, %v813
          %v1051 = vsel %vm933, %v810, %v814
          %v1052 = vsel %vm933, %v811, %v815
          %v1053 = vsel %vm933, %v812, %v816
          %v1054 = vsel %vm933, %v805, %v809
          %v1055 = vsel %vm933, %v806, %v810
          %v1056 = vsel %vm933, %v807, %v811
          %v1057 = vsel %vm933, %v808, %v812
          %v1058 = vsel %vm933, %v929, %v805
          %v1059 = vsel %vm933, %v930, %v806
          %v1060 = vsel %vm933, %v931, %v807
          %v1061 = vsel %vm933, %v932, %v808
          %v1062 = vadd.f32 %v511, %v1058
          %v1063 = vadd.f32 %v512, %v1059
          %v1064 = vadd.f32 %v513, %v1060
          %v1065 = vadd.f32 %v514, %v1061
          %v1066 = vadd.f32 %v515, %v1054
          %v1067 = vadd.f32 %v516, %v1055
          %v1068 = vadd.f32 %v517, %v1056
          %v1069 = vadd.f32 %v518, %v1057
          %v1070 = vadd.f32 %v519, %v1050
          %v1071 = vadd.f32 %v520, %v1051
          %v1072 = vadd.f32 %v521, %v1052
          %v1073 = vadd.f32 %v522, %v1053
          %v1074 = vadd.f32 %v523, %v1046
          %v1075 = vadd.f32 %v524, %v1047
          %v1076 = vadd.f32 %v525, %v1048
          %v1077 = vadd.f32 %v526, %v1049
          %v1078 = vadd.f32 %v527, %v1042
          %v1079 = vadd.f32 %v528, %v1043
          %v1080 = vadd.f32 %v529, %v1044
          %v1081 = vadd.f32 %v530, %v1045
          %v1082 = vadd.f32 %v531, %v1038
          %v1083 = vadd.f32 %v532, %v1039
          %v1084 = vadd.f32 %v533, %v1040
          %v1085 = vadd.f32 %v534, %v1041
          %v1086 = vadd.f32 %v535, %v1034
          %v1087 = vadd.f32 %v536, %v1035
          %v1088 = vadd.f32 %v537, %v1036
          %v1089 = vadd.f32 %v538, %v1037
          %v1090 = vadd.f32 %v539, %v1030
          %v1091 = vadd.f32 %v540, %v1031
          %v1092 = vadd.f32 %v541, %v1032
          %v1093 = vadd.f32 %v542, %v1033
          %v1094 = vadd.f32 %v543, %v1026
          %v1095 = vadd.f32 %v544, %v1027
          %v1096 = vadd.f32 %v545, %v1028
          %v1097 = vadd.f32 %v546, %v1029
          %v1098 = vadd.f32 %v547, %v1022
          %v1099 = vadd.f32 %v548, %v1023
          %v1100 = vadd.f32 %v549, %v1024
          %v1101 = vadd.f32 %v550, %v1025
          %v1102 = vadd.f32 %v551, %v1018
          %v1103 = vadd.f32 %v552, %v1019
          %v1104 = vadd.f32 %v553, %v1020
          %v1105 = vadd.f32 %v554, %v1021
          %v1106 = vadd.f32 %v555, %v1014
          %v1107 = vadd.f32 %v556, %v1015
          %v1108 = vadd.f32 %v557, %v1016
          %v1109 = vadd.f32 %v558, %v1017
          %v1110 = vadd.f32 %v559, %v1010
          %v1111 = vadd.f32 %v560, %v1011
          %v1112 = vadd.f32 %v561, %v1012
          %v1113 = vadd.f32 %v562, %v1013
          %v1114 = vadd.f32 %v563, %v1006
          %v1115 = vadd.f32 %v564, %v1007
          %v1116 = vadd.f32 %v565, %v1008
          %v1117 = vadd.f32 %v566, %v1009
          %v1118 = vadd.f32 %v567, %v1002
          %v1119 = vadd.f32 %v568, %v1003
          %v1120 = vadd.f32 %v569, %v1004
          %v1121 = vadd.f32 %v570, %v1005
          %v1122 = vadd.f32 %v571, %v998
          %v1123 = vadd.f32 %v572, %v999
          %v1124 = vadd.f32 %v573, %v1000
          %v1125 = vadd.f32 %v574, %v1001
          %v1126 = vadd.f32 %v575, %v994
          %v1127 = vadd.f32 %v576, %v995
          %v1128 = vadd.f32 %v577, %v996
          %v1129 = vadd.f32 %v578, %v997
          %v1130 = vadd.f32 %v579, %v990
          %v1131 = vadd.f32 %v580, %v991
          %v1132 = vadd.f32 %v581, %v992
          %v1133 = vadd.f32 %v582, %v993
          %v1134 = vadd.f32 %v583, %v986
          %v1135 = vadd.f32 %v584, %v987
          %v1136 = vadd.f32 %v585, %v988
          %v1137 = vadd.f32 %v586, %v989
          %v1138 = vadd.f32 %v587, %v982
          %v1139 = vadd.f32 %v588, %v983
          %v1140 = vadd.f32 %v589, %v984
          %v1141 = vadd.f32 %v590, %v985
          %v1142 = vadd.f32 %v591, %v978
          %v1143 = vadd.f32 %v592, %v979
          %v1144 = vadd.f32 %v593, %v980
          %v1145 = vadd.f32 %v594, %v981
          %v1146 = vadd.f32 %v595, %v974
          %v1147 = vadd.f32 %v596, %v975
          %v1148 = vadd.f32 %v597, %v976
          %v1149 = vadd.f32 %v598, %v977
          %v1150 = vadd.f32 %v599, %v970
          %v1151 = vadd.f32 %v600, %v971
          %v1152 = vadd.f32 %v601, %v972
          %v1153 = vadd.f32 %v602, %v973
          %v1154 = vadd.f32 %v603, %v966
          %v1155 = vadd.f32 %v604, %v967
          %v1156 = vadd.f32 %v605, %v968
          %v1157 = vadd.f32 %v606, %v969
          %v1158 = vadd.f32 %v607, %v962
          %v1159 = vadd.f32 %v608, %v963
          %v1160 = vadd.f32 %v609, %v964
          %v1161 = vadd.f32 %v610, %v965
          %v1162 = vadd.f32 %v611, %v958
          %v1163 = vadd.f32 %v612, %v959
          %v1164 = vadd.f32 %v613, %v960
          %v1165 = vadd.f32 %v614, %v961
          %v1166 = vadd.f32 %v615, %v954
          %v1167 = vadd.f32 %v616, %v955
          %v1168 = vadd.f32 %v617, %v956
          %v1169 = vadd.f32 %v618, %v957
          %v1170 = vadd.f32 %v619, %v950
          %v1171 = vadd.f32 %v620, %v951
          %v1172 = vadd.f32 %v621, %v952
          %v1173 = vadd.f32 %v622, %v953
          %v1174 = vadd.f32 %v623, %v946
          %v1175 = vadd.f32 %v624, %v947
          %v1176 = vadd.f32 %v625, %v948
          %v1177 = vadd.f32 %v626, %v949
          %v1178 = vadd.f32 %v627, %v942
          %v1179 = vadd.f32 %v628, %v943
          %v1180 = vadd.f32 %v629, %v944
          %v1181 = vadd.f32 %v630, %v945
          %v1182 = vadd.f32 %v631, %v938
          %v1183 = vadd.f32 %v632, %v939
          %v1184 = vadd.f32 %v633, %v940
          %v1185 = vadd.f32 %v634, %v941
          %v1186 = vadd.f32 %v635, %v934
          %v1187 = vadd.f32 %v636, %v935
          %v1188 = vadd.f32 %v637, %v936
          %v1189 = vadd.f32 %v638, %v937
          %v1192 = vlaneseq
          %v1193 = vshrl.u32 %v1192, 7
          %v1194 = vsub.s32 0, %v1193
          %v1195 = vrot.slane %v278, %v1194
          %v1196 = vlaneseq
          %v1197 = vshrl.u32 %v1196, 7
          %v1198 = vsub.s32 4, %v1197
          %v1199 = vrot.slane %v278, %v1198
          %v1200 = vlaneseq
          %v1201 = vshrl.u32 %v1200, 7
          %v1202 = vsub.s32 0, %v1201
          %v1203 = vrot.slane %v279, %v1202
          %v1204 = vlaneseq
          %v1205 = vshrl.u32 %v1204, 7
          %v1206 = vsub.s32 4, %v1205
          %v1207 = vrot.slane %v279, %v1206
          %v1212 = vlaneseq
          %v1213 = vshrl.u32 %v1212, 7
          %v1214 = vsub.s32 0, %v1213
          %v1215 = vrot.slane %v1195, %v1214
          %v1216 = vlaneseq
          %v1217 = vshrl.u32 %v1216, 7
          %v1218 = vsub.s32 0, %v1217
          %v1219 = vrot.slane %v1199, %v1218
          %v1220 = vlaneseq
          %v1221 = vshrl.u32 %v1220, 7
          %v1222 = vsub.s32 0, %v1221
          %v1223 = vrot.slane %v1203, %v1222
          %v1224 = vlaneseq
          %v1225 = vshrl.u32 %v1224, 7
          %v1226 = vsub.s32 0, %v1225
          %v1227 = vrot.slane %v1207, %v1226
          %v1228 = vmul.f32 %v1215, %v1062
          %v1229 = vmul.f32 %v1219, %v1063
          %v1230 = vmul.f32 %v1223, %v1064
          %v1231 = vmul.f32 %v1227, %v1065
          %v1232 = vmul.f32 %v1215, %v1066
          %v1233 = vmul.f32 %v1219, %v1067
          %v1234 = vmul.f32 %v1223, %v1068
          %v1235 = vmul.f32 %v1227, %v1069
          %v1236 = vmul.f32 %v1215, %v1070
          %v1237 = vmul.f32 %v1219, %v1071
          %v1238 = vmul.f32 %v1223, %v1072
          %v1239 = vmul.f32 %v1227, %v1073
          %v1240 = vmul.f32 %v1215, %v1074
          %v1241 = vmul.f32 %v1219, %v1075
          %v1242 = vmul.f32 %v1223, %v1076
          %v1243 = vmul.f32 %v1227, %v1077
          %v1244 = vmul.f32 %v1215, %v1078
          %v1245 = vmul.f32 %v1219, %v1079
          %v1246 = vmul.f32 %v1223, %v1080
          %v1247 = vmul.f32 %v1227, %v1081
          %v1248 = vmul.f32 %v1215, %v1082
          %v1249 = vmul.f32 %v1219, %v1083
          %v1250 = vmul.f32 %v1223, %v1084
          %v1251 = vmul.f32 %v1227, %v1085
          %v1252 = vmul.f32 %v1215, %v1086
          %v1253 = vmul.f32 %v1219, %v1087
          %v1254 = vmul.f32 %v1223, %v1088
          %v1255 = vmul.f32 %v1227, %v1089
          %v1256 = vmul.f32 %v1215, %v1090
          %v1257 = vmul.f32 %v1219, %v1091
          %v1258 = vmul.f32 %v1223, %v1092
          %v1259 = vmul.f32 %v1227, %v1093
          %v1260 = vmul.f32 %v1215, %v1094
          %v1261 = vmul.f32 %v1219, %v1095
          %v1262 = vmul.f32 %v1223, %v1096
          %v1263 = vmul.f32 %v1227, %v1097
          %v1264 = vmul.f32 %v1215, %v1098
          %v1265 = vmul.f32 %v1219, %v1099
          %v1266 = vmul.f32 %v1223, %v1100
          %v1267 = vmul.f32 %v1227, %v1101
          %v1268 = vmul.f32 %v1215, %v1102
          %v1269 = vmul.f32 %v1219, %v1103
          %v1270 = vmul.f32 %v1223, %v1104
          %v1271 = vmul.f32 %v1227, %v1105
          %v1272 = vmul.f32 %v1215, %v1106
          %v1273 = vmul.f32 %v1219, %v1107
          %v1274 = vmul.f32 %v1223, %v1108
          %v1275 = vmul.f32 %v1227, %v1109
          %v1276 = vmul.f32 %v1215, %v1110
          %v1277 = vmul.f32 %v1219, %v1111
          %v1278 = vmul.f32 %v1223, %v1112
          %v1279 = vmul.f32 %v1227, %v1113
          %v1280 = vmul.f32 %v1215, %v1114
          %v1281 = vmul.f32 %v1219, %v1115
          %v1282 = vmul.f32 %v1223, %v1116
          %v1283 = vmul.f32 %v1227, %v1117
          %v1284 = vmul.f32 %v1215, %v1118
          %v1285 = vmul.f32 %v1219, %v1119
          %v1286 = vmul.f32 %v1223, %v1120
          %v1287 = vmul.f32 %v1227, %v1121
          %v1288 = vmul.f32 %v1215, %v1122
          %v1289 = vmul.f32 %v1219, %v1123
          %v1290 = vmul.f32 %v1223, %v1124
          %v1291 = vmul.f32 %v1227, %v1125
          %v1292 = vmul.f32 %v1215, %v1126
          %v1293 = vmul.f32 %v1219, %v1127
          %v1294 = vmul.f32 %v1223, %v1128
          %v1295 = vmul.f32 %v1227, %v1129
          %v1296 = vmul.f32 %v1215, %v1130
          %v1297 = vmul.f32 %v1219, %v1131
          %v1298 = vmul.f32 %v1223, %v1132
          %v1299 = vmul.f32 %v1227, %v1133
          %v1300 = vmul.f32 %v1215, %v1134
          %v1301 = vmul.f32 %v1219, %v1135
          %v1302 = vmul.f32 %v1223, %v1136
          %v1303 = vmul.f32 %v1227, %v1137
          %v1304 = vmul.f32 %v1215, %v1138
          %v1305 = vmul.f32 %v1219, %v1139
          %v1306 = vmul.f32 %v1223, %v1140
          %v1307 = vmul.f32 %v1227, %v1141
          %v1308 = vmul.f32 %v1215, %v1142
          %v1309 = vmul.f32 %v1219, %v1143
          %v1310 = vmul.f32 %v1223, %v1144
          %v1311 = vmul.f32 %v1227, %v1145
          %v1312 = vmul.f32 %v1215, %v1146
          %v1313 = vmul.f32 %v1219, %v1147
          %v1314 = vmul.f32 %v1223, %v1148
          %v1315 = vmul.f32 %v1227, %v1149
          %v1316 = vmul.f32 %v1215, %v1150
          %v1317 = vmul.f32 %v1219, %v1151
          %v1318 = vmul.f32 %v1223, %v1152
          %v1319 = vmul.f32 %v1227, %v1153
          %v1320 = vmul.f32 %v1215, %v1154
          %v1321 = vmul.f32 %v1219, %v1155
          %v1322 = vmul.f32 %v1223, %v1156
          %v1323 = vmul.f32 %v1227, %v1157
          %v1324 = vmul.f32 %v1215, %v1158
          %v1325 = vmul.f32 %v1219, %v1159
          %v1326 = vmul.f32 %v1223, %v1160
          %v1327 = vmul.f32 %v1227, %v1161
          %v1328 = vmul.f32 %v1215, %v1162
          %v1329 = vmul.f32 %v1219, %v1163
          %v1330 = vmul.f32 %v1223, %v1164
          %v1331 = vmul.f32 %v1227, %v1165
          %v1332 = vmul.f32 %v1215, %v1166
          %v1333 = vmul.f32 %v1219, %v1167
          %v1334 = vmul.f32 %v1223, %v1168
          %v1335 = vmul.f32 %v1227, %v1169
          %v1336 = vmul.f32 %v1215, %v1170
          %v1337 = vmul.f32 %v1219, %v1171
          %v1338 = vmul.f32 %v1223, %v1172
          %v1339 = vmul.f32 %v1227, %v1173
          %v1340 = vmul.f32 %v1215, %v1174
          %v1341 = vmul.f32 %v1219, %v1175
          %v1342 = vmul.f32 %v1223, %v1176
          %v1343 = vmul.f32 %v1227, %v1177
          %v1344 = vmul.f32 %v1215, %v1178
          %v1345 = vmul.f32 %v1219, %v1179
          %v1346 = vmul.f32 %v1223, %v1180
          %v1347 = vmul.f32 %v1227, %v1181
          %v1348 = vmul.f32 %v1215, %v1182
          %v1349 = vmul.f32 %v1219, %v1183
          %v1350 = vmul.f32 %v1223, %v1184
          %v1351 = vmul.f32 %v1227, %v1185
          %v1352 = vmul.f32 %v1215, %v1186
          %v1353 = vmul.f32 %v1219, %v1187
          %v1354 = vmul.f32 %v1223, %v1188
          %v1355 = vmul.f32 %v1227, %v1189
          %v1358 = vlaneseq
          %v1359 = vshrl.u32 %v1358, 7
          %v1360 = vsub.s32 0, %v1359
          %v1361 = vrot.slane %v270, %v1360
          %v1362 = vlaneseq
          %v1363 = vshrl.u32 %v1362, 7
          %v1364 = vsub.s32 4, %v1363
          %v1365 = vrot.slane %v270, %v1364
          %v1366 = vlaneseq
          %v1367 = vshrl.u32 %v1366, 7
          %v1368 = vsub.s32 0, %v1367
          %v1369 = vrot.slane %v271, %v1368
          %v1370 = vlaneseq
          %v1371 = vshrl.u32 %v1370, 7
          %v1372 = vsub.s32 4, %v1371
          %v1373 = vrot.slane %v271, %v1372
          %v1378 = vlaneseq
          %v1379 = vshrl.u32 %v1378, 7
          %v1380 = vsub.s32 0, %v1379
          %v1381 = vrot.slane %v1361, %v1380
          %v1382 = vlaneseq
          %v1383 = vshrl.u32 %v1382, 7
          %v1384 = vsub.s32 0, %v1383
          %v1385 = vrot.slane %v1365, %v1384
          %v1386 = vlaneseq
          %v1387 = vshrl.u32 %v1386, 7
          %v1388 = vsub.s32 0, %v1387
          %v1389 = vrot.slane %v1369, %v1388
          %v1390 = vlaneseq
          %v1391 = vshrl.u32 %v1390, 7
          %v1392 = vsub.s32 0, %v1391
          %v1393 = vrot.slane %v1373, %v1392
          %v1394 = vmul.f32 %v1381, %v1182
          %v1395 = vmul.f32 %v1385, %v1183
          %v1396 = vmul.f32 %v1389, %v1184
          %v1397 = vmul.f32 %v1393, %v1185
          %v1398 = vmul.f32 %v1381, %v1186
          %v1399 = vmul.f32 %v1385, %v1187
          %v1400 = vmul.f32 %v1389, %v1188
          %v1401 = vmul.f32 %v1393, %v1189
          %v1402 = vmul.f32 %v1381, %v1062
          %v1403 = vmul.f32 %v1385, %v1063
          %v1404 = vmul.f32 %v1389, %v1064
          %v1405 = vmul.f32 %v1393, %v1065
          %v1406 = vmul.f32 %v1381, %v1066
          %v1407 = vmul.f32 %v1385, %v1067
          %v1408 = vmul.f32 %v1389, %v1068
          %v1409 = vmul.f32 %v1393, %v1069
          %v1410 = vmul.f32 %v1381, %v1070
          %v1411 = vmul.f32 %v1385, %v1071
          %v1412 = vmul.f32 %v1389, %v1072
          %v1413 = vmul.f32 %v1393, %v1073
          %v1414 = vmul.f32 %v1381, %v1074
          %v1415 = vmul.f32 %v1385, %v1075
          %v1416 = vmul.f32 %v1389, %v1076
          %v1417 = vmul.f32 %v1393, %v1077
          %v1418 = vmul.f32 %v1381, %v1078
          %v1419 = vmul.f32 %v1385, %v1079
          %v1420 = vmul.f32 %v1389, %v1080
          %v1421 = vmul.f32 %v1393, %v1081
          %v1422 = vmul.f32 %v1381, %v1082
          %v1423 = vmul.f32 %v1385, %v1083
          %v1424 = vmul.f32 %v1389, %v1084
          %v1425 = vmul.f32 %v1393, %v1085
          %v1426 = vmul.f32 %v1381, %v1086
          %v1427 = vmul.f32 %v1385, %v1087
          %v1428 = vmul.f32 %v1389, %v1088
          %v1429 = vmul.f32 %v1393, %v1089
          %v1430 = vmul.f32 %v1381, %v1090
          %v1431 = vmul.f32 %v1385, %v1091
          %v1432 = vmul.f32 %v1389, %v1092
          %v1433 = vmul.f32 %v1393, %v1093
          %v1434 = vmul.f32 %v1381, %v1094
          %v1435 = vmul.f32 %v1385, %v1095
          %v1436 = vmul.f32 %v1389, %v1096
          %v1437 = vmul.f32 %v1393, %v1097
          %v1438 = vmul.f32 %v1381, %v1098
          %v1439 = vmul.f32 %v1385, %v1099
          %v1440 = vmul.f32 %v1389, %v1100
          %v1441 = vmul.f32 %v1393, %v1101
          %v1442 = vmul.f32 %v1381, %v1102
          %v1443 = vmul.f32 %v1385, %v1103
          %v1444 = vmul.f32 %v1389, %v1104
          %v1445 = vmul.f32 %v1393, %v1105
          %v1446 = vmul.f32 %v1381, %v1106
          %v1447 = vmul.f32 %v1385, %v1107
          %v1448 = vmul.f32 %v1389, %v1108
          %v1449 = vmul.f32 %v1393, %v1109
          %v1450 = vmul.f32 %v1381, %v1110
          %v1451 = vmul.f32 %v1385, %v1111
          %v1452 = vmul.f32 %v1389, %v1112
          %v1453 = vmul.f32 %v1393, %v1113
          %v1454 = vmul.f32 %v1381, %v1114
          %v1455 = vmul.f32 %v1385, %v1115
          %v1456 = vmul.f32 %v1389, %v1116
          %v1457 = vmul.f32 %v1393, %v1117
          %v1458 = vmul.f32 %v1381, %v1118
          %v1459 = vmul.f32 %v1385, %v1119
          %v1460 = vmul.f32 %v1389, %v1120
          %v1461 = vmul.f32 %v1393, %v1121
          %v1462 = vmul.f32 %v1381, %v1122
          %v1463 = vmul.f32 %v1385, %v1123
          %v1464 = vmul.f32 %v1389, %v1124
          %v1465 = vmul.f32 %v1393, %v1125
          %v1466 = vmul.f32 %v1381, %v1126
          %v1467 = vmul.f32 %v1385, %v1127
          %v1468 = vmul.f32 %v1389, %v1128
          %v1469 = vmul.f32 %v1393, %v1129
          %v1470 = vmul.f32 %v1381, %v1130
          %v1471 = vmul.f32 %v1385, %v1131
          %v1472 = vmul.f32 %v1389, %v1132
          %v1473 = vmul.f32 %v1393, %v1133
          %v1474 = vmul.f32 %v1381, %v1134
          %v1475 = vmul.f32 %v1385, %v1135
          %v1476 = vmul.f32 %v1389, %v1136
          %v1477 = vmul.f32 %v1393, %v1137
          %v1478 = vmul.f32 %v1381, %v1138
          %v1479 = vmul.f32 %v1385, %v1139
          %v1480 = vmul.f32 %v1389, %v1140
          %v1481 = vmul.f32 %v1393, %v1141
          %v1482 = vmul.f32 %v1381, %v1142
          %v1483 = vmul.f32 %v1385, %v1143
          %v1484 = vmul.f32 %v1389, %v1144
          %v1485 = vmul.f32 %v1393, %v1145
          %v1486 = vmul.f32 %v1381, %v1146
          %v1487 = vmul.f32 %v1385, %v1147
          %v1488 = vmul.f32 %v1389, %v1148
          %v1489 = vmul.f32 %v1393, %v1149
          %v1490 = vmul.f32 %v1381, %v1150
          %v1491 = vmul.f32 %v1385, %v1151
          %v1492 = vmul.f32 %v1389, %v1152
          %v1493 = vmul.f32 %v1393, %v1153
          %v1494 = vmul.f32 %v1381, %v1154
          %v1495 = vmul.f32 %v1385, %v1155
          %v1496 = vmul.f32 %v1389, %v1156
          %v1497 = vmul.f32 %v1393, %v1157
          %v1498 = vmul.f32 %v1381, %v1158
          %v1499 = vmul.f32 %v1385, %v1159
          %v1500 = vmul.f32 %v1389, %v1160
          %v1501 = vmul.f32 %v1393, %v1161
          %v1502 = vmul.f32 %v1381, %v1162
          %v1503 = vmul.f32 %v1385, %v1163
          %v1504 = vmul.f32 %v1389, %v1164
          %v1505 = vmul.f32 %v1393, %v1165
          %v1506 = vmul.f32 %v1381, %v1166
          %v1507 = vmul.f32 %v1385, %v1167
          %v1508 = vmul.f32 %v1389, %v1168
          %v1509 = vmul.f32 %v1393, %v1169
          %v1510 = vmul.f32 %v1381, %v1170
          %v1511 = vmul.f32 %v1385, %v1171
          %v1512 = vmul.f32 %v1389, %v1172
          %v1513 = vmul.f32 %v1393, %v1173
          %v1514 = vmul.f32 %v1381, %v1174
          %v1515 = vmul.f32 %v1385, %v1175
          %v1516 = vmul.f32 %v1389, %v1176
          %v1517 = vmul.f32 %v1393, %v1177
          %v1518 = vmul.f32 %v1381, %v1178
          %v1519 = vmul.f32 %v1385, %v1179
          %v1520 = vmul.f32 %v1389, %v1180
          %v1521 = vmul.f32 %v1393, %v1181
          %v1522 = vadd.f32 %v1228, %v1394
          %v1523 = vadd.f32 %v1229, %v1395
          %v1524 = vadd.f32 %v1230, %v1396
          %v1525 = vadd.f32 %v1231, %v1397
          %v1526 = vadd.f32 %v1232, %v1398
          %v1527 = vadd.f32 %v1233, %v1399
          %v1528 = vadd.f32 %v1234, %v1400
          %v1529 = vadd.f32 %v1235, %v1401
          %v1530 = vadd.f32 %v1236, %v1402
          %v1531 = vadd.f32 %v1237, %v1403
          %v1532 = vadd.f32 %v1238, %v1404
          %v1533 = vadd.f32 %v1239, %v1405
          %v1534 = vadd.f32 %v1240, %v1406
          %v1535 = vadd.f32 %v1241, %v1407
          %v1536 = vadd.f32 %v1242, %v1408
          %v1537 = vadd.f32 %v1243, %v1409
          %v1538 = vadd.f32 %v1244, %v1410
          %v1539 = vadd.f32 %v1245, %v1411
          %v1540 = vadd.f32 %v1246, %v1412
          %v1541 = vadd.f32 %v1247, %v1413
          %v1542 = vadd.f32 %v1248, %v1414
          %v1543 = vadd.f32 %v1249, %v1415
          %v1544 = vadd.f32 %v1250, %v1416
          %v1545 = vadd.f32 %v1251, %v1417
          %v1546 = vadd.f32 %v1252, %v1418
          %v1547 = vadd.f32 %v1253, %v1419
          %v1548 = vadd.f32 %v1254, %v1420
          %v1549 = vadd.f32 %v1255, %v1421
          %v1550 = vadd.f32 %v1256, %v1422
          %v1551 = vadd.f32 %v1257, %v1423
          %v1552 = vadd.f32 %v1258, %v1424
          %v1553 = vadd.f32 %v1259, %v1425
          %v1554 = vadd.f32 %v1260, %v1426
          %v1555 = vadd.f32 %v1261, %v1427
          %v1556 = vadd.f32 %v1262, %v1428
          %v1557 = vadd.f32 %v1263, %v1429
          %v1558 = vadd.f32 %v1264, %v1430
          %v1559 = vadd.f32 %v1265, %v1431
          %v1560 = vadd.f32 %v1266, %v1432
          %v1561 = vadd.f32 %v1267, %v1433
          %v1562 = vadd.f32 %v1268, %v1434
          %v1563 = vadd.f32 %v1269, %v1435
          %v1564 = vadd.f32 %v1270, %v1436
          %v1565 = vadd.f32 %v1271, %v1437
          %v1566 = vadd.f32 %v1272, %v1438
          %v1567 = vadd.f32 %v1273, %v1439
          %v1568 = vadd.f32 %v1274, %v1440
          %v1569 = vadd.f32 %v1275, %v1441
          %v1570 = vadd.f32 %v1276, %v1442
          %v1571 = vadd.f32 %v1277, %v1443
          %v1572 = vadd.f32 %v1278, %v1444
          %v1573 = vadd.f32 %v1279, %v1445
          %v1574 = vadd.f32 %v1280, %v1446
          %v1575 = vadd.f32 %v1281, %v1447
          %v1576 = vadd.f32 %v1282, %v1448
          %v1577 = vadd.f32 %v1283, %v1449
          %v1578 = vadd.f32 %v1284, %v1450
          %v1579 = vadd.f32 %v1285, %v1451
          %v1580 = vadd.f32 %v1286, %v1452
          %v1581 = vadd.f32 %v1287, %v1453
          %v1582 = vadd.f32 %v1288, %v1454
          %v1583 = vadd.f32 %v1289, %v1455
          %v1584 = vadd.f32 %v1290, %v1456
          %v1585 = vadd.f32 %v1291, %v1457
          %v1586 = vadd.f32 %v1292, %v1458
          %v1587 = vadd.f32 %v1293, %v1459
          %v1588 = vadd.f32 %v1294, %v1460
          %v1589 = vadd.f32 %v1295, %v1461
          %v1590 = vadd.f32 %v1296, %v1462
          %v1591 = vadd.f32 %v1297, %v1463
          %v1592 = vadd.f32 %v1298, %v1464
          %v1593 = vadd.f32 %v1299, %v1465
          %v1594 = vadd.f32 %v1300, %v1466
          %v1595 = vadd.f32 %v1301, %v1467
          %v1596 = vadd.f32 %v1302, %v1468
          %v1597 = vadd.f32 %v1303, %v1469
          %v1598 = vadd.f32 %v1304, %v1470
          %v1599 = vadd.f32 %v1305, %v1471
          %v1600 = vadd.f32 %v1306, %v1472
          %v1601 = vadd.f32 %v1307, %v1473
          %v1602 = vadd.f32 %v1308, %v1474
          %v1603 = vadd.f32 %v1309, %v1475
          %v1604 = vadd.f32 %v1310, %v1476
          %v1605 = vadd.f32 %v1311, %v1477
          %v1606 = vadd.f32 %v1312, %v1478
          %v1607 = vadd.f32 %v1313, %v1479
          %v1608 = vadd.f32 %v1314, %v1480
          %v1609 = vadd.f32 %v1315, %v1481
          %v1610 = vadd.f32 %v1316, %v1482
          %v1611 = vadd.f32 %v1317, %v1483
          %v1612 = vadd.f32 %v1318, %v1484
          %v1613 = vadd.f32 %v1319, %v1485
          %v1614 = vadd.f32 %v1320, %v1486
          %v1615 = vadd.f32 %v1321, %v1487
          %v1616 = vadd.f32 %v1322, %v1488
          %v1617 = vadd.f32 %v1323, %v1489
          %v1618 = vadd.f32 %v1324, %v1490
          %v1619 = vadd.f32 %v1325, %v1491
          %v1620 = vadd.f32 %v1326, %v1492
          %v1621 = vadd.f32 %v1327, %v1493
          %v1622 = vadd.f32 %v1328, %v1494
          %v1623 = vadd.f32 %v1329, %v1495
          %v1624 = vadd.f32 %v1330, %v1496
          %v1625 = vadd.f32 %v1331, %v1497
          %v1626 = vadd.f32 %v1332, %v1498
          %v1627 = vadd.f32 %v1333, %v1499
          %v1628 = vadd.f32 %v1334, %v1500
          %v1629 = vadd.f32 %v1335, %v1501
          %v1630 = vadd.f32 %v1336, %v1502
          %v1631 = vadd.f32 %v1337, %v1503
          %v1632 = vadd.f32 %v1338, %v1504
          %v1633 = vadd.f32 %v1339, %v1505
          %v1634 = vadd.f32 %v1340, %v1506
          %v1635 = vadd.f32 %v1341, %v1507
          %v1636 = vadd.f32 %v1342, %v1508
          %v1637 = vadd.f32 %v1343, %v1509
          %v1638 = vadd.f32 %v1344, %v1510
          %v1639 = vadd.f32 %v1345, %v1511
          %v1640 = vadd.f32 %v1346, %v1512
          %v1641 = vadd.f32 %v1347, %v1513
          %v1642 = vadd.f32 %v1348, %v1514
          %v1643 = vadd.f32 %v1349, %v1515
          %v1644 = vadd.f32 %v1350, %v1516
          %v1645 = vadd.f32 %v1351, %v1517
          %v1646 = vadd.f32 %v1352, %v1518
          %v1647 = vadd.f32 %v1353, %v1519
          %v1648 = vadd.f32 %v1354, %v1520
          %v1649 = vadd.f32 %v1355, %v1521
          %v1650 = vlaneseq
          %v1651 = vshrl.u32 %v1650, 7
          %v1652 = vsub.s32 1, %v1651
          %v1653 = vrot.slane %v268, %v1652
          %v1654 = vlaneseq
          %v1655 = vshrl.u32 %v1654, 7
          %v1656 = vsub.s32 5, %v1655
          %v1657 = vrot.slane %v268, %v1656
          %v1658 = vlaneseq
          %v1659 = vshrl.u32 %v1658, 7
          %v1660 = vsub.s32 1, %v1659
          %v1661 = vrot.slane %v269, %v1660
          %v1662 = vlaneseq
          %v1663 = vshrl.u32 %v1662, 7
          %v1664 = vsub.s32 5, %v1663
          %v1665 = vrot.slane %v269, %v1664
          %v1666 = vlaneseq
          %v1667 = vshrl.u32 %v1666, 7
          %v1668 = vsub.s32 1, %v1667
          %v1669 = vrot.slane %v1653, %v1668
          %v1670 = vlaneseq
          %v1671 = vshrl.u32 %v1670, 7
          %v1672 = vsub.s32 1, %v1671
          %v1673 = vrot.slane %v1657, %v1672
          %v1674 = vlaneseq
          %v1675 = vshrl.u32 %v1674, 7
          %v1676 = vsub.s32 1, %v1675
          %v1677 = vrot.slane %v1661, %v1676
          %v1678 = vlaneseq
          %v1679 = vshrl.u32 %v1678, 7
          %v1680 = vsub.s32 1, %v1679
          %v1681 = vrot.slane %v1665, %v1680
          %vm1682 = vcmp.eq.s32.totalorder %v281, %v1669
          %vm1683 = vcmp.eq.s32.totalorder %v281, %v1673
          %vm1684 = vcmp.eq.s32.totalorder %v281, %v1677
          %vm1685 = vcmp.eq.s32.totalorder %v281, %v1681
          %vm1686 = vcmp.eq.s32.totalorder %v282, %v1669
          %vm1687 = vcmp.eq.s32.totalorder %v282, %v1673
          %vm1688 = vcmp.eq.s32.totalorder %v282, %v1677
          %vm1689 = vcmp.eq.s32.totalorder %v282, %v1681
          %vm1690 = vcmp.eq.s32.totalorder %v283, %v1669
          %vm1691 = vcmp.eq.s32.totalorder %v283, %v1673
          %vm1692 = vcmp.eq.s32.totalorder %v283, %v1677
          %vm1693 = vcmp.eq.s32.totalorder %v283, %v1681
          %vm1694 = vcmp.eq.s32.totalorder %v284, %v1669
          %vm1695 = vcmp.eq.s32.totalorder %v284, %v1673
          %vm1696 = vcmp.eq.s32.totalorder %v284, %v1677
          %vm1697 = vcmp.eq.s32.totalorder %v284, %v1681
          %vm1698 = vcmp.eq.s32.totalorder %v285, %v1669
          %vm1699 = vcmp.eq.s32.totalorder %v285, %v1673
          %vm1700 = vcmp.eq.s32.totalorder %v285, %v1677
          %vm1701 = vcmp.eq.s32.totalorder %v285, %v1681
          %vm1702 = vcmp.eq.s32.totalorder %v286, %v1669
          %vm1703 = vcmp.eq.s32.totalorder %v286, %v1673
          %vm1704 = vcmp.eq.s32.totalorder %v286, %v1677
          %vm1705 = vcmp.eq.s32.totalorder %v286, %v1681
          %vm1706 = vcmp.eq.s32.totalorder %v287, %v1669
          %vm1707 = vcmp.eq.s32.totalorder %v287, %v1673
          %vm1708 = vcmp.eq.s32.totalorder %v287, %v1677
          %vm1709 = vcmp.eq.s32.totalorder %v287, %v1681
          %vm1710 = vcmp.eq.s32.totalorder %v288, %v1669
          %vm1711 = vcmp.eq.s32.totalorder %v288, %v1673
          %vm1712 = vcmp.eq.s32.totalorder %v288, %v1677
          %vm1713 = vcmp.eq.s32.totalorder %v288, %v1681
          %vm1714 = vcmp.eq.s32.totalorder %v289, %v1669
          %vm1715 = vcmp.eq.s32.totalorder %v289, %v1673
          %vm1716 = vcmp.eq.s32.totalorder %v289, %v1677
          %vm1717 = vcmp.eq.s32.totalorder %v289, %v1681
          %vm1718 = vcmp.eq.s32.totalorder %v290, %v1669
          %vm1719 = vcmp.eq.s32.totalorder %v290, %v1673
          %vm1720 = vcmp.eq.s32.totalorder %v290, %v1677
          %vm1721 = vcmp.eq.s32.totalorder %v290, %v1681
          %vm1722 = vcmp.eq.s32.totalorder %v291, %v1669
          %vm1723 = vcmp.eq.s32.totalorder %v291, %v1673
          %vm1724 = vcmp.eq.s32.totalorder %v291, %v1677
          %vm1725 = vcmp.eq.s32.totalorder %v291, %v1681
          %vm1726 = vcmp.eq.s32.totalorder %v292, %v1669
          %vm1727 = vcmp.eq.s32.totalorder %v292, %v1673
          %vm1728 = vcmp.eq.s32.totalorder %v292, %v1677
          %vm1729 = vcmp.eq.s32.totalorder %v292, %v1681
          %vm1730 = vcmp.eq.s32.totalorder %v293, %v1669
          %vm1731 = vcmp.eq.s32.totalorder %v293, %v1673
          %vm1732 = vcmp.eq.s32.totalorder %v293, %v1677
          %vm1733 = vcmp.eq.s32.totalorder %v293, %v1681
          %vm1734 = vcmp.eq.s32.totalorder %v294, %v1669
          %vm1735 = vcmp.eq.s32.totalorder %v294, %v1673
          %vm1736 = vcmp.eq.s32.totalorder %v294, %v1677
          %vm1737 = vcmp.eq.s32.totalorder %v294, %v1681
          %vm1738 = vcmp.eq.s32.totalorder %v295, %v1669
          %vm1739 = vcmp.eq.s32.totalorder %v295, %v1673
          %vm1740 = vcmp.eq.s32.totalorder %v295, %v1677
          %vm1741 = vcmp.eq.s32.totalorder %v295, %v1681
          %vm1742 = vcmp.eq.s32.totalorder %v296, %v1669
          %vm1743 = vcmp.eq.s32.totalorder %v296, %v1673
          %vm1744 = vcmp.eq.s32.totalorder %v296, %v1677
          %vm1745 = vcmp.eq.s32.totalorder %v296, %v1681
          %vm1746 = vcmp.eq.s32.totalorder %v297, %v1669
          %vm1747 = vcmp.eq.s32.totalorder %v297, %v1673
          %vm1748 = vcmp.eq.s32.totalorder %v297, %v1677
          %vm1749 = vcmp.eq.s32.totalorder %v297, %v1681
          %vm1750 = vcmp.eq.s32.totalorder %v298, %v1669
          %vm1751 = vcmp.eq.s32.totalorder %v298, %v1673
          %vm1752 = vcmp.eq.s32.totalorder %v298, %v1677
          %vm1753 = vcmp.eq.s32.totalorder %v298, %v1681
          %vm1754 = vcmp.eq.s32.totalorder %v299, %v1669
          %vm1755 = vcmp.eq.s32.totalorder %v299, %v1673
          %vm1756 = vcmp.eq.s32.totalorder %v299, %v1677
          %vm1757 = vcmp.eq.s32.totalorder %v299, %v1681
          %vm1758 = vcmp.eq.s32.totalorder %v300, %v1669
          %vm1759 = vcmp.eq.s32.totalorder %v300, %v1673
          %vm1760 = vcmp.eq.s32.totalorder %v300, %v1677
          %vm1761 = vcmp.eq.s32.totalorder %v300, %v1681
          %vm1762 = vcmp.eq.s32.totalorder %v301, %v1669
          %vm1763 = vcmp.eq.s32.totalorder %v301, %v1673
          %vm1764 = vcmp.eq.s32.totalorder %v301, %v1677
          %vm1765 = vcmp.eq.s32.totalorder %v301, %v1681
          %vm1766 = vcmp.eq.s32.totalorder %v302, %v1669
          %vm1767 = vcmp.eq.s32.totalorder %v302, %v1673
          %vm1768 = vcmp.eq.s32.totalorder %v302, %v1677
          %vm1769 = vcmp.eq.s32.totalorder %v302, %v1681
          %vm1770 = vcmp.eq.s32.totalorder %v303, %v1669
          %vm1771 = vcmp.eq.s32.totalorder %v303, %v1673
          %vm1772 = vcmp.eq.s32.totalorder %v303, %v1677
          %vm1773 = vcmp.eq.s32.totalorder %v303, %v1681
          %vm1774 = vcmp.eq.s32.totalorder %v304, %v1669
          %vm1775 = vcmp.eq.s32.totalorder %v304, %v1673
          %vm1776 = vcmp.eq.s32.totalorder %v304, %v1677
          %vm1777 = vcmp.eq.s32.totalorder %v304, %v1681
          %vm1778 = vcmp.eq.s32.totalorder %v305, %v1669
          %vm1779 = vcmp.eq.s32.totalorder %v305, %v1673
          %vm1780 = vcmp.eq.s32.totalorder %v305, %v1677
          %vm1781 = vcmp.eq.s32.totalorder %v305, %v1681
          %vm1782 = vcmp.eq.s32.totalorder %v306, %v1669
          %vm1783 = vcmp.eq.s32.totalorder %v306, %v1673
          %vm1784 = vcmp.eq.s32.totalorder %v306, %v1677
          %vm1785 = vcmp.eq.s32.totalorder %v306, %v1681
          %vm1786 = vcmp.eq.s32.totalorder %v307, %v1669
          %vm1787 = vcmp.eq.s32.totalorder %v307, %v1673
          %vm1788 = vcmp.eq.s32.totalorder %v307, %v1677
          %vm1789 = vcmp.eq.s32.totalorder %v307, %v1681
          %vm1790 = vcmp.eq.s32.totalorder %v308, %v1669
          %vm1791 = vcmp.eq.s32.totalorder %v308, %v1673
          %vm1792 = vcmp.eq.s32.totalorder %v308, %v1677
          %vm1793 = vcmp.eq.s32.totalorder %v308, %v1681
          %vm1794 = vcmp.eq.s32.totalorder %v309, %v1669
          %vm1795 = vcmp.eq.s32.totalorder %v309, %v1673
          %vm1796 = vcmp.eq.s32.totalorder %v309, %v1677
          %vm1797 = vcmp.eq.s32.totalorder %v309, %v1681
          %vm1798 = vcmp.eq.s32.totalorder %v310, %v1669
          %vm1799 = vcmp.eq.s32.totalorder %v310, %v1673
          %vm1800 = vcmp.eq.s32.totalorder %v310, %v1677
          %vm1801 = vcmp.eq.s32.totalorder %v310, %v1681
          %vm1802 = vcmp.eq.s32.totalorder %v311, %v1669
          %vm1803 = vcmp.eq.s32.totalorder %v311, %v1673
          %vm1804 = vcmp.eq.s32.totalorder %v311, %v1677
          %vm1805 = vcmp.eq.s32.totalorder %v311, %v1681
          %vm1806 = vcmp.eq.s32.totalorder %v312, %v1669
          %vm1807 = vcmp.eq.s32.totalorder %v312, %v1673
          %vm1808 = vcmp.eq.s32.totalorder %v312, %v1677
          %vm1809 = vcmp.eq.s32.totalorder %v312, %v1681
          %v1810 = vlaneseq
          %v1811 = vshrl.u32 %v1810, 7
          %v1812 = vsub.s32 1, %v1811
          %v1813 = vrot.slane %v276, %v1812
          %v1814 = vlaneseq
          %v1815 = vshrl.u32 %v1814, 7
          %v1816 = vsub.s32 5, %v1815
          %v1817 = vrot.slane %v276, %v1816
          %v1818 = vlaneseq
          %v1819 = vshrl.u32 %v1818, 7
          %v1820 = vsub.s32 1, %v1819
          %v1821 = vrot.slane %v277, %v1820
          %v1822 = vlaneseq
          %v1823 = vshrl.u32 %v1822, 7
          %v1824 = vsub.s32 5, %v1823
          %v1825 = vrot.slane %v277, %v1824
          %v1830 = vlaneseq
          %v1831 = vshrl.u32 %v1830, 7
          %v1832 = vsub.s32 1, %v1831
          %v1833 = vrot.slane %v1813, %v1832
          %v1834 = vlaneseq
          %v1835 = vshrl.u32 %v1834, 7
          %v1836 = vsub.s32 1, %v1835
          %v1837 = vrot.slane %v1817, %v1836
          %v1838 = vlaneseq
          %v1839 = vshrl.u32 %v1838, 7
          %v1840 = vsub.s32 1, %v1839
          %v1841 = vrot.slane %v1821, %v1840
          %v1842 = vlaneseq
          %v1843 = vshrl.u32 %v1842, 7
          %v1844 = vsub.s32 1, %v1843
          %v1845 = vrot.slane %v1825, %v1844
          %v1846 = vsel %vm1682, %v1833, 0.0
          %v1847 = vsel %vm1683, %v1837, 0.0
          %v1848 = vsel %vm1684, %v1841, 0.0
          %v1849 = vsel %vm1685, %v1845, 0.0
          %v1850 = vsel %vm1686, %v1833, 0.0
          %v1851 = vsel %vm1687, %v1837, 0.0
          %v1852 = vsel %vm1688, %v1841, 0.0
          %v1853 = vsel %vm1689, %v1845, 0.0
          %v1854 = vsel %vm1690, %v1833, 0.0
          %v1855 = vsel %vm1691, %v1837, 0.0
          %v1856 = vsel %vm1692, %v1841, 0.0
          %v1857 = vsel %vm1693, %v1845, 0.0
          %v1858 = vsel %vm1694, %v1833, 0.0
          %v1859 = vsel %vm1695, %v1837, 0.0
          %v1860 = vsel %vm1696, %v1841, 0.0
          %v1861 = vsel %vm1697, %v1845, 0.0
          %v1862 = vsel %vm1698, %v1833, 0.0
          %v1863 = vsel %vm1699, %v1837, 0.0
          %v1864 = vsel %vm1700, %v1841, 0.0
          %v1865 = vsel %vm1701, %v1845, 0.0
          %v1866 = vsel %vm1702, %v1833, 0.0
          %v1867 = vsel %vm1703, %v1837, 0.0
          %v1868 = vsel %vm1704, %v1841, 0.0
          %v1869 = vsel %vm1705, %v1845, 0.0
          %v1870 = vsel %vm1706, %v1833, 0.0
          %v1871 = vsel %vm1707, %v1837, 0.0
          %v1872 = vsel %vm1708, %v1841, 0.0
          %v1873 = vsel %vm1709, %v1845, 0.0
          %v1874 = vsel %vm1710, %v1833, 0.0
          %v1875 = vsel %vm1711, %v1837, 0.0
          %v1876 = vsel %vm1712, %v1841, 0.0
          %v1877 = vsel %vm1713, %v1845, 0.0
          %v1878 = vsel %vm1714, %v1833, 0.0
          %v1879 = vsel %vm1715, %v1837, 0.0
          %v1880 = vsel %vm1716, %v1841, 0.0
          %v1881 = vsel %vm1717, %v1845, 0.0
          %v1882 = vsel %vm1718, %v1833, 0.0
          %v1883 = vsel %vm1719, %v1837, 0.0
          %v1884 = vsel %vm1720, %v1841, 0.0
          %v1885 = vsel %vm1721, %v1845, 0.0
          %v1886 = vsel %vm1722, %v1833, 0.0
          %v1887 = vsel %vm1723, %v1837, 0.0
          %v1888 = vsel %vm1724, %v1841, 0.0
          %v1889 = vsel %vm1725, %v1845, 0.0
          %v1890 = vsel %vm1726, %v1833, 0.0
          %v1891 = vsel %vm1727, %v1837, 0.0
          %v1892 = vsel %vm1728, %v1841, 0.0
          %v1893 = vsel %vm1729, %v1845, 0.0
          %v1894 = vsel %vm1730, %v1833, 0.0
          %v1895 = vsel %vm1731, %v1837, 0.0
          %v1896 = vsel %vm1732, %v1841, 0.0
          %v1897 = vsel %vm1733, %v1845, 0.0
          %v1898 = vsel %vm1734, %v1833, 0.0
          %v1899 = vsel %vm1735, %v1837, 0.0
          %v1900 = vsel %vm1736, %v1841, 0.0
          %v1901 = vsel %vm1737, %v1845, 0.0
          %v1902 = vsel %vm1738, %v1833, 0.0
          %v1903 = vsel %vm1739, %v1837, 0.0
          %v1904 = vsel %vm1740, %v1841, 0.0
          %v1905 = vsel %vm1741, %v1845, 0.0
          %v1906 = vsel %vm1742, %v1833, 0.0
          %v1907 = vsel %vm1743, %v1837, 0.0
          %v1908 = vsel %vm1744, %v1841, 0.0
          %v1909 = vsel %vm1745, %v1845, 0.0
          %v1910 = vsel %vm1746, %v1833, 0.0
          %v1911 = vsel %vm1747, %v1837, 0.0
          %v1912 = vsel %vm1748, %v1841, 0.0
          %v1913 = vsel %vm1749, %v1845, 0.0
          %v1914 = vsel %vm1750, %v1833, 0.0
          %v1915 = vsel %vm1751, %v1837, 0.0
          %v1916 = vsel %vm1752, %v1841, 0.0
          %v1917 = vsel %vm1753, %v1845, 0.0
          %v1918 = vsel %vm1754, %v1833, 0.0
          %v1919 = vsel %vm1755, %v1837, 0.0
          %v1920 = vsel %vm1756, %v1841, 0.0
          %v1921 = vsel %vm1757, %v1845, 0.0
          %v1922 = vsel %vm1758, %v1833, 0.0
          %v1923 = vsel %vm1759, %v1837, 0.0
          %v1924 = vsel %vm1760, %v1841, 0.0
          %v1925 = vsel %vm1761, %v1845, 0.0
          %v1926 = vsel %vm1762, %v1833, 0.0
          %v1927 = vsel %vm1763, %v1837, 0.0
          %v1928 = vsel %vm1764, %v1841, 0.0
          %v1929 = vsel %vm1765, %v1845, 0.0
          %v1930 = vsel %vm1766, %v1833, 0.0
          %v1931 = vsel %vm1767, %v1837, 0.0
          %v1932 = vsel %vm1768, %v1841, 0.0
          %v1933 = vsel %vm1769, %v1845, 0.0
          %v1934 = vsel %vm1770, %v1833, 0.0
          %v1935 = vsel %vm1771, %v1837, 0.0
          %v1936 = vsel %vm1772, %v1841, 0.0
          %v1937 = vsel %vm1773, %v1845, 0.0
          %v1938 = vsel %vm1774, %v1833, 0.0
          %v1939 = vsel %vm1775, %v1837, 0.0
          %v1940 = vsel %vm1776, %v1841, 0.0
          %v1941 = vsel %vm1777, %v1845, 0.0
          %v1942 = vsel %vm1778, %v1833, 0.0
          %v1943 = vsel %vm1779, %v1837, 0.0
          %v1944 = vsel %vm1780, %v1841, 0.0
          %v1945 = vsel %vm1781, %v1845, 0.0
          %v1946 = vsel %vm1782, %v1833, 0.0
          %v1947 = vsel %vm1783, %v1837, 0.0
          %v1948 = vsel %vm1784, %v1841, 0.0
          %v1949 = vsel %vm1785, %v1845, 0.0
          %v1950 = vsel %vm1786, %v1833, 0.0
          %v1951 = vsel %vm1787, %v1837, 0.0
          %v1952 = vsel %vm1788, %v1841, 0.0
          %v1953 = vsel %vm1789, %v1845, 0.0
          %v1954 = vsel %vm1790, %v1833, 0.0
          %v1955 = vsel %vm1791, %v1837, 0.0
          %v1956 = vsel %vm1792, %v1841, 0.0
          %v1957 = vsel %vm1793, %v1845, 0.0
          %v1958 = vsel %vm1794, %v1833, 0.0
          %v1959 = vsel %vm1795, %v1837, 0.0
          %v1960 = vsel %vm1796, %v1841, 0.0
          %v1961 = vsel %vm1797, %v1845, 0.0
          %v1962 = vsel %vm1798, %v1833, 0.0
          %v1963 = vsel %vm1799, %v1837, 0.0
          %v1964 = vsel %vm1800, %v1841, 0.0
          %v1965 = vsel %vm1801, %v1845, 0.0
          %v1966 = vsel %vm1802, %v1833, 0.0
          %v1967 = vsel %vm1803, %v1837, 0.0
          %v1968 = vsel %vm1804, %v1841, 0.0
          %v1969 = vsel %vm1805, %v1845, 0.0
          %v1970 = vsel %vm1806, %v1833, 0.0
          %v1971 = vsel %vm1807, %v1837, 0.0
          %v1972 = vsel %vm1808, %v1841, 0.0
          %v1973 = vsel %vm1809, %v1845, 0.0
          %v1974 = vlaneseq
          %v1975 = vshrl.u32 %v1974, 7
          %v1976 = vsub.s32 1, %v1975
          %v1977 = vrot.slane %v272, %v1976
          %v1978 = vlaneseq
          %v1979 = vshrl.u32 %v1978, 7
          %v1980 = vsub.s32 5, %v1979
          %v1981 = vrot.slane %v272, %v1980
          %v1982 = vlaneseq
          %v1983 = vshrl.u32 %v1982, 7
          %v1984 = vsub.s32 1, %v1983
          %v1985 = vrot.slane %v273, %v1984
          %v1986 = vlaneseq
          %v1987 = vshrl.u32 %v1986, 7
          %v1988 = vsub.s32 5, %v1987
          %v1989 = vrot.slane %v273, %v1988
          %v1994 = vlaneseq
          %v1995 = vshrl.u32 %v1994, 7
          %v1996 = vsub.s32 1, %v1995
          %v1997 = vrot.slane %v1977, %v1996
          %v1998 = vlaneseq
          %v1999 = vshrl.u32 %v1998, 7
          %v2000 = vsub.s32 1, %v1999
          %v2001 = vrot.slane %v1981, %v2000
          %v2002 = vlaneseq
          %v2003 = vshrl.u32 %v2002, 7
          %v2004 = vsub.s32 1, %v2003
          %v2005 = vrot.slane %v1985, %v2004
          %v2006 = vlaneseq
          %v2007 = vshrl.u32 %v2006, 7
          %v2008 = vsub.s32 1, %v2007
          %v2009 = vrot.slane %v1989, %v2008
          %v2010 = vsel %vm1682, %v1997, 0.0
          %v2011 = vsel %vm1683, %v2001, 0.0
          %v2012 = vsel %vm1684, %v2005, 0.0
          %v2013 = vsel %vm1685, %v2009, 0.0
          %v2014 = vsel %vm1686, %v1997, 0.0
          %v2015 = vsel %vm1687, %v2001, 0.0
          %v2016 = vsel %vm1688, %v2005, 0.0
          %v2017 = vsel %vm1689, %v2009, 0.0
          %v2018 = vsel %vm1690, %v1997, 0.0
          %v2019 = vsel %vm1691, %v2001, 0.0
          %v2020 = vsel %vm1692, %v2005, 0.0
          %v2021 = vsel %vm1693, %v2009, 0.0
          %v2022 = vsel %vm1694, %v1997, 0.0
          %v2023 = vsel %vm1695, %v2001, 0.0
          %v2024 = vsel %vm1696, %v2005, 0.0
          %v2025 = vsel %vm1697, %v2009, 0.0
          %v2026 = vsel %vm1698, %v1997, 0.0
          %v2027 = vsel %vm1699, %v2001, 0.0
          %v2028 = vsel %vm1700, %v2005, 0.0
          %v2029 = vsel %vm1701, %v2009, 0.0
          %v2030 = vsel %vm1702, %v1997, 0.0
          %v2031 = vsel %vm1703, %v2001, 0.0
          %v2032 = vsel %vm1704, %v2005, 0.0
          %v2033 = vsel %vm1705, %v2009, 0.0
          %v2034 = vsel %vm1706, %v1997, 0.0
          %v2035 = vsel %vm1707, %v2001, 0.0
          %v2036 = vsel %vm1708, %v2005, 0.0
          %v2037 = vsel %vm1709, %v2009, 0.0
          %v2038 = vsel %vm1710, %v1997, 0.0
          %v2039 = vsel %vm1711, %v2001, 0.0
          %v2040 = vsel %vm1712, %v2005, 0.0
          %v2041 = vsel %vm1713, %v2009, 0.0
          %v2042 = vsel %vm1714, %v1997, 0.0
          %v2043 = vsel %vm1715, %v2001, 0.0
          %v2044 = vsel %vm1716, %v2005, 0.0
          %v2045 = vsel %vm1717, %v2009, 0.0
          %v2046 = vsel %vm1718, %v1997, 0.0
          %v2047 = vsel %vm1719, %v2001, 0.0
          %v2048 = vsel %vm1720, %v2005, 0.0
          %v2049 = vsel %vm1721, %v2009, 0.0
          %v2050 = vsel %vm1722, %v1997, 0.0
          %v2051 = vsel %vm1723, %v2001, 0.0
          %v2052 = vsel %vm1724, %v2005, 0.0
          %v2053 = vsel %vm1725, %v2009, 0.0
          %v2054 = vsel %vm1726, %v1997, 0.0
          %v2055 = vsel %vm1727, %v2001, 0.0
          %v2056 = vsel %vm1728, %v2005, 0.0
          %v2057 = vsel %vm1729, %v2009, 0.0
          %v2058 = vsel %vm1730, %v1997, 0.0
          %v2059 = vsel %vm1731, %v2001, 0.0
          %v2060 = vsel %vm1732, %v2005, 0.0
          %v2061 = vsel %vm1733, %v2009, 0.0
          %v2062 = vsel %vm1734, %v1997, 0.0
          %v2063 = vsel %vm1735, %v2001, 0.0
          %v2064 = vsel %vm1736, %v2005, 0.0
          %v2065 = vsel %vm1737, %v2009, 0.0
          %v2066 = vsel %vm1738, %v1997, 0.0
          %v2067 = vsel %vm1739, %v2001, 0.0
          %v2068 = vsel %vm1740, %v2005, 0.0
          %v2069 = vsel %vm1741, %v2009, 0.0
          %v2070 = vsel %vm1742, %v1997, 0.0
          %v2071 = vsel %vm1743, %v2001, 0.0
          %v2072 = vsel %vm1744, %v2005, 0.0
          %v2073 = vsel %vm1745, %v2009, 0.0
          %v2074 = vsel %vm1746, %v1997, 0.0
          %v2075 = vsel %vm1747, %v2001, 0.0
          %v2076 = vsel %vm1748, %v2005, 0.0
          %v2077 = vsel %vm1749, %v2009, 0.0
          %v2078 = vsel %vm1750, %v1997, 0.0
          %v2079 = vsel %vm1751, %v2001, 0.0
          %v2080 = vsel %vm1752, %v2005, 0.0
          %v2081 = vsel %vm1753, %v2009, 0.0
          %v2082 = vsel %vm1754, %v1997, 0.0
          %v2083 = vsel %vm1755, %v2001, 0.0
          %v2084 = vsel %vm1756, %v2005, 0.0
          %v2085 = vsel %vm1757, %v2009, 0.0
          %v2086 = vsel %vm1758, %v1997, 0.0
          %v2087 = vsel %vm1759, %v2001, 0.0
          %v2088 = vsel %vm1760, %v2005, 0.0
          %v2089 = vsel %vm1761, %v2009, 0.0
          %v2090 = vsel %vm1762, %v1997, 0.0
          %v2091 = vsel %vm1763, %v2001, 0.0
          %v2092 = vsel %vm1764, %v2005, 0.0
          %v2093 = vsel %vm1765, %v2009, 0.0
          %v2094 = vsel %vm1766, %v1997, 0.0
          %v2095 = vsel %vm1767, %v2001, 0.0
          %v2096 = vsel %vm1768, %v2005, 0.0
          %v2097 = vsel %vm1769, %v2009, 0.0
          %v2098 = vsel %vm1770, %v1997, 0.0
          %v2099 = vsel %vm1771, %v2001, 0.0
          %v2100 = vsel %vm1772, %v2005, 0.0
          %v2101 = vsel %vm1773, %v2009, 0.0
          %v2102 = vsel %vm1774, %v1997, 0.0
          %v2103 = vsel %vm1775, %v2001, 0.0
          %v2104 = vsel %vm1776, %v2005, 0.0
          %v2105 = vsel %vm1777, %v2009, 0.0
          %v2106 = vsel %vm1778, %v1997, 0.0
          %v2107 = vsel %vm1779, %v2001, 0.0
          %v2108 = vsel %vm1780, %v2005, 0.0
          %v2109 = vsel %vm1781, %v2009, 0.0
          %v2110 = vsel %vm1782, %v1997, 0.0
          %v2111 = vsel %vm1783, %v2001, 0.0
          %v2112 = vsel %vm1784, %v2005, 0.0
          %v2113 = vsel %vm1785, %v2009, 0.0
          %v2114 = vsel %vm1786, %v1997, 0.0
          %v2115 = vsel %vm1787, %v2001, 0.0
          %v2116 = vsel %vm1788, %v2005, 0.0
          %v2117 = vsel %vm1789, %v2009, 0.0
          %v2118 = vsel %vm1790, %v1997, 0.0
          %v2119 = vsel %vm1791, %v2001, 0.0
          %v2120 = vsel %vm1792, %v2005, 0.0
          %v2121 = vsel %vm1793, %v2009, 0.0
          %v2122 = vsel %vm1794, %v1997, 0.0
          %v2123 = vsel %vm1795, %v2001, 0.0
          %v2124 = vsel %vm1796, %v2005, 0.0
          %v2125 = vsel %vm1797, %v2009, 0.0
          %v2126 = vsel %vm1798, %v1997, 0.0
          %v2127 = vsel %vm1799, %v2001, 0.0
          %v2128 = vsel %vm1800, %v2005, 0.0
          %v2129 = vsel %vm1801, %v2009, 0.0
          %v2130 = vsel %vm1802, %v1997, 0.0
          %v2131 = vsel %vm1803, %v2001, 0.0
          %v2132 = vsel %vm1804, %v2005, 0.0
          %v2133 = vsel %vm1805, %v2009, 0.0
          %v2134 = vsel %vm1806, %v1997, 0.0
          %v2135 = vsel %vm1807, %v2001, 0.0
          %v2136 = vsel %vm1808, %v2005, 0.0
          %v2137 = vsel %vm1809, %v2009, 0.0
          %v2138 = vrot.slane %v2010, 7
          %v2139 = vrot.slane %v2011, 7
          %v2140 = vrot.slane %v2012, 7
          %v2141 = vrot.slane %v2013, 7
          %v2142 = vrot.slane %v2014, 7
          %v2143 = vrot.slane %v2015, 7
          %v2144 = vrot.slane %v2016, 7
          %v2145 = vrot.slane %v2017, 7
          %v2146 = vrot.slane %v2018, 7
          %v2147 = vrot.slane %v2019, 7
          %v2148 = vrot.slane %v2020, 7
          %v2149 = vrot.slane %v2021, 7
          %v2150 = vrot.slane %v2022, 7
          %v2151 = vrot.slane %v2023, 7
          %v2152 = vrot.slane %v2024, 7
          %v2153 = vrot.slane %v2025, 7
          %v2154 = vrot.slane %v2026, 7
          %v2155 = vrot.slane %v2027, 7
          %v2156 = vrot.slane %v2028, 7
          %v2157 = vrot.slane %v2029, 7
          %v2158 = vrot.slane %v2030, 7
          %v2159 = vrot.slane %v2031, 7
          %v2160 = vrot.slane %v2032, 7
          %v2161 = vrot.slane %v2033, 7
          %v2162 = vrot.slane %v2034, 7
          %v2163 = vrot.slane %v2035, 7
          %v2164 = vrot.slane %v2036, 7
          %v2165 = vrot.slane %v2037, 7
          %v2166 = vrot.slane %v2038, 7
          %v2167 = vrot.slane %v2039, 7
          %v2168 = vrot.slane %v2040, 7
          %v2169 = vrot.slane %v2041, 7
          %v2170 = vrot.slane %v2042, 7
          %v2171 = vrot.slane %v2043, 7
          %v2172 = vrot.slane %v2044, 7
          %v2173 = vrot.slane %v2045, 7
          %v2174 = vrot.slane %v2046, 7
          %v2175 = vrot.slane %v2047, 7
          %v2176 = vrot.slane %v2048, 7
          %v2177 = vrot.slane %v2049, 7
          %v2178 = vrot.slane %v2050, 7
          %v2179 = vrot.slane %v2051, 7
          %v2180 = vrot.slane %v2052, 7
          %v2181 = vrot.slane %v2053, 7
          %v2182 = vrot.slane %v2054, 7
          %v2183 = vrot.slane %v2055, 7
          %v2184 = vrot.slane %v2056, 7
          %v2185 = vrot.slane %v2057, 7
          %v2186 = vrot.slane %v2058, 7
          %v2187 = vrot.slane %v2059, 7
          %v2188 = vrot.slane %v2060, 7
          %v2189 = vrot.slane %v2061, 7
          %v2190 = vrot.slane %v2062, 7
          %v2191 = vrot.slane %v2063, 7
          %v2192 = vrot.slane %v2064, 7
          %v2193 = vrot.slane %v2065, 7
          %v2194 = vrot.slane %v2066, 7
          %v2195 = vrot.slane %v2067, 7
          %v2196 = vrot.slane %v2068, 7
          %v2197 = vrot.slane %v2069, 7
          %v2198 = vrot.slane %v2070, 7
          %v2199 = vrot.slane %v2071, 7
          %v2200 = vrot.slane %v2072, 7
          %v2201 = vrot.slane %v2073, 7
          %v2202 = vrot.slane %v2074, 7
          %v2203 = vrot.slane %v2075, 7
          %v2204 = vrot.slane %v2076, 7
          %v2205 = vrot.slane %v2077, 7
          %v2206 = vrot.slane %v2078, 7
          %v2207 = vrot.slane %v2079, 7
          %v2208 = vrot.slane %v2080, 7
          %v2209 = vrot.slane %v2081, 7
          %v2210 = vrot.slane %v2082, 7
          %v2211 = vrot.slane %v2083, 7
          %v2212 = vrot.slane %v2084, 7
          %v2213 = vrot.slane %v2085, 7
          %v2214 = vrot.slane %v2086, 7
          %v2215 = vrot.slane %v2087, 7
          %v2216 = vrot.slane %v2088, 7
          %v2217 = vrot.slane %v2089, 7
          %v2218 = vrot.slane %v2090, 7
          %v2219 = vrot.slane %v2091, 7
          %v2220 = vrot.slane %v2092, 7
          %v2221 = vrot.slane %v2093, 7
          %v2222 = vrot.slane %v2094, 7
          %v2223 = vrot.slane %v2095, 7
          %v2224 = vrot.slane %v2096, 7
          %v2225 = vrot.slane %v2097, 7
          %v2226 = vrot.slane %v2098, 7
          %v2227 = vrot.slane %v2099, 7
          %v2228 = vrot.slane %v2100, 7
          %v2229 = vrot.slane %v2101, 7
          %v2230 = vrot.slane %v2102, 7
          %v2231 = vrot.slane %v2103, 7
          %v2232 = vrot.slane %v2104, 7
          %v2233 = vrot.slane %v2105, 7
          %v2234 = vrot.slane %v2106, 7
          %v2235 = vrot.slane %v2107, 7
          %v2236 = vrot.slane %v2108, 7
          %v2237 = vrot.slane %v2109, 7
          %v2238 = vrot.slane %v2110, 7
          %v2239 = vrot.slane %v2111, 7
          %v2240 = vrot.slane %v2112, 7
          %v2241 = vrot.slane %v2113, 7
          %v2242 = vrot.slane %v2114, 7
          %v2243 = vrot.slane %v2115, 7
          %v2244 = vrot.slane %v2116, 7
          %v2245 = vrot.slane %v2117, 7
          %v2246 = vrot.slane %v2118, 7
          %v2247 = vrot.slane %v2119, 7
          %v2248 = vrot.slane %v2120, 7
          %v2249 = vrot.slane %v2121, 7
          %v2250 = vrot.slane %v2122, 7
          %v2251 = vrot.slane %v2123, 7
          %v2252 = vrot.slane %v2124, 7
          %v2253 = vrot.slane %v2125, 7
          %v2254 = vrot.slane %v2126, 7
          %v2255 = vrot.slane %v2127, 7
          %v2256 = vrot.slane %v2128, 7
          %v2257 = vrot.slane %v2129, 7
          %v2258 = vrot.slane %v2130, 7
          %v2259 = vrot.slane %v2131, 7
          %v2260 = vrot.slane %v2132, 7
          %v2261 = vrot.slane %v2133, 7
          %v2262 = vrot.slane %v2134, 7
          %v2263 = vrot.slane %v2135, 7
          %v2264 = vrot.slane %v2136, 7
          %v2265 = vrot.slane %v2137, 7
          %v2266 = vsel %vm933, %v2258, %v2262
          %v2267 = vsel %vm933, %v2259, %v2263
          %v2268 = vsel %vm933, %v2260, %v2264
          %v2269 = vsel %vm933, %v2261, %v2265
          %v2270 = vsel %vm933, %v2254, %v2258
          %v2271 = vsel %vm933, %v2255, %v2259
          %v2272 = vsel %vm933, %v2256, %v2260
          %v2273 = vsel %vm933, %v2257, %v2261
          %v2274 = vsel %vm933, %v2250, %v2254
          %v2275 = vsel %vm933, %v2251, %v2255
          %v2276 = vsel %vm933, %v2252, %v2256
          %v2277 = vsel %vm933, %v2253, %v2257
          %v2278 = vsel %vm933, %v2246, %v2250
          %v2279 = vsel %vm933, %v2247, %v2251
          %v2280 = vsel %vm933, %v2248, %v2252
          %v2281 = vsel %vm933, %v2249, %v2253
          %v2282 = vsel %vm933, %v2242, %v2246
          %v2283 = vsel %vm933, %v2243, %v2247
          %v2284 = vsel %vm933, %v2244, %v2248
          %v2285 = vsel %vm933, %v2245, %v2249
          %v2286 = vsel %vm933, %v2238, %v2242
          %v2287 = vsel %vm933, %v2239, %v2243
          %v2288 = vsel %vm933, %v2240, %v2244
          %v2289 = vsel %vm933, %v2241, %v2245
          %v2290 = vsel %vm933, %v2234, %v2238
          %v2291 = vsel %vm933, %v2235, %v2239
          %v2292 = vsel %vm933, %v2236, %v2240
          %v2293 = vsel %vm933, %v2237, %v2241
          %v2294 = vsel %vm933, %v2230, %v2234
          %v2295 = vsel %vm933, %v2231, %v2235
          %v2296 = vsel %vm933, %v2232, %v2236
          %v2297 = vsel %vm933, %v2233, %v2237
          %v2298 = vsel %vm933, %v2226, %v2230
          %v2299 = vsel %vm933, %v2227, %v2231
          %v2300 = vsel %vm933, %v2228, %v2232
          %v2301 = vsel %vm933, %v2229, %v2233
          %v2302 = vsel %vm933, %v2222, %v2226
          %v2303 = vsel %vm933, %v2223, %v2227
          %v2304 = vsel %vm933, %v2224, %v2228
          %v2305 = vsel %vm933, %v2225, %v2229
          %v2306 = vsel %vm933, %v2218, %v2222
          %v2307 = vsel %vm933, %v2219, %v2223
          %v2308 = vsel %vm933, %v2220, %v2224
          %v2309 = vsel %vm933, %v2221, %v2225
          %v2310 = vsel %vm933, %v2214, %v2218
          %v2311 = vsel %vm933, %v2215, %v2219
          %v2312 = vsel %vm933, %v2216, %v2220
          %v2313 = vsel %vm933, %v2217, %v2221
          %v2314 = vsel %vm933, %v2210, %v2214
          %v2315 = vsel %vm933, %v2211, %v2215
          %v2316 = vsel %vm933, %v2212, %v2216
          %v2317 = vsel %vm933, %v2213, %v2217
          %v2318 = vsel %vm933, %v2206, %v2210
          %v2319 = vsel %vm933, %v2207, %v2211
          %v2320 = vsel %vm933, %v2208, %v2212
          %v2321 = vsel %vm933, %v2209, %v2213
          %v2322 = vsel %vm933, %v2202, %v2206
          %v2323 = vsel %vm933, %v2203, %v2207
          %v2324 = vsel %vm933, %v2204, %v2208
          %v2325 = vsel %vm933, %v2205, %v2209
          %v2326 = vsel %vm933, %v2198, %v2202
          %v2327 = vsel %vm933, %v2199, %v2203
          %v2328 = vsel %vm933, %v2200, %v2204
          %v2329 = vsel %vm933, %v2201, %v2205
          %v2330 = vsel %vm933, %v2194, %v2198
          %v2331 = vsel %vm933, %v2195, %v2199
          %v2332 = vsel %vm933, %v2196, %v2200
          %v2333 = vsel %vm933, %v2197, %v2201
          %v2334 = vsel %vm933, %v2190, %v2194
          %v2335 = vsel %vm933, %v2191, %v2195
          %v2336 = vsel %vm933, %v2192, %v2196
          %v2337 = vsel %vm933, %v2193, %v2197
          %v2338 = vsel %vm933, %v2186, %v2190
          %v2339 = vsel %vm933, %v2187, %v2191
          %v2340 = vsel %vm933, %v2188, %v2192
          %v2341 = vsel %vm933, %v2189, %v2193
          %v2342 = vsel %vm933, %v2182, %v2186
          %v2343 = vsel %vm933, %v2183, %v2187
          %v2344 = vsel %vm933, %v2184, %v2188
          %v2345 = vsel %vm933, %v2185, %v2189
          %v2346 = vsel %vm933, %v2178, %v2182
          %v2347 = vsel %vm933, %v2179, %v2183
          %v2348 = vsel %vm933, %v2180, %v2184
          %v2349 = vsel %vm933, %v2181, %v2185
          %v2350 = vsel %vm933, %v2174, %v2178
          %v2351 = vsel %vm933, %v2175, %v2179
          %v2352 = vsel %vm933, %v2176, %v2180
          %v2353 = vsel %vm933, %v2177, %v2181
          %v2354 = vsel %vm933, %v2170, %v2174
          %v2355 = vsel %vm933, %v2171, %v2175
          %v2356 = vsel %vm933, %v2172, %v2176
          %v2357 = vsel %vm933, %v2173, %v2177
          %v2358 = vsel %vm933, %v2166, %v2170
          %v2359 = vsel %vm933, %v2167, %v2171
          %v2360 = vsel %vm933, %v2168, %v2172
          %v2361 = vsel %vm933, %v2169, %v2173
          %v2362 = vsel %vm933, %v2162, %v2166
          %v2363 = vsel %vm933, %v2163, %v2167
          %v2364 = vsel %vm933, %v2164, %v2168
          %v2365 = vsel %vm933, %v2165, %v2169
          %v2366 = vsel %vm933, %v2158, %v2162
          %v2367 = vsel %vm933, %v2159, %v2163
          %v2368 = vsel %vm933, %v2160, %v2164
          %v2369 = vsel %vm933, %v2161, %v2165
          %v2370 = vsel %vm933, %v2154, %v2158
          %v2371 = vsel %vm933, %v2155, %v2159
          %v2372 = vsel %vm933, %v2156, %v2160
          %v2373 = vsel %vm933, %v2157, %v2161
          %v2374 = vsel %vm933, %v2150, %v2154
          %v2375 = vsel %vm933, %v2151, %v2155
          %v2376 = vsel %vm933, %v2152, %v2156
          %v2377 = vsel %vm933, %v2153, %v2157
          %v2378 = vsel %vm933, %v2146, %v2150
          %v2379 = vsel %vm933, %v2147, %v2151
          %v2380 = vsel %vm933, %v2148, %v2152
          %v2381 = vsel %vm933, %v2149, %v2153
          %v2382 = vsel %vm933, %v2142, %v2146
          %v2383 = vsel %vm933, %v2143, %v2147
          %v2384 = vsel %vm933, %v2144, %v2148
          %v2385 = vsel %vm933, %v2145, %v2149
          %v2386 = vsel %vm933, %v2138, %v2142
          %v2387 = vsel %vm933, %v2139, %v2143
          %v2388 = vsel %vm933, %v2140, %v2144
          %v2389 = vsel %vm933, %v2141, %v2145
          %v2390 = vsel %vm933, %v2262, %v2138
          %v2391 = vsel %vm933, %v2263, %v2139
          %v2392 = vsel %vm933, %v2264, %v2140
          %v2393 = vsel %vm933, %v2265, %v2141
          %v2394 = vadd.f32 %v1846, %v2390
          %v2395 = vadd.f32 %v1847, %v2391
          %v2396 = vadd.f32 %v1848, %v2392
          %v2397 = vadd.f32 %v1849, %v2393
          %v2398 = vadd.f32 %v1850, %v2386
          %v2399 = vadd.f32 %v1851, %v2387
          %v2400 = vadd.f32 %v1852, %v2388
          %v2401 = vadd.f32 %v1853, %v2389
          %v2402 = vadd.f32 %v1854, %v2382
          %v2403 = vadd.f32 %v1855, %v2383
          %v2404 = vadd.f32 %v1856, %v2384
          %v2405 = vadd.f32 %v1857, %v2385
          %v2406 = vadd.f32 %v1858, %v2378
          %v2407 = vadd.f32 %v1859, %v2379
          %v2408 = vadd.f32 %v1860, %v2380
          %v2409 = vadd.f32 %v1861, %v2381
          %v2410 = vadd.f32 %v1862, %v2374
          %v2411 = vadd.f32 %v1863, %v2375
          %v2412 = vadd.f32 %v1864, %v2376
          %v2413 = vadd.f32 %v1865, %v2377
          %v2414 = vadd.f32 %v1866, %v2370
          %v2415 = vadd.f32 %v1867, %v2371
          %v2416 = vadd.f32 %v1868, %v2372
          %v2417 = vadd.f32 %v1869, %v2373
          %v2418 = vadd.f32 %v1870, %v2366
          %v2419 = vadd.f32 %v1871, %v2367
          %v2420 = vadd.f32 %v1872, %v2368
          %v2421 = vadd.f32 %v1873, %v2369
          %v2422 = vadd.f32 %v1874, %v2362
          %v2423 = vadd.f32 %v1875, %v2363
          %v2424 = vadd.f32 %v1876, %v2364
          %v2425 = vadd.f32 %v1877, %v2365
          %v2426 = vadd.f32 %v1878, %v2358
          %v2427 = vadd.f32 %v1879, %v2359
          %v2428 = vadd.f32 %v1880, %v2360
          %v2429 = vadd.f32 %v1881, %v2361
          %v2430 = vadd.f32 %v1882, %v2354
          %v2431 = vadd.f32 %v1883, %v2355
          %v2432 = vadd.f32 %v1884, %v2356
          %v2433 = vadd.f32 %v1885, %v2357
          %v2434 = vadd.f32 %v1886, %v2350
          %v2435 = vadd.f32 %v1887, %v2351
          %v2436 = vadd.f32 %v1888, %v2352
          %v2437 = vadd.f32 %v1889, %v2353
          %v2438 = vadd.f32 %v1890, %v2346
          %v2439 = vadd.f32 %v1891, %v2347
          %v2440 = vadd.f32 %v1892, %v2348
          %v2441 = vadd.f32 %v1893, %v2349
          %v2442 = vadd.f32 %v1894, %v2342
          %v2443 = vadd.f32 %v1895, %v2343
          %v2444 = vadd.f32 %v1896, %v2344
          %v2445 = vadd.f32 %v1897, %v2345
          %v2446 = vadd.f32 %v1898, %v2338
          %v2447 = vadd.f32 %v1899, %v2339
          %v2448 = vadd.f32 %v1900, %v2340
          %v2449 = vadd.f32 %v1901, %v2341
          %v2450 = vadd.f32 %v1902, %v2334
          %v2451 = vadd.f32 %v1903, %v2335
          %v2452 = vadd.f32 %v1904, %v2336
          %v2453 = vadd.f32 %v1905, %v2337
          %v2454 = vadd.f32 %v1906, %v2330
          %v2455 = vadd.f32 %v1907, %v2331
          %v2456 = vadd.f32 %v1908, %v2332
          %v2457 = vadd.f32 %v1909, %v2333
          %v2458 = vadd.f32 %v1910, %v2326
          %v2459 = vadd.f32 %v1911, %v2327
          %v2460 = vadd.f32 %v1912, %v2328
          %v2461 = vadd.f32 %v1913, %v2329
          %v2462 = vadd.f32 %v1914, %v2322
          %v2463 = vadd.f32 %v1915, %v2323
          %v2464 = vadd.f32 %v1916, %v2324
          %v2465 = vadd.f32 %v1917, %v2325
          %v2466 = vadd.f32 %v1918, %v2318
          %v2467 = vadd.f32 %v1919, %v2319
          %v2468 = vadd.f32 %v1920, %v2320
          %v2469 = vadd.f32 %v1921, %v2321
          %v2470 = vadd.f32 %v1922, %v2314
          %v2471 = vadd.f32 %v1923, %v2315
          %v2472 = vadd.f32 %v1924, %v2316
          %v2473 = vadd.f32 %v1925, %v2317
          %v2474 = vadd.f32 %v1926, %v2310
          %v2475 = vadd.f32 %v1927, %v2311
          %v2476 = vadd.f32 %v1928, %v2312
          %v2477 = vadd.f32 %v1929, %v2313
          %v2478 = vadd.f32 %v1930, %v2306
          %v2479 = vadd.f32 %v1931, %v2307
          %v2480 = vadd.f32 %v1932, %v2308
          %v2481 = vadd.f32 %v1933, %v2309
          %v2482 = vadd.f32 %v1934, %v2302
          %v2483 = vadd.f32 %v1935, %v2303
          %v2484 = vadd.f32 %v1936, %v2304
          %v2485 = vadd.f32 %v1937, %v2305
          %v2486 = vadd.f32 %v1938, %v2298
          %v2487 = vadd.f32 %v1939, %v2299
          %v2488 = vadd.f32 %v1940, %v2300
          %v2489 = vadd.f32 %v1941, %v2301
          %v2490 = vadd.f32 %v1942, %v2294
          %v2491 = vadd.f32 %v1943, %v2295
          %v2492 = vadd.f32 %v1944, %v2296
          %v2493 = vadd.f32 %v1945, %v2297
          %v2494 = vadd.f32 %v1946, %v2290
          %v2495 = vadd.f32 %v1947, %v2291
          %v2496 = vadd.f32 %v1948, %v2292
          %v2497 = vadd.f32 %v1949, %v2293
          %v2498 = vadd.f32 %v1950, %v2286
          %v2499 = vadd.f32 %v1951, %v2287
          %v2500 = vadd.f32 %v1952, %v2288
          %v2501 = vadd.f32 %v1953, %v2289
          %v2502 = vadd.f32 %v1954, %v2282
          %v2503 = vadd.f32 %v1955, %v2283
          %v2504 = vadd.f32 %v1956, %v2284
          %v2505 = vadd.f32 %v1957, %v2285
          %v2506 = vadd.f32 %v1958, %v2278
          %v2507 = vadd.f32 %v1959, %v2279
          %v2508 = vadd.f32 %v1960, %v2280
          %v2509 = vadd.f32 %v1961, %v2281
          %v2510 = vadd.f32 %v1962, %v2274
          %v2511 = vadd.f32 %v1963, %v2275
          %v2512 = vadd.f32 %v1964, %v2276
          %v2513 = vadd.f32 %v1965, %v2277
          %v2514 = vadd.f32 %v1966, %v2270
          %v2515 = vadd.f32 %v1967, %v2271
          %v2516 = vadd.f32 %v1968, %v2272
          %v2517 = vadd.f32 %v1969, %v2273
          %v2518 = vadd.f32 %v1970, %v2266
          %v2519 = vadd.f32 %v1971, %v2267
          %v2520 = vadd.f32 %v1972, %v2268
          %v2521 = vadd.f32 %v1973, %v2269
          %v2522 = vlaneseq
          %v2523 = vshrl.u32 %v2522, 7
          %v2524 = vsub.s32 1, %v2523
          %v2525 = vrot.slane %v278, %v2524
          %v2526 = vlaneseq
          %v2527 = vshrl.u32 %v2526, 7
          %v2528 = vsub.s32 5, %v2527
          %v2529 = vrot.slane %v278, %v2528
          %v2530 = vlaneseq
          %v2531 = vshrl.u32 %v2530, 7
          %v2532 = vsub.s32 1, %v2531
          %v2533 = vrot.slane %v279, %v2532
          %v2534 = vlaneseq
          %v2535 = vshrl.u32 %v2534, 7
          %v2536 = vsub.s32 5, %v2535
          %v2537 = vrot.slane %v279, %v2536
          %v2542 = vlaneseq
          %v2543 = vshrl.u32 %v2542, 7
          %v2544 = vsub.s32 1, %v2543
          %v2545 = vrot.slane %v2525, %v2544
          %v2546 = vlaneseq
          %v2547 = vshrl.u32 %v2546, 7
          %v2548 = vsub.s32 1, %v2547
          %v2549 = vrot.slane %v2529, %v2548
          %v2550 = vlaneseq
          %v2551 = vshrl.u32 %v2550, 7
          %v2552 = vsub.s32 1, %v2551
          %v2553 = vrot.slane %v2533, %v2552
          %v2554 = vlaneseq
          %v2555 = vshrl.u32 %v2554, 7
          %v2556 = vsub.s32 1, %v2555
          %v2557 = vrot.slane %v2537, %v2556
          %v2558 = vmul.f32 %v2545, %v2394
          %v2559 = vmul.f32 %v2549, %v2395
          %v2560 = vmul.f32 %v2553, %v2396
          %v2561 = vmul.f32 %v2557, %v2397
          %v2562 = vmul.f32 %v2545, %v2398
          %v2563 = vmul.f32 %v2549, %v2399
          %v2564 = vmul.f32 %v2553, %v2400
          %v2565 = vmul.f32 %v2557, %v2401
          %v2566 = vmul.f32 %v2545, %v2402
          %v2567 = vmul.f32 %v2549, %v2403
          %v2568 = vmul.f32 %v2553, %v2404
          %v2569 = vmul.f32 %v2557, %v2405
          %v2570 = vmul.f32 %v2545, %v2406
          %v2571 = vmul.f32 %v2549, %v2407
          %v2572 = vmul.f32 %v2553, %v2408
          %v2573 = vmul.f32 %v2557, %v2409
          %v2574 = vmul.f32 %v2545, %v2410
          %v2575 = vmul.f32 %v2549, %v2411
          %v2576 = vmul.f32 %v2553, %v2412
          %v2577 = vmul.f32 %v2557, %v2413
          %v2578 = vmul.f32 %v2545, %v2414
          %v2579 = vmul.f32 %v2549, %v2415
          %v2580 = vmul.f32 %v2553, %v2416
          %v2581 = vmul.f32 %v2557, %v2417
          %v2582 = vmul.f32 %v2545, %v2418
          %v2583 = vmul.f32 %v2549, %v2419
          %v2584 = vmul.f32 %v2553, %v2420
          %v2585 = vmul.f32 %v2557, %v2421
          %v2586 = vmul.f32 %v2545, %v2422
          %v2587 = vmul.f32 %v2549, %v2423
          %v2588 = vmul.f32 %v2553, %v2424
          %v2589 = vmul.f32 %v2557, %v2425
          %v2590 = vmul.f32 %v2545, %v2426
          %v2591 = vmul.f32 %v2549, %v2427
          %v2592 = vmul.f32 %v2553, %v2428
          %v2593 = vmul.f32 %v2557, %v2429
          %v2594 = vmul.f32 %v2545, %v2430
          %v2595 = vmul.f32 %v2549, %v2431
          %v2596 = vmul.f32 %v2553, %v2432
          %v2597 = vmul.f32 %v2557, %v2433
          %v2598 = vmul.f32 %v2545, %v2434
          %v2599 = vmul.f32 %v2549, %v2435
          %v2600 = vmul.f32 %v2553, %v2436
          %v2601 = vmul.f32 %v2557, %v2437
          %v2602 = vmul.f32 %v2545, %v2438
          %v2603 = vmul.f32 %v2549, %v2439
          %v2604 = vmul.f32 %v2553, %v2440
          %v2605 = vmul.f32 %v2557, %v2441
          %v2606 = vmul.f32 %v2545, %v2442
          %v2607 = vmul.f32 %v2549, %v2443
          %v2608 = vmul.f32 %v2553, %v2444
          %v2609 = vmul.f32 %v2557, %v2445
          %v2610 = vmul.f32 %v2545, %v2446
          %v2611 = vmul.f32 %v2549, %v2447
          %v2612 = vmul.f32 %v2553, %v2448
          %v2613 = vmul.f32 %v2557, %v2449
          %v2614 = vmul.f32 %v2545, %v2450
          %v2615 = vmul.f32 %v2549, %v2451
          %v2616 = vmul.f32 %v2553, %v2452
          %v2617 = vmul.f32 %v2557, %v2453
          %v2618 = vmul.f32 %v2545, %v2454
          %v2619 = vmul.f32 %v2549, %v2455
          %v2620 = vmul.f32 %v2553, %v2456
          %v2621 = vmul.f32 %v2557, %v2457
          %v2622 = vmul.f32 %v2545, %v2458
          %v2623 = vmul.f32 %v2549, %v2459
          %v2624 = vmul.f32 %v2553, %v2460
          %v2625 = vmul.f32 %v2557, %v2461
          %v2626 = vmul.f32 %v2545, %v2462
          %v2627 = vmul.f32 %v2549, %v2463
          %v2628 = vmul.f32 %v2553, %v2464
          %v2629 = vmul.f32 %v2557, %v2465
          %v2630 = vmul.f32 %v2545, %v2466
          %v2631 = vmul.f32 %v2549, %v2467
          %v2632 = vmul.f32 %v2553, %v2468
          %v2633 = vmul.f32 %v2557, %v2469
          %v2634 = vmul.f32 %v2545, %v2470
          %v2635 = vmul.f32 %v2549, %v2471
          %v2636 = vmul.f32 %v2553, %v2472
          %v2637 = vmul.f32 %v2557, %v2473
          %v2638 = vmul.f32 %v2545, %v2474
          %v2639 = vmul.f32 %v2549, %v2475
          %v2640 = vmul.f32 %v2553, %v2476
          %v2641 = vmul.f32 %v2557, %v2477
          %v2642 = vmul.f32 %v2545, %v2478
          %v2643 = vmul.f32 %v2549, %v2479
          %v2644 = vmul.f32 %v2553, %v2480
          %v2645 = vmul.f32 %v2557, %v2481
          %v2646 = vmul.f32 %v2545, %v2482
          %v2647 = vmul.f32 %v2549, %v2483
          %v2648 = vmul.f32 %v2553, %v2484
          %v2649 = vmul.f32 %v2557, %v2485
          %v2650 = vmul.f32 %v2545, %v2486
          %v2651 = vmul.f32 %v2549, %v2487
          %v2652 = vmul.f32 %v2553, %v2488
          %v2653 = vmul.f32 %v2557, %v2489
          %v2654 = vmul.f32 %v2545, %v2490
          %v2655 = vmul.f32 %v2549, %v2491
          %v2656 = vmul.f32 %v2553, %v2492
          %v2657 = vmul.f32 %v2557, %v2493
          %v2658 = vmul.f32 %v2545, %v2494
          %v2659 = vmul.f32 %v2549, %v2495
          %v2660 = vmul.f32 %v2553, %v2496
          %v2661 = vmul.f32 %v2557, %v2497
          %v2662 = vmul.f32 %v2545, %v2498
          %v2663 = vmul.f32 %v2549, %v2499
          %v2664 = vmul.f32 %v2553, %v2500
          %v2665 = vmul.f32 %v2557, %v2501
          %v2666 = vmul.f32 %v2545, %v2502
          %v2667 = vmul.f32 %v2549, %v2503
          %v2668 = vmul.f32 %v2553, %v2504
          %v2669 = vmul.f32 %v2557, %v2505
          %v2670 = vmul.f32 %v2545, %v2506
          %v2671 = vmul.f32 %v2549, %v2507
          %v2672 = vmul.f32 %v2553, %v2508
          %v2673 = vmul.f32 %v2557, %v2509
          %v2674 = vmul.f32 %v2545, %v2510
          %v2675 = vmul.f32 %v2549, %v2511
          %v2676 = vmul.f32 %v2553, %v2512
          %v2677 = vmul.f32 %v2557, %v2513
          %v2678 = vmul.f32 %v2545, %v2514
          %v2679 = vmul.f32 %v2549, %v2515
          %v2680 = vmul.f32 %v2553, %v2516
          %v2681 = vmul.f32 %v2557, %v2517
          %v2682 = vmul.f32 %v2545, %v2518
          %v2683 = vmul.f32 %v2549, %v2519
          %v2684 = vmul.f32 %v2553, %v2520
          %v2685 = vmul.f32 %v2557, %v2521
          %v2686 = vlaneseq
          %v2687 = vshrl.u32 %v2686, 7
          %v2688 = vsub.s32 1, %v2687
          %v2689 = vrot.slane %v270, %v2688
          %v2690 = vlaneseq
          %v2691 = vshrl.u32 %v2690, 7
          %v2692 = vsub.s32 5, %v2691
          %v2693 = vrot.slane %v270, %v2692
          %v2694 = vlaneseq
          %v2695 = vshrl.u32 %v2694, 7
          %v2696 = vsub.s32 1, %v2695
          %v2697 = vrot.slane %v271, %v2696
          %v2698 = vlaneseq
          %v2699 = vshrl.u32 %v2698, 7
          %v2700 = vsub.s32 5, %v2699
          %v2701 = vrot.slane %v271, %v2700
          %v2706 = vlaneseq
          %v2707 = vshrl.u32 %v2706, 7
          %v2708 = vsub.s32 1, %v2707
          %v2709 = vrot.slane %v2689, %v2708
          %v2710 = vlaneseq
          %v2711 = vshrl.u32 %v2710, 7
          %v2712 = vsub.s32 1, %v2711
          %v2713 = vrot.slane %v2693, %v2712
          %v2714 = vlaneseq
          %v2715 = vshrl.u32 %v2714, 7
          %v2716 = vsub.s32 1, %v2715
          %v2717 = vrot.slane %v2697, %v2716
          %v2718 = vlaneseq
          %v2719 = vshrl.u32 %v2718, 7
          %v2720 = vsub.s32 1, %v2719
          %v2721 = vrot.slane %v2701, %v2720
          %v2722 = vmul.f32 %v2709, %v2514
          %v2723 = vmul.f32 %v2713, %v2515
          %v2724 = vmul.f32 %v2717, %v2516
          %v2725 = vmul.f32 %v2721, %v2517
          %v2726 = vmul.f32 %v2709, %v2518
          %v2727 = vmul.f32 %v2713, %v2519
          %v2728 = vmul.f32 %v2717, %v2520
          %v2729 = vmul.f32 %v2721, %v2521
          %v2730 = vmul.f32 %v2709, %v2394
          %v2731 = vmul.f32 %v2713, %v2395
          %v2732 = vmul.f32 %v2717, %v2396
          %v2733 = vmul.f32 %v2721, %v2397
          %v2734 = vmul.f32 %v2709, %v2398
          %v2735 = vmul.f32 %v2713, %v2399
          %v2736 = vmul.f32 %v2717, %v2400
          %v2737 = vmul.f32 %v2721, %v2401
          %v2738 = vmul.f32 %v2709, %v2402
          %v2739 = vmul.f32 %v2713, %v2403
          %v2740 = vmul.f32 %v2717, %v2404
          %v2741 = vmul.f32 %v2721, %v2405
          %v2742 = vmul.f32 %v2709, %v2406
          %v2743 = vmul.f32 %v2713, %v2407
          %v2744 = vmul.f32 %v2717, %v2408
          %v2745 = vmul.f32 %v2721, %v2409
          %v2746 = vmul.f32 %v2709, %v2410
          %v2747 = vmul.f32 %v2713, %v2411
          %v2748 = vmul.f32 %v2717, %v2412
          %v2749 = vmul.f32 %v2721, %v2413
          %v2750 = vmul.f32 %v2709, %v2414
          %v2751 = vmul.f32 %v2713, %v2415
          %v2752 = vmul.f32 %v2717, %v2416
          %v2753 = vmul.f32 %v2721, %v2417
          %v2754 = vmul.f32 %v2709, %v2418
          %v2755 = vmul.f32 %v2713, %v2419
          %v2756 = vmul.f32 %v2717, %v2420
          %v2757 = vmul.f32 %v2721, %v2421
          %v2758 = vmul.f32 %v2709, %v2422
          %v2759 = vmul.f32 %v2713, %v2423
          %v2760 = vmul.f32 %v2717, %v2424
          %v2761 = vmul.f32 %v2721, %v2425
          %v2762 = vmul.f32 %v2709, %v2426
          %v2763 = vmul.f32 %v2713, %v2427
          %v2764 = vmul.f32 %v2717, %v2428
          %v2765 = vmul.f32 %v2721, %v2429
          %v2766 = vmul.f32 %v2709, %v2430
          %v2767 = vmul.f32 %v2713, %v2431
          %v2768 = vmul.f32 %v2717, %v2432
          %v2769 = vmul.f32 %v2721, %v2433
          %v2770 = vmul.f32 %v2709, %v2434
          %v2771 = vmul.f32 %v2713, %v2435
          %v2772 = vmul.f32 %v2717, %v2436
          %v2773 = vmul.f32 %v2721, %v2437
          %v2774 = vmul.f32 %v2709, %v2438
          %v2775 = vmul.f32 %v2713, %v2439
          %v2776 = vmul.f32 %v2717, %v2440
          %v2777 = vmul.f32 %v2721, %v2441
          %v2778 = vmul.f32 %v2709, %v2442
          %v2779 = vmul.f32 %v2713, %v2443
          %v2780 = vmul.f32 %v2717, %v2444
          %v2781 = vmul.f32 %v2721, %v2445
          %v2782 = vmul.f32 %v2709, %v2446
          %v2783 = vmul.f32 %v2713, %v2447
          %v2784 = vmul.f32 %v2717, %v2448
          %v2785 = vmul.f32 %v2721, %v2449
          %v2786 = vmul.f32 %v2709, %v2450
          %v2787 = vmul.f32 %v2713, %v2451
          %v2788 = vmul.f32 %v2717, %v2452
          %v2789 = vmul.f32 %v2721, %v2453
          %v2790 = vmul.f32 %v2709, %v2454
          %v2791 = vmul.f32 %v2713, %v2455
          %v2792 = vmul.f32 %v2717, %v2456
          %v2793 = vmul.f32 %v2721, %v2457
          %v2794 = vmul.f32 %v2709, %v2458
          %v2795 = vmul.f32 %v2713, %v2459
          %v2796 = vmul.f32 %v2717, %v2460
          %v2797 = vmul.f32 %v2721, %v2461
          %v2798 = vmul.f32 %v2709, %v2462
          %v2799 = vmul.f32 %v2713, %v2463
          %v2800 = vmul.f32 %v2717, %v2464
          %v2801 = vmul.f32 %v2721, %v2465
          %v2802 = vmul.f32 %v2709, %v2466
          %v2803 = vmul.f32 %v2713, %v2467
          %v2804 = vmul.f32 %v2717, %v2468
          %v2805 = vmul.f32 %v2721, %v2469
          %v2806 = vmul.f32 %v2709, %v2470
          %v2807 = vmul.f32 %v2713, %v2471
          %v2808 = vmul.f32 %v2717, %v2472
          %v2809 = vmul.f32 %v2721, %v2473
          %v2810 = vmul.f32 %v2709, %v2474
          %v2811 = vmul.f32 %v2713, %v2475
          %v2812 = vmul.f32 %v2717, %v2476
          %v2813 = vmul.f32 %v2721, %v2477
          %v2814 = vmul.f32 %v2709, %v2478
          %v2815 = vmul.f32 %v2713, %v2479
          %v2816 = vmul.f32 %v2717, %v2480
          %v2817 = vmul.f32 %v2721, %v2481
          %v2818 = vmul.f32 %v2709, %v2482
          %v2819 = vmul.f32 %v2713, %v2483
          %v2820 = vmul.f32 %v2717, %v2484
          %v2821 = vmul.f32 %v2721, %v2485
          %v2822 = vmul.f32 %v2709, %v2486
          %v2823 = vmul.f32 %v2713, %v2487
          %v2824 = vmul.f32 %v2717, %v2488
          %v2825 = vmul.f32 %v2721, %v2489
          %v2826 = vmul.f32 %v2709, %v2490
          %v2827 = vmul.f32 %v2713, %v2491
          %v2828 = vmul.f32 %v2717, %v2492
          %v2829 = vmul.f32 %v2721, %v2493
          %v2830 = vmul.f32 %v2709, %v2494
          %v2831 = vmul.f32 %v2713, %v2495
          %v2832 = vmul.f32 %v2717, %v2496
          %v2833 = vmul.f32 %v2721, %v2497
          %v2834 = vmul.f32 %v2709, %v2498
          %v2835 = vmul.f32 %v2713, %v2499
          %v2836 = vmul.f32 %v2717, %v2500
          %v2837 = vmul.f32 %v2721, %v2501
          %v2838 = vmul.f32 %v2709, %v2502
          %v2839 = vmul.f32 %v2713, %v2503
          %v2840 = vmul.f32 %v2717, %v2504
          %v2841 = vmul.f32 %v2721, %v2505
          %v2842 = vmul.f32 %v2709, %v2506
          %v2843 = vmul.f32 %v2713, %v2507
          %v2844 = vmul.f32 %v2717, %v2508
          %v2845 = vmul.f32 %v2721, %v2509
          %v2846 = vmul.f32 %v2709, %v2510
          %v2847 = vmul.f32 %v2713, %v2511
          %v2848 = vmul.f32 %v2717, %v2512
          %v2849 = vmul.f32 %v2721, %v2513
          %v2850 = vadd.f32 %v2558, %v2722
          %v2851 = vadd.f32 %v2559, %v2723
          %v2852 = vadd.f32 %v2560, %v2724
          %v2853 = vadd.f32 %v2561, %v2725
          %v2854 = vadd.f32 %v2562, %v2726
          %v2855 = vadd.f32 %v2563, %v2727
          %v2856 = vadd.f32 %v2564, %v2728
          %v2857 = vadd.f32 %v2565, %v2729
          %v2858 = vadd.f32 %v2566, %v2730
          %v2859 = vadd.f32 %v2567, %v2731
          %v2860 = vadd.f32 %v2568, %v2732
          %v2861 = vadd.f32 %v2569, %v2733
          %v2862 = vadd.f32 %v2570, %v2734
          %v2863 = vadd.f32 %v2571, %v2735
          %v2864 = vadd.f32 %v2572, %v2736
          %v2865 = vadd.f32 %v2573, %v2737
          %v2866 = vadd.f32 %v2574, %v2738
          %v2867 = vadd.f32 %v2575, %v2739
          %v2868 = vadd.f32 %v2576, %v2740
          %v2869 = vadd.f32 %v2577, %v2741
          %v2870 = vadd.f32 %v2578, %v2742
          %v2871 = vadd.f32 %v2579, %v2743
          %v2872 = vadd.f32 %v2580, %v2744
          %v2873 = vadd.f32 %v2581, %v2745
          %v2874 = vadd.f32 %v2582, %v2746
          %v2875 = vadd.f32 %v2583, %v2747
          %v2876 = vadd.f32 %v2584, %v2748
          %v2877 = vadd.f32 %v2585, %v2749
          %v2878 = vadd.f32 %v2586, %v2750
          %v2879 = vadd.f32 %v2587, %v2751
          %v2880 = vadd.f32 %v2588, %v2752
          %v2881 = vadd.f32 %v2589, %v2753
          %v2882 = vadd.f32 %v2590, %v2754
          %v2883 = vadd.f32 %v2591, %v2755
          %v2884 = vadd.f32 %v2592, %v2756
          %v2885 = vadd.f32 %v2593, %v2757
          %v2886 = vadd.f32 %v2594, %v2758
          %v2887 = vadd.f32 %v2595, %v2759
          %v2888 = vadd.f32 %v2596, %v2760
          %v2889 = vadd.f32 %v2597, %v2761
          %v2890 = vadd.f32 %v2598, %v2762
          %v2891 = vadd.f32 %v2599, %v2763
          %v2892 = vadd.f32 %v2600, %v2764
          %v2893 = vadd.f32 %v2601, %v2765
          %v2894 = vadd.f32 %v2602, %v2766
          %v2895 = vadd.f32 %v2603, %v2767
          %v2896 = vadd.f32 %v2604, %v2768
          %v2897 = vadd.f32 %v2605, %v2769
          %v2898 = vadd.f32 %v2606, %v2770
          %v2899 = vadd.f32 %v2607, %v2771
          %v2900 = vadd.f32 %v2608, %v2772
          %v2901 = vadd.f32 %v2609, %v2773
          %v2902 = vadd.f32 %v2610, %v2774
          %v2903 = vadd.f32 %v2611, %v2775
          %v2904 = vadd.f32 %v2612, %v2776
          %v2905 = vadd.f32 %v2613, %v2777
          %v2906 = vadd.f32 %v2614, %v2778
          %v2907 = vadd.f32 %v2615, %v2779
          %v2908 = vadd.f32 %v2616, %v2780
          %v2909 = vadd.f32 %v2617, %v2781
          %v2910 = vadd.f32 %v2618, %v2782
          %v2911 = vadd.f32 %v2619, %v2783
          %v2912 = vadd.f32 %v2620, %v2784
          %v2913 = vadd.f32 %v2621, %v2785
          %v2914 = vadd.f32 %v2622, %v2786
          %v2915 = vadd.f32 %v2623, %v2787
          %v2916 = vadd.f32 %v2624, %v2788
          %v2917 = vadd.f32 %v2625, %v2789
          %v2918 = vadd.f32 %v2626, %v2790
          %v2919 = vadd.f32 %v2627, %v2791
          %v2920 = vadd.f32 %v2628, %v2792
          %v2921 = vadd.f32 %v2629, %v2793
          %v2922 = vadd.f32 %v2630, %v2794
          %v2923 = vadd.f32 %v2631, %v2795
          %v2924 = vadd.f32 %v2632, %v2796
          %v2925 = vadd.f32 %v2633, %v2797
          %v2926 = vadd.f32 %v2634, %v2798
          %v2927 = vadd.f32 %v2635, %v2799
          %v2928 = vadd.f32 %v2636, %v2800
          %v2929 = vadd.f32 %v2637, %v2801
          %v2930 = vadd.f32 %v2638, %v2802
          %v2931 = vadd.f32 %v2639, %v2803
          %v2932 = vadd.f32 %v2640, %v2804
          %v2933 = vadd.f32 %v2641, %v2805
          %v2934 = vadd.f32 %v2642, %v2806
          %v2935 = vadd.f32 %v2643, %v2807
          %v2936 = vadd.f32 %v2644, %v2808
          %v2937 = vadd.f32 %v2645, %v2809
          %v2938 = vadd.f32 %v2646, %v2810
          %v2939 = vadd.f32 %v2647, %v2811
          %v2940 = vadd.f32 %v2648, %v2812
          %v2941 = vadd.f32 %v2649, %v2813
          %v2942 = vadd.f32 %v2650, %v2814
          %v2943 = vadd.f32 %v2651, %v2815
          %v2944 = vadd.f32 %v2652, %v2816
          %v2945 = vadd.f32 %v2653, %v2817
          %v2946 = vadd.f32 %v2654, %v2818
          %v2947 = vadd.f32 %v2655, %v2819
          %v2948 = vadd.f32 %v2656, %v2820
          %v2949 = vadd.f32 %v2657, %v2821
          %v2950 = vadd.f32 %v2658, %v2822
          %v2951 = vadd.f32 %v2659, %v2823
          %v2952 = vadd.f32 %v2660, %v2824
          %v2953 = vadd.f32 %v2661, %v2825
          %v2954 = vadd.f32 %v2662, %v2826
          %v2955 = vadd.f32 %v2663, %v2827
          %v2956 = vadd.f32 %v2664, %v2828
          %v2957 = vadd.f32 %v2665, %v2829
          %v2958 = vadd.f32 %v2666, %v2830
          %v2959 = vadd.f32 %v2667, %v2831
          %v2960 = vadd.f32 %v2668, %v2832
          %v2961 = vadd.f32 %v2669, %v2833
          %v2962 = vadd.f32 %v2670, %v2834
          %v2963 = vadd.f32 %v2671, %v2835
          %v2964 = vadd.f32 %v2672, %v2836
          %v2965 = vadd.f32 %v2673, %v2837
          %v2966 = vadd.f32 %v2674, %v2838
          %v2967 = vadd.f32 %v2675, %v2839
          %v2968 = vadd.f32 %v2676, %v2840
          %v2969 = vadd.f32 %v2677, %v2841
          %v2970 = vadd.f32 %v2678, %v2842
          %v2971 = vadd.f32 %v2679, %v2843
          %v2972 = vadd.f32 %v2680, %v2844
          %v2973 = vadd.f32 %v2681, %v2845
          %v2974 = vadd.f32 %v2682, %v2846
          %v2975 = vadd.f32 %v2683, %v2847
          %v2976 = vadd.f32 %v2684, %v2848
          %v2977 = vadd.f32 %v2685, %v2849
          %v2978 = vlaneseq
          %v2979 = vshrl.u32 %v2978, 7
          %v2980 = vsub.s32 2, %v2979
          %v2981 = vrot.slane %v268, %v2980
          %v2982 = vlaneseq
          %v2983 = vshrl.u32 %v2982, 7
          %v2984 = vsub.s32 6, %v2983
          %v2985 = vrot.slane %v268, %v2984
          %v2986 = vlaneseq
          %v2987 = vshrl.u32 %v2986, 7
          %v2988 = vsub.s32 2, %v2987
          %v2989 = vrot.slane %v269, %v2988
          %v2990 = vlaneseq
          %v2991 = vshrl.u32 %v2990, 7
          %v2992 = vsub.s32 6, %v2991
          %v2993 = vrot.slane %v269, %v2992
          %v2994 = vlaneseq
          %v2995 = vshrl.u32 %v2994, 7
          %v2996 = vsub.s32 2, %v2995
          %v2997 = vrot.slane %v2981, %v2996
          %v2998 = vlaneseq
          %v2999 = vshrl.u32 %v2998, 7
          %v3000 = vsub.s32 2, %v2999
          %v3001 = vrot.slane %v2985, %v3000
          %v3002 = vlaneseq
          %v3003 = vshrl.u32 %v3002, 7
          %v3004 = vsub.s32 2, %v3003
          %v3005 = vrot.slane %v2989, %v3004
          %v3006 = vlaneseq
          %v3007 = vshrl.u32 %v3006, 7
          %v3008 = vsub.s32 2, %v3007
          %v3009 = vrot.slane %v2993, %v3008
          %vm3010 = vcmp.eq.s32.totalorder %v281, %v2997
          %vm3011 = vcmp.eq.s32.totalorder %v281, %v3001
          %vm3012 = vcmp.eq.s32.totalorder %v281, %v3005
          %vm3013 = vcmp.eq.s32.totalorder %v281, %v3009
          %vm3014 = vcmp.eq.s32.totalorder %v282, %v2997
          %vm3015 = vcmp.eq.s32.totalorder %v282, %v3001
          %vm3016 = vcmp.eq.s32.totalorder %v282, %v3005
          %vm3017 = vcmp.eq.s32.totalorder %v282, %v3009
          %vm3018 = vcmp.eq.s32.totalorder %v283, %v2997
          %vm3019 = vcmp.eq.s32.totalorder %v283, %v3001
          %vm3020 = vcmp.eq.s32.totalorder %v283, %v3005
          %vm3021 = vcmp.eq.s32.totalorder %v283, %v3009
          %vm3022 = vcmp.eq.s32.totalorder %v284, %v2997
          %vm3023 = vcmp.eq.s32.totalorder %v284, %v3001
          %vm3024 = vcmp.eq.s32.totalorder %v284, %v3005
          %vm3025 = vcmp.eq.s32.totalorder %v284, %v3009
          %vm3026 = vcmp.eq.s32.totalorder %v285, %v2997
          %vm3027 = vcmp.eq.s32.totalorder %v285, %v3001
          %vm3028 = vcmp.eq.s32.totalorder %v285, %v3005
          %vm3029 = vcmp.eq.s32.totalorder %v285, %v3009
          %vm3030 = vcmp.eq.s32.totalorder %v286, %v2997
          %vm3031 = vcmp.eq.s32.totalorder %v286, %v3001
          %vm3032 = vcmp.eq.s32.totalorder %v286, %v3005
          %vm3033 = vcmp.eq.s32.totalorder %v286, %v3009
          %vm3034 = vcmp.eq.s32.totalorder %v287, %v2997
          %vm3035 = vcmp.eq.s32.totalorder %v287, %v3001
          %vm3036 = vcmp.eq.s32.totalorder %v287, %v3005
          %vm3037 = vcmp.eq.s32.totalorder %v287, %v3009
          %vm3038 = vcmp.eq.s32.totalorder %v288, %v2997
          %vm3039 = vcmp.eq.s32.totalorder %v288, %v3001
          %vm3040 = vcmp.eq.s32.totalorder %v288, %v3005
          %vm3041 = vcmp.eq.s32.totalorder %v288, %v3009
          %vm3042 = vcmp.eq.s32.totalorder %v289, %v2997
          %vm3043 = vcmp.eq.s32.totalorder %v289, %v3001
          %vm3044 = vcmp.eq.s32.totalorder %v289, %v3005
          %vm3045 = vcmp.eq.s32.totalorder %v289, %v3009
          %vm3046 = vcmp.eq.s32.totalorder %v290, %v2997
          %vm3047 = vcmp.eq.s32.totalorder %v290, %v3001
          %vm3048 = vcmp.eq.s32.totalorder %v290, %v3005
          %vm3049 = vcmp.eq.s32.totalorder %v290, %v3009
          %vm3050 = vcmp.eq.s32.totalorder %v291, %v2997
          %vm3051 = vcmp.eq.s32.totalorder %v291, %v3001
          %vm3052 = vcmp.eq.s32.totalorder %v291, %v3005
          %vm3053 = vcmp.eq.s32.totalorder %v291, %v3009
          %vm3054 = vcmp.eq.s32.totalorder %v292, %v2997
          %vm3055 = vcmp.eq.s32.totalorder %v292, %v3001
          %vm3056 = vcmp.eq.s32.totalorder %v292, %v3005
          %vm3057 = vcmp.eq.s32.totalorder %v292, %v3009
          %vm3058 = vcmp.eq.s32.totalorder %v293, %v2997
          %vm3059 = vcmp.eq.s32.totalorder %v293, %v3001
          %vm3060 = vcmp.eq.s32.totalorder %v293, %v3005
          %vm3061 = vcmp.eq.s32.totalorder %v293, %v3009
          %vm3062 = vcmp.eq.s32.totalorder %v294, %v2997
          %vm3063 = vcmp.eq.s32.totalorder %v294, %v3001
          %vm3064 = vcmp.eq.s32.totalorder %v294, %v3005
          %vm3065 = vcmp.eq.s32.totalorder %v294, %v3009
          %vm3066 = vcmp.eq.s32.totalorder %v295, %v2997
          %vm3067 = vcmp.eq.s32.totalorder %v295, %v3001
          %vm3068 = vcmp.eq.s32.totalorder %v295, %v3005
          %vm3069 = vcmp.eq.s32.totalorder %v295, %v3009
          %vm3070 = vcmp.eq.s32.totalorder %v296, %v2997
          %vm3071 = vcmp.eq.s32.totalorder %v296, %v3001
          %vm3072 = vcmp.eq.s32.totalorder %v296, %v3005
          %vm3073 = vcmp.eq.s32.totalorder %v296, %v3009
          %vm3074 = vcmp.eq.s32.totalorder %v297, %v2997
          %vm3075 = vcmp.eq.s32.totalorder %v297, %v3001
          %vm3076 = vcmp.eq.s32.totalorder %v297, %v3005
          %vm3077 = vcmp.eq.s32.totalorder %v297, %v3009
          %vm3078 = vcmp.eq.s32.totalorder %v298, %v2997
          %vm3079 = vcmp.eq.s32.totalorder %v298, %v3001
          %vm3080 = vcmp.eq.s32.totalorder %v298, %v3005
          %vm3081 = vcmp.eq.s32.totalorder %v298, %v3009
          %vm3082 = vcmp.eq.s32.totalorder %v299, %v2997
          %vm3083 = vcmp.eq.s32.totalorder %v299, %v3001
          %vm3084 = vcmp.eq.s32.totalorder %v299, %v3005
          %vm3085 = vcmp.eq.s32.totalorder %v299, %v3009
          %vm3086 = vcmp.eq.s32.totalorder %v300, %v2997
          %vm3087 = vcmp.eq.s32.totalorder %v300, %v3001
          %vm3088 = vcmp.eq.s32.totalorder %v300, %v3005
          %vm3089 = vcmp.eq.s32.totalorder %v300, %v3009
          %vm3090 = vcmp.eq.s32.totalorder %v301, %v2997
          %vm3091 = vcmp.eq.s32.totalorder %v301, %v3001
          %vm3092 = vcmp.eq.s32.totalorder %v301, %v3005
          %vm3093 = vcmp.eq.s32.totalorder %v301, %v3009
          %vm3094 = vcmp.eq.s32.totalorder %v302, %v2997
          %vm3095 = vcmp.eq.s32.totalorder %v302, %v3001
          %vm3096 = vcmp.eq.s32.totalorder %v302, %v3005
          %vm3097 = vcmp.eq.s32.totalorder %v302, %v3009
          %vm3098 = vcmp.eq.s32.totalorder %v303, %v2997
          %vm3099 = vcmp.eq.s32.totalorder %v303, %v3001
          %vm3100 = vcmp.eq.s32.totalorder %v303, %v3005
          %vm3101 = vcmp.eq.s32.totalorder %v303, %v3009
          %vm3102 = vcmp.eq.s32.totalorder %v304, %v2997
          %vm3103 = vcmp.eq.s32.totalorder %v304, %v3001
          %vm3104 = vcmp.eq.s32.totalorder %v304, %v3005
          %vm3105 = vcmp.eq.s32.totalorder %v304, %v3009
          %vm3106 = vcmp.eq.s32.totalorder %v305, %v2997
          %vm3107 = vcmp.eq.s32.totalorder %v305, %v3001
          %vm3108 = vcmp.eq.s32.totalorder %v305, %v3005
          %vm3109 = vcmp.eq.s32.totalorder %v305, %v3009
          %vm3110 = vcmp.eq.s32.totalorder %v306, %v2997
          %vm3111 = vcmp.eq.s32.totalorder %v306, %v3001
          %vm3112 = vcmp.eq.s32.totalorder %v306, %v3005
          %vm3113 = vcmp.eq.s32.totalorder %v306, %v3009
          %vm3114 = vcmp.eq.s32.totalorder %v307, %v2997
          %vm3115 = vcmp.eq.s32.totalorder %v307, %v3001
          %vm3116 = vcmp.eq.s32.totalorder %v307, %v3005
          %vm3117 = vcmp.eq.s32.totalorder %v307, %v3009
          %vm3118 = vcmp.eq.s32.totalorder %v308, %v2997
          %vm3119 = vcmp.eq.s32.totalorder %v308, %v3001
          %vm3120 = vcmp.eq.s32.totalorder %v308, %v3005
          %vm3121 = vcmp.eq.s32.totalorder %v308, %v3009
          %vm3122 = vcmp.eq.s32.totalorder %v309, %v2997
          %vm3123 = vcmp.eq.s32.totalorder %v309, %v3001
          %vm3124 = vcmp.eq.s32.totalorder %v309, %v3005
          %vm3125 = vcmp.eq.s32.totalorder %v309, %v3009
          %vm3126 = vcmp.eq.s32.totalorder %v310, %v2997
          %vm3127 = vcmp.eq.s32.totalorder %v310, %v3001
          %vm3128 = vcmp.eq.s32.totalorder %v310, %v3005
          %vm3129 = vcmp.eq.s32.totalorder %v310, %v3009
          %vm3130 = vcmp.eq.s32.totalorder %v311, %v2997
          %vm3131 = vcmp.eq.s32.totalorder %v311, %v3001
          %vm3132 = vcmp.eq.s32.totalorder %v311, %v3005
          %vm3133 = vcmp.eq.s32.totalorder %v311, %v3009
          %vm3134 = vcmp.eq.s32.totalorder %v312, %v2997
          %vm3135 = vcmp.eq.s32.totalorder %v312, %v3001
          %vm3136 = vcmp.eq.s32.totalorder %v312, %v3005
          %vm3137 = vcmp.eq.s32.totalorder %v312, %v3009
          %v3138 = vlaneseq
          %v3139 = vshrl.u32 %v3138, 7
          %v3140 = vsub.s32 2, %v3139
          %v3141 = vrot.slane %v276, %v3140
          %v3142 = vlaneseq
          %v3143 = vshrl.u32 %v3142, 7
          %v3144 = vsub.s32 6, %v3143
          %v3145 = vrot.slane %v276, %v3144
          %v3146 = vlaneseq
          %v3147 = vshrl.u32 %v3146, 7
          %v3148 = vsub.s32 2, %v3147
          %v3149 = vrot.slane %v277, %v3148
          %v3150 = vlaneseq
          %v3151 = vshrl.u32 %v3150, 7
          %v3152 = vsub.s32 6, %v3151
          %v3153 = vrot.slane %v277, %v3152
          %v3158 = vlaneseq
          %v3159 = vshrl.u32 %v3158, 7
          %v3160 = vsub.s32 2, %v3159
          %v3161 = vrot.slane %v3141, %v3160
          %v3162 = vlaneseq
          %v3163 = vshrl.u32 %v3162, 7
          %v3164 = vsub.s32 2, %v3163
          %v3165 = vrot.slane %v3145, %v3164
          %v3166 = vlaneseq
          %v3167 = vshrl.u32 %v3166, 7
          %v3168 = vsub.s32 2, %v3167
          %v3169 = vrot.slane %v3149, %v3168
          %v3170 = vlaneseq
          %v3171 = vshrl.u32 %v3170, 7
          %v3172 = vsub.s32 2, %v3171
          %v3173 = vrot.slane %v3153, %v3172
          %v3174 = vsel %vm3010, %v3161, 0.0
          %v3175 = vsel %vm3011, %v3165, 0.0
          %v3176 = vsel %vm3012, %v3169, 0.0
          %v3177 = vsel %vm3013, %v3173, 0.0
          %v3178 = vsel %vm3014, %v3161, 0.0
          %v3179 = vsel %vm3015, %v3165, 0.0
          %v3180 = vsel %vm3016, %v3169, 0.0
          %v3181 = vsel %vm3017, %v3173, 0.0
          %v3182 = vsel %vm3018, %v3161, 0.0
          %v3183 = vsel %vm3019, %v3165, 0.0
          %v3184 = vsel %vm3020, %v3169, 0.0
          %v3185 = vsel %vm3021, %v3173, 0.0
          %v3186 = vsel %vm3022, %v3161, 0.0
          %v3187 = vsel %vm3023, %v3165, 0.0
          %v3188 = vsel %vm3024, %v3169, 0.0
          %v3189 = vsel %vm3025, %v3173, 0.0
          %v3190 = vsel %vm3026, %v3161, 0.0
          %v3191 = vsel %vm3027, %v3165, 0.0
          %v3192 = vsel %vm3028, %v3169, 0.0
          %v3193 = vsel %vm3029, %v3173, 0.0
          %v3194 = vsel %vm3030, %v3161, 0.0
          %v3195 = vsel %vm3031, %v3165, 0.0
          %v3196 = vsel %vm3032, %v3169, 0.0
          %v3197 = vsel %vm3033, %v3173, 0.0
          %v3198 = vsel %vm3034, %v3161, 0.0
          %v3199 = vsel %vm3035, %v3165, 0.0
          %v3200 = vsel %vm3036, %v3169, 0.0
          %v3201 = vsel %vm3037, %v3173, 0.0
          %v3202 = vsel %vm3038, %v3161, 0.0
          %v3203 = vsel %vm3039, %v3165, 0.0
          %v3204 = vsel %vm3040, %v3169, 0.0
          %v3205 = vsel %vm3041, %v3173, 0.0
          %v3206 = vsel %vm3042, %v3161, 0.0
          %v3207 = vsel %vm3043, %v3165, 0.0
          %v3208 = vsel %vm3044, %v3169, 0.0
          %v3209 = vsel %vm3045, %v3173, 0.0
          %v3210 = vsel %vm3046, %v3161, 0.0
          %v3211 = vsel %vm3047, %v3165, 0.0
          %v3212 = vsel %vm3048, %v3169, 0.0
          %v3213 = vsel %vm3049, %v3173, 0.0
          %v3214 = vsel %vm3050, %v3161, 0.0
          %v3215 = vsel %vm3051, %v3165, 0.0
          %v3216 = vsel %vm3052, %v3169, 0.0
          %v3217 = vsel %vm3053, %v3173, 0.0
          %v3218 = vsel %vm3054, %v3161, 0.0
          %v3219 = vsel %vm3055, %v3165, 0.0
          %v3220 = vsel %vm3056, %v3169, 0.0
          %v3221 = vsel %vm3057, %v3173, 0.0
          %v3222 = vsel %vm3058, %v3161, 0.0
          %v3223 = vsel %vm3059, %v3165, 0.0
          %v3224 = vsel %vm3060, %v3169, 0.0
          %v3225 = vsel %vm3061, %v3173, 0.0
          %v3226 = vsel %vm3062, %v3161, 0.0
          %v3227 = vsel %vm3063, %v3165, 0.0
          %v3228 = vsel %vm3064, %v3169, 0.0
          %v3229 = vsel %vm3065, %v3173, 0.0
          %v3230 = vsel %vm3066, %v3161, 0.0
          %v3231 = vsel %vm3067, %v3165, 0.0
          %v3232 = vsel %vm3068, %v3169, 0.0
          %v3233 = vsel %vm3069, %v3173, 0.0
          %v3234 = vsel %vm3070, %v3161, 0.0
          %v3235 = vsel %vm3071, %v3165, 0.0
          %v3236 = vsel %vm3072, %v3169, 0.0
          %v3237 = vsel %vm3073, %v3173, 0.0
          %v3238 = vsel %vm3074, %v3161, 0.0
          %v3239 = vsel %vm3075, %v3165, 0.0
          %v3240 = vsel %vm3076, %v3169, 0.0
          %v3241 = vsel %vm3077, %v3173, 0.0
          %v3242 = vsel %vm3078, %v3161, 0.0
          %v3243 = vsel %vm3079, %v3165, 0.0
          %v3244 = vsel %vm3080, %v3169, 0.0
          %v3245 = vsel %vm3081, %v3173, 0.0
          %v3246 = vsel %vm3082, %v3161, 0.0
          %v3247 = vsel %vm3083, %v3165, 0.0
          %v3248 = vsel %vm3084, %v3169, 0.0
          %v3249 = vsel %vm3085, %v3173, 0.0
          %v3250 = vsel %vm3086, %v3161, 0.0
          %v3251 = vsel %vm3087, %v3165, 0.0
          %v3252 = vsel %vm3088, %v3169, 0.0
          %v3253 = vsel %vm3089, %v3173, 0.0
          %v3254 = vsel %vm3090, %v3161, 0.0
          %v3255 = vsel %vm3091, %v3165, 0.0
          %v3256 = vsel %vm3092, %v3169, 0.0
          %v3257 = vsel %vm3093, %v3173, 0.0
          %v3258 = vsel %vm3094, %v3161, 0.0
          %v3259 = vsel %vm3095, %v3165, 0.0
          %v3260 = vsel %vm3096, %v3169, 0.0
          %v3261 = vsel %vm3097, %v3173, 0.0
          %v3262 = vsel %vm3098, %v3161, 0.0
          %v3263 = vsel %vm3099, %v3165, 0.0
          %v3264 = vsel %vm3100, %v3169, 0.0
          %v3265 = vsel %vm3101, %v3173, 0.0
          %v3266 = vsel %vm3102, %v3161, 0.0
          %v3267 = vsel %vm3103, %v3165, 0.0
          %v3268 = vsel %vm3104, %v3169, 0.0
          %v3269 = vsel %vm3105, %v3173, 0.0
          %v3270 = vsel %vm3106, %v3161, 0.0
          %v3271 = vsel %vm3107, %v3165, 0.0
          %v3272 = vsel %vm3108, %v3169, 0.0
          %v3273 = vsel %vm3109, %v3173, 0.0
          %v3274 = vsel %vm3110, %v3161, 0.0
          %v3275 = vsel %vm3111, %v3165, 0.0
          %v3276 = vsel %vm3112, %v3169, 0.0
          %v3277 = vsel %vm3113, %v3173, 0.0
          %v3278 = vsel %vm3114, %v3161, 0.0
          %v3279 = vsel %vm3115, %v3165, 0.0
          %v3280 = vsel %vm3116, %v3169, 0.0
          %v3281 = vsel %vm3117, %v3173, 0.0
          %v3282 = vsel %vm3118, %v3161, 0.0
          %v3283 = vsel %vm3119, %v3165, 0.0
          %v3284 = vsel %vm3120, %v3169, 0.0
          %v3285 = vsel %vm3121, %v3173, 0.0
          %v3286 = vsel %vm3122, %v3161, 0.0
          %v3287 = vsel %vm3123, %v3165, 0.0
          %v3288 = vsel %vm3124, %v3169, 0.0
          %v3289 = vsel %vm3125, %v3173, 0.0
          %v3290 = vsel %vm3126, %v3161, 0.0
          %v3291 = vsel %vm3127, %v3165, 0.0
          %v3292 = vsel %vm3128, %v3169, 0.0
          %v3293 = vsel %vm3129, %v3173, 0.0
          %v3294 = vsel %vm3130, %v3161, 0.0
          %v3295 = vsel %vm3131, %v3165, 0.0
          %v3296 = vsel %vm3132, %v3169, 0.0
          %v3297 = vsel %vm3133, %v3173, 0.0
          %v3298 = vsel %vm3134, %v3161, 0.0
          %v3299 = vsel %vm3135, %v3165, 0.0
          %v3300 = vsel %vm3136, %v3169, 0.0
          %v3301 = vsel %vm3137, %v3173, 0.0
          %v3302 = vlaneseq
          %v3303 = vshrl.u32 %v3302, 7
          %v3304 = vsub.s32 2, %v3303
          %v3305 = vrot.slane %v272, %v3304
          %v3306 = vlaneseq
          %v3307 = vshrl.u32 %v3306, 7
          %v3308 = vsub.s32 6, %v3307
          %v3309 = vrot.slane %v272, %v3308
          %v3310 = vlaneseq
          %v3311 = vshrl.u32 %v3310, 7
          %v3312 = vsub.s32 2, %v3311
          %v3313 = vrot.slane %v273, %v3312
          %v3314 = vlaneseq
          %v3315 = vshrl.u32 %v3314, 7
          %v3316 = vsub.s32 6, %v3315
          %v3317 = vrot.slane %v273, %v3316
          %v3322 = vlaneseq
          %v3323 = vshrl.u32 %v3322, 7
          %v3324 = vsub.s32 2, %v3323
          %v3325 = vrot.slane %v3305, %v3324
          %v3326 = vlaneseq
          %v3327 = vshrl.u32 %v3326, 7
          %v3328 = vsub.s32 2, %v3327
          %v3329 = vrot.slane %v3309, %v3328
          %v3330 = vlaneseq
          %v3331 = vshrl.u32 %v3330, 7
          %v3332 = vsub.s32 2, %v3331
          %v3333 = vrot.slane %v3313, %v3332
          %v3334 = vlaneseq
          %v3335 = vshrl.u32 %v3334, 7
          %v3336 = vsub.s32 2, %v3335
          %v3337 = vrot.slane %v3317, %v3336
          %v3338 = vsel %vm3010, %v3325, 0.0
          %v3339 = vsel %vm3011, %v3329, 0.0
          %v3340 = vsel %vm3012, %v3333, 0.0
          %v3341 = vsel %vm3013, %v3337, 0.0
          %v3342 = vsel %vm3014, %v3325, 0.0
          %v3343 = vsel %vm3015, %v3329, 0.0
          %v3344 = vsel %vm3016, %v3333, 0.0
          %v3345 = vsel %vm3017, %v3337, 0.0
          %v3346 = vsel %vm3018, %v3325, 0.0
          %v3347 = vsel %vm3019, %v3329, 0.0
          %v3348 = vsel %vm3020, %v3333, 0.0
          %v3349 = vsel %vm3021, %v3337, 0.0
          %v3350 = vsel %vm3022, %v3325, 0.0
          %v3351 = vsel %vm3023, %v3329, 0.0
          %v3352 = vsel %vm3024, %v3333, 0.0
          %v3353 = vsel %vm3025, %v3337, 0.0
          %v3354 = vsel %vm3026, %v3325, 0.0
          %v3355 = vsel %vm3027, %v3329, 0.0
          %v3356 = vsel %vm3028, %v3333, 0.0
          %v3357 = vsel %vm3029, %v3337, 0.0
          %v3358 = vsel %vm3030, %v3325, 0.0
          %v3359 = vsel %vm3031, %v3329, 0.0
          %v3360 = vsel %vm3032, %v3333, 0.0
          %v3361 = vsel %vm3033, %v3337, 0.0
          %v3362 = vsel %vm3034, %v3325, 0.0
          %v3363 = vsel %vm3035, %v3329, 0.0
          %v3364 = vsel %vm3036, %v3333, 0.0
          %v3365 = vsel %vm3037, %v3337, 0.0
          %v3366 = vsel %vm3038, %v3325, 0.0
          %v3367 = vsel %vm3039, %v3329, 0.0
          %v3368 = vsel %vm3040, %v3333, 0.0
          %v3369 = vsel %vm3041, %v3337, 0.0
          %v3370 = vsel %vm3042, %v3325, 0.0
          %v3371 = vsel %vm3043, %v3329, 0.0
          %v3372 = vsel %vm3044, %v3333, 0.0
          %v3373 = vsel %vm3045, %v3337, 0.0
          %v3374 = vsel %vm3046, %v3325, 0.0
          %v3375 = vsel %vm3047, %v3329, 0.0
          %v3376 = vsel %vm3048, %v3333, 0.0
          %v3377 = vsel %vm3049, %v3337, 0.0
          %v3378 = vsel %vm3050, %v3325, 0.0
          %v3379 = vsel %vm3051, %v3329, 0.0
          %v3380 = vsel %vm3052, %v3333, 0.0
          %v3381 = vsel %vm3053, %v3337, 0.0
          %v3382 = vsel %vm3054, %v3325, 0.0
          %v3383 = vsel %vm3055, %v3329, 0.0
          %v3384 = vsel %vm3056, %v3333, 0.0
          %v3385 = vsel %vm3057, %v3337, 0.0
          %v3386 = vsel %vm3058, %v3325, 0.0
          %v3387 = vsel %vm3059, %v3329, 0.0
          %v3388 = vsel %vm3060, %v3333, 0.0
          %v3389 = vsel %vm3061, %v3337, 0.0
          %v3390 = vsel %vm3062, %v3325, 0.0
          %v3391 = vsel %vm3063, %v3329, 0.0
          %v3392 = vsel %vm3064, %v3333, 0.0
          %v3393 = vsel %vm3065, %v3337, 0.0
          %v3394 = vsel %vm3066, %v3325, 0.0
          %v3395 = vsel %vm3067, %v3329, 0.0
          %v3396 = vsel %vm3068, %v3333, 0.0
          %v3397 = vsel %vm3069, %v3337, 0.0
          %v3398 = vsel %vm3070, %v3325, 0.0
          %v3399 = vsel %vm3071, %v3329, 0.0
          %v3400 = vsel %vm3072, %v3333, 0.0
          %v3401 = vsel %vm3073, %v3337, 0.0
          %v3402 = vsel %vm3074, %v3325, 0.0
          %v3403 = vsel %vm3075, %v3329, 0.0
          %v3404 = vsel %vm3076, %v3333, 0.0
          %v3405 = vsel %vm3077, %v3337, 0.0
          %v3406 = vsel %vm3078, %v3325, 0.0
          %v3407 = vsel %vm3079, %v3329, 0.0
          %v3408 = vsel %vm3080, %v3333, 0.0
          %v3409 = vsel %vm3081, %v3337, 0.0
          %v3410 = vsel %vm3082, %v3325, 0.0
          %v3411 = vsel %vm3083, %v3329, 0.0
          %v3412 = vsel %vm3084, %v3333, 0.0
          %v3413 = vsel %vm3085, %v3337, 0.0
          %v3414 = vsel %vm3086, %v3325, 0.0
          %v3415 = vsel %vm3087, %v3329, 0.0
          %v3416 = vsel %vm3088, %v3333, 0.0
          %v3417 = vsel %vm3089, %v3337, 0.0
          %v3418 = vsel %vm3090, %v3325, 0.0
          %v3419 = vsel %vm3091, %v3329, 0.0
          %v3420 = vsel %vm3092, %v3333, 0.0
          %v3421 = vsel %vm3093, %v3337, 0.0
          %v3422 = vsel %vm3094, %v3325, 0.0
          %v3423 = vsel %vm3095, %v3329, 0.0
          %v3424 = vsel %vm3096, %v3333, 0.0
          %v3425 = vsel %vm3097, %v3337, 0.0
          %v3426 = vsel %vm3098, %v3325, 0.0
          %v3427 = vsel %vm3099, %v3329, 0.0
          %v3428 = vsel %vm3100, %v3333, 0.0
          %v3429 = vsel %vm3101, %v3337, 0.0
          %v3430 = vsel %vm3102, %v3325, 0.0
          %v3431 = vsel %vm3103, %v3329, 0.0
          %v3432 = vsel %vm3104, %v3333, 0.0
          %v3433 = vsel %vm3105, %v3337, 0.0
          %v3434 = vsel %vm3106, %v3325, 0.0
          %v3435 = vsel %vm3107, %v3329, 0.0
          %v3436 = vsel %vm3108, %v3333, 0.0
          %v3437 = vsel %vm3109, %v3337, 0.0
          %v3438 = vsel %vm3110, %v3325, 0.0
          %v3439 = vsel %vm3111, %v3329, 0.0
          %v3440 = vsel %vm3112, %v3333, 0.0
          %v3441 = vsel %vm3113, %v3337, 0.0
          %v3442 = vsel %vm3114, %v3325, 0.0
          %v3443 = vsel %vm3115, %v3329, 0.0
          %v3444 = vsel %vm3116, %v3333, 0.0
          %v3445 = vsel %vm3117, %v3337, 0.0
          %v3446 = vsel %vm3118, %v3325, 0.0
          %v3447 = vsel %vm3119, %v3329, 0.0
          %v3448 = vsel %vm3120, %v3333, 0.0
          %v3449 = vsel %vm3121, %v3337, 0.0
          %v3450 = vsel %vm3122, %v3325, 0.0
          %v3451 = vsel %vm3123, %v3329, 0.0
          %v3452 = vsel %vm3124, %v3333, 0.0
          %v3453 = vsel %vm3125, %v3337, 0.0
          %v3454 = vsel %vm3126, %v3325, 0.0
          %v3455 = vsel %vm3127, %v3329, 0.0
          %v3456 = vsel %vm3128, %v3333, 0.0
          %v3457 = vsel %vm3129, %v3337, 0.0
          %v3458 = vsel %vm3130, %v3325, 0.0
          %v3459 = vsel %vm3131, %v3329, 0.0
          %v3460 = vsel %vm3132, %v3333, 0.0
          %v3461 = vsel %vm3133, %v3337, 0.0
          %v3462 = vsel %vm3134, %v3325, 0.0
          %v3463 = vsel %vm3135, %v3329, 0.0
          %v3464 = vsel %vm3136, %v3333, 0.0
          %v3465 = vsel %vm3137, %v3337, 0.0
          %v3466 = vrot.slane %v3338, 7
          %v3467 = vrot.slane %v3339, 7
          %v3468 = vrot.slane %v3340, 7
          %v3469 = vrot.slane %v3341, 7
          %v3470 = vrot.slane %v3342, 7
          %v3471 = vrot.slane %v3343, 7
          %v3472 = vrot.slane %v3344, 7
          %v3473 = vrot.slane %v3345, 7
          %v3474 = vrot.slane %v3346, 7
          %v3475 = vrot.slane %v3347, 7
          %v3476 = vrot.slane %v3348, 7
          %v3477 = vrot.slane %v3349, 7
          %v3478 = vrot.slane %v3350, 7
          %v3479 = vrot.slane %v3351, 7
          %v3480 = vrot.slane %v3352, 7
          %v3481 = vrot.slane %v3353, 7
          %v3482 = vrot.slane %v3354, 7
          %v3483 = vrot.slane %v3355, 7
          %v3484 = vrot.slane %v3356, 7
          %v3485 = vrot.slane %v3357, 7
          %v3486 = vrot.slane %v3358, 7
          %v3487 = vrot.slane %v3359, 7
          %v3488 = vrot.slane %v3360, 7
          %v3489 = vrot.slane %v3361, 7
          %v3490 = vrot.slane %v3362, 7
          %v3491 = vrot.slane %v3363, 7
          %v3492 = vrot.slane %v3364, 7
          %v3493 = vrot.slane %v3365, 7
          %v3494 = vrot.slane %v3366, 7
          %v3495 = vrot.slane %v3367, 7
          %v3496 = vrot.slane %v3368, 7
          %v3497 = vrot.slane %v3369, 7
          %v3498 = vrot.slane %v3370, 7
          %v3499 = vrot.slane %v3371, 7
          %v3500 = vrot.slane %v3372, 7
          %v3501 = vrot.slane %v3373, 7
          %v3502 = vrot.slane %v3374, 7
          %v3503 = vrot.slane %v3375, 7
          %v3504 = vrot.slane %v3376, 7
          %v3505 = vrot.slane %v3377, 7
          %v3506 = vrot.slane %v3378, 7
          %v3507 = vrot.slane %v3379, 7
          %v3508 = vrot.slane %v3380, 7
          %v3509 = vrot.slane %v3381, 7
          %v3510 = vrot.slane %v3382, 7
          %v3511 = vrot.slane %v3383, 7
          %v3512 = vrot.slane %v3384, 7
          %v3513 = vrot.slane %v3385, 7
          %v3514 = vrot.slane %v3386, 7
          %v3515 = vrot.slane %v3387, 7
          %v3516 = vrot.slane %v3388, 7
          %v3517 = vrot.slane %v3389, 7
          %v3518 = vrot.slane %v3390, 7
          %v3519 = vrot.slane %v3391, 7
          %v3520 = vrot.slane %v3392, 7
          %v3521 = vrot.slane %v3393, 7
          %v3522 = vrot.slane %v3394, 7
          %v3523 = vrot.slane %v3395, 7
          %v3524 = vrot.slane %v3396, 7
          %v3525 = vrot.slane %v3397, 7
          %v3526 = vrot.slane %v3398, 7
          %v3527 = vrot.slane %v3399, 7
          %v3528 = vrot.slane %v3400, 7
          %v3529 = vrot.slane %v3401, 7
          %v3530 = vrot.slane %v3402, 7
          %v3531 = vrot.slane %v3403, 7
          %v3532 = vrot.slane %v3404, 7
          %v3533 = vrot.slane %v3405, 7
          %v3534 = vrot.slane %v3406, 7
          %v3535 = vrot.slane %v3407, 7
          %v3536 = vrot.slane %v3408, 7
          %v3537 = vrot.slane %v3409, 7
          %v3538 = vrot.slane %v3410, 7
          %v3539 = vrot.slane %v3411, 7
          %v3540 = vrot.slane %v3412, 7
          %v3541 = vrot.slane %v3413, 7
          %v3542 = vrot.slane %v3414, 7
          %v3543 = vrot.slane %v3415, 7
          %v3544 = vrot.slane %v3416, 7
          %v3545 = vrot.slane %v3417, 7
          %v3546 = vrot.slane %v3418, 7
          %v3547 = vrot.slane %v3419, 7
          %v3548 = vrot.slane %v3420, 7
          %v3549 = vrot.slane %v3421, 7
          %v3550 = vrot.slane %v3422, 7
          %v3551 = vrot.slane %v3423, 7
          %v3552 = vrot.slane %v3424, 7
          %v3553 = vrot.slane %v3425, 7
          %v3554 = vrot.slane %v3426, 7
          %v3555 = vrot.slane %v3427, 7
          %v3556 = vrot.slane %v3428, 7
          %v3557 = vrot.slane %v3429, 7
          %v3558 = vrot.slane %v3430, 7
          %v3559 = vrot.slane %v3431, 7
          %v3560 = vrot.slane %v3432, 7
          %v3561 = vrot.slane %v3433, 7
          %v3562 = vrot.slane %v3434, 7
          %v3563 = vrot.slane %v3435, 7
          %v3564 = vrot.slane %v3436, 7
          %v3565 = vrot.slane %v3437, 7
          %v3566 = vrot.slane %v3438, 7
          %v3567 = vrot.slane %v3439, 7
          %v3568 = vrot.slane %v3440, 7
          %v3569 = vrot.slane %v3441, 7
          %v3570 = vrot.slane %v3442, 7
          %v3571 = vrot.slane %v3443, 7
          %v3572 = vrot.slane %v3444, 7
          %v3573 = vrot.slane %v3445, 7
          %v3574 = vrot.slane %v3446, 7
          %v3575 = vrot.slane %v3447, 7
          %v3576 = vrot.slane %v3448, 7
          %v3577 = vrot.slane %v3449, 7
          %v3578 = vrot.slane %v3450, 7
          %v3579 = vrot.slane %v3451, 7
          %v3580 = vrot.slane %v3452, 7
          %v3581 = vrot.slane %v3453, 7
          %v3582 = vrot.slane %v3454, 7
          %v3583 = vrot.slane %v3455, 7
          %v3584 = vrot.slane %v3456, 7
          %v3585 = vrot.slane %v3457, 7
          %v3586 = vrot.slane %v3458, 7
          %v3587 = vrot.slane %v3459, 7
          %v3588 = vrot.slane %v3460, 7
          %v3589 = vrot.slane %v3461, 7
          %v3590 = vrot.slane %v3462, 7
          %v3591 = vrot.slane %v3463, 7
          %v3592 = vrot.slane %v3464, 7
          %v3593 = vrot.slane %v3465, 7
          %v3594 = vsel %vm933, %v3586, %v3590
          %v3595 = vsel %vm933, %v3587, %v3591
          %v3596 = vsel %vm933, %v3588, %v3592
          %v3597 = vsel %vm933, %v3589, %v3593
          %v3598 = vsel %vm933, %v3582, %v3586
          %v3599 = vsel %vm933, %v3583, %v3587
          %v3600 = vsel %vm933, %v3584, %v3588
          %v3601 = vsel %vm933, %v3585, %v3589
          %v3602 = vsel %vm933, %v3578, %v3582
          %v3603 = vsel %vm933, %v3579, %v3583
          %v3604 = vsel %vm933, %v3580, %v3584
          %v3605 = vsel %vm933, %v3581, %v3585
          %v3606 = vsel %vm933, %v3574, %v3578
          %v3607 = vsel %vm933, %v3575, %v3579
          %v3608 = vsel %vm933, %v3576, %v3580
          %v3609 = vsel %vm933, %v3577, %v3581
          %v3610 = vsel %vm933, %v3570, %v3574
          %v3611 = vsel %vm933, %v3571, %v3575
          %v3612 = vsel %vm933, %v3572, %v3576
          %v3613 = vsel %vm933, %v3573, %v3577
          %v3614 = vsel %vm933, %v3566, %v3570
          %v3615 = vsel %vm933, %v3567, %v3571
          %v3616 = vsel %vm933, %v3568, %v3572
          %v3617 = vsel %vm933, %v3569, %v3573
          %v3618 = vsel %vm933, %v3562, %v3566
          %v3619 = vsel %vm933, %v3563, %v3567
          %v3620 = vsel %vm933, %v3564, %v3568
          %v3621 = vsel %vm933, %v3565, %v3569
          %v3622 = vsel %vm933, %v3558, %v3562
          %v3623 = vsel %vm933, %v3559, %v3563
          %v3624 = vsel %vm933, %v3560, %v3564
          %v3625 = vsel %vm933, %v3561, %v3565
          %v3626 = vsel %vm933, %v3554, %v3558
          %v3627 = vsel %vm933, %v3555, %v3559
          %v3628 = vsel %vm933, %v3556, %v3560
          %v3629 = vsel %vm933, %v3557, %v3561
          %v3630 = vsel %vm933, %v3550, %v3554
          %v3631 = vsel %vm933, %v3551, %v3555
          %v3632 = vsel %vm933, %v3552, %v3556
          %v3633 = vsel %vm933, %v3553, %v3557
          %v3634 = vsel %vm933, %v3546, %v3550
          %v3635 = vsel %vm933, %v3547, %v3551
          %v3636 = vsel %vm933, %v3548, %v3552
          %v3637 = vsel %vm933, %v3549, %v3553
          %v3638 = vsel %vm933, %v3542, %v3546
          %v3639 = vsel %vm933, %v3543, %v3547
          %v3640 = vsel %vm933, %v3544, %v3548
          %v3641 = vsel %vm933, %v3545, %v3549
          %v3642 = vsel %vm933, %v3538, %v3542
          %v3643 = vsel %vm933, %v3539, %v3543
          %v3644 = vsel %vm933, %v3540, %v3544
          %v3645 = vsel %vm933, %v3541, %v3545
          %v3646 = vsel %vm933, %v3534, %v3538
          %v3647 = vsel %vm933, %v3535, %v3539
          %v3648 = vsel %vm933, %v3536, %v3540
          %v3649 = vsel %vm933, %v3537, %v3541
          %v3650 = vsel %vm933, %v3530, %v3534
          %v3651 = vsel %vm933, %v3531, %v3535
          %v3652 = vsel %vm933, %v3532, %v3536
          %v3653 = vsel %vm933, %v3533, %v3537
          %v3654 = vsel %vm933, %v3526, %v3530
          %v3655 = vsel %vm933, %v3527, %v3531
          %v3656 = vsel %vm933, %v3528, %v3532
          %v3657 = vsel %vm933, %v3529, %v3533
          %v3658 = vsel %vm933, %v3522, %v3526
          %v3659 = vsel %vm933, %v3523, %v3527
          %v3660 = vsel %vm933, %v3524, %v3528
          %v3661 = vsel %vm933, %v3525, %v3529
          %v3662 = vsel %vm933, %v3518, %v3522
          %v3663 = vsel %vm933, %v3519, %v3523
          %v3664 = vsel %vm933, %v3520, %v3524
          %v3665 = vsel %vm933, %v3521, %v3525
          %v3666 = vsel %vm933, %v3514, %v3518
          %v3667 = vsel %vm933, %v3515, %v3519
          %v3668 = vsel %vm933, %v3516, %v3520
          %v3669 = vsel %vm933, %v3517, %v3521
          %v3670 = vsel %vm933, %v3510, %v3514
          %v3671 = vsel %vm933, %v3511, %v3515
          %v3672 = vsel %vm933, %v3512, %v3516
          %v3673 = vsel %vm933, %v3513, %v3517
          %v3674 = vsel %vm933, %v3506, %v3510
          %v3675 = vsel %vm933, %v3507, %v3511
          %v3676 = vsel %vm933, %v3508, %v3512
          %v3677 = vsel %vm933, %v3509, %v3513
          %v3678 = vsel %vm933, %v3502, %v3506
          %v3679 = vsel %vm933, %v3503, %v3507
          %v3680 = vsel %vm933, %v3504, %v3508
          %v3681 = vsel %vm933, %v3505, %v3509
          %v3682 = vsel %vm933, %v3498, %v3502
          %v3683 = vsel %vm933, %v3499, %v3503
          %v3684 = vsel %vm933, %v3500, %v3504
          %v3685 = vsel %vm933, %v3501, %v3505
          %v3686 = vsel %vm933, %v3494, %v3498
          %v3687 = vsel %vm933, %v3495, %v3499
          %v3688 = vsel %vm933, %v3496, %v3500
          %v3689 = vsel %vm933, %v3497, %v3501
          %v3690 = vsel %vm933, %v3490, %v3494
          %v3691 = vsel %vm933, %v3491, %v3495
          %v3692 = vsel %vm933, %v3492, %v3496
          %v3693 = vsel %vm933, %v3493, %v3497
          %v3694 = vsel %vm933, %v3486, %v3490
          %v3695 = vsel %vm933, %v3487, %v3491
          %v3696 = vsel %vm933, %v3488, %v3492
          %v3697 = vsel %vm933, %v3489, %v3493
          %v3698 = vsel %vm933, %v3482, %v3486
          %v3699 = vsel %vm933, %v3483, %v3487
          %v3700 = vsel %vm933, %v3484, %v3488
          %v3701 = vsel %vm933, %v3485, %v3489
          %v3702 = vsel %vm933, %v3478, %v3482
          %v3703 = vsel %vm933, %v3479, %v3483
          %v3704 = vsel %vm933, %v3480, %v3484
          %v3705 = vsel %vm933, %v3481, %v3485
          %v3706 = vsel %vm933, %v3474, %v3478
          %v3707 = vsel %vm933, %v3475, %v3479
          %v3708 = vsel %vm933, %v3476, %v3480
          %v3709 = vsel %vm933, %v3477, %v3481
          %v3710 = vsel %vm933, %v3470, %v3474
          %v3711 = vsel %vm933, %v3471, %v3475
          %v3712 = vsel %vm933, %v3472, %v3476
          %v3713 = vsel %vm933, %v3473, %v3477
          %v3714 = vsel %vm933, %v3466, %v3470
          %v3715 = vsel %vm933, %v3467, %v3471
          %v3716 = vsel %vm933, %v3468, %v3472
          %v3717 = vsel %vm933, %v3469, %v3473
          %v3718 = vsel %vm933, %v3590, %v3466
          %v3719 = vsel %vm933, %v3591, %v3467
          %v3720 = vsel %vm933, %v3592, %v3468
          %v3721 = vsel %vm933, %v3593, %v3469
          %v3722 = vadd.f32 %v3174, %v3718
          %v3723 = vadd.f32 %v3175, %v3719
          %v3724 = vadd.f32 %v3176, %v3720
          %v3725 = vadd.f32 %v3177, %v3721
          %v3726 = vadd.f32 %v3178, %v3714
          %v3727 = vadd.f32 %v3179, %v3715
          %v3728 = vadd.f32 %v3180, %v3716
          %v3729 = vadd.f32 %v3181, %v3717
          %v3730 = vadd.f32 %v3182, %v3710
          %v3731 = vadd.f32 %v3183, %v3711
          %v3732 = vadd.f32 %v3184, %v3712
          %v3733 = vadd.f32 %v3185, %v3713
          %v3734 = vadd.f32 %v3186, %v3706
          %v3735 = vadd.f32 %v3187, %v3707
          %v3736 = vadd.f32 %v3188, %v3708
          %v3737 = vadd.f32 %v3189, %v3709
          %v3738 = vadd.f32 %v3190, %v3702
          %v3739 = vadd.f32 %v3191, %v3703
          %v3740 = vadd.f32 %v3192, %v3704
          %v3741 = vadd.f32 %v3193, %v3705
          %v3742 = vadd.f32 %v3194, %v3698
          %v3743 = vadd.f32 %v3195, %v3699
          %v3744 = vadd.f32 %v3196, %v3700
          %v3745 = vadd.f32 %v3197, %v3701
          %v3746 = vadd.f32 %v3198, %v3694
          %v3747 = vadd.f32 %v3199, %v3695
          %v3748 = vadd.f32 %v3200, %v3696
          %v3749 = vadd.f32 %v3201, %v3697
          %v3750 = vadd.f32 %v3202, %v3690
          %v3751 = vadd.f32 %v3203, %v3691
          %v3752 = vadd.f32 %v3204, %v3692
          %v3753 = vadd.f32 %v3205, %v3693
          %v3754 = vadd.f32 %v3206, %v3686
          %v3755 = vadd.f32 %v3207, %v3687
          %v3756 = vadd.f32 %v3208, %v3688
          %v3757 = vadd.f32 %v3209, %v3689
          %v3758 = vadd.f32 %v3210, %v3682
          %v3759 = vadd.f32 %v3211, %v3683
          %v3760 = vadd.f32 %v3212, %v3684
          %v3761 = vadd.f32 %v3213, %v3685
          %v3762 = vadd.f32 %v3214, %v3678
          %v3763 = vadd.f32 %v3215, %v3679
          %v3764 = vadd.f32 %v3216, %v3680
          %v3765 = vadd.f32 %v3217, %v3681
          %v3766 = vadd.f32 %v3218, %v3674
          %v3767 = vadd.f32 %v3219, %v3675
          %v3768 = vadd.f32 %v3220, %v3676
          %v3769 = vadd.f32 %v3221, %v3677
          %v3770 = vadd.f32 %v3222, %v3670
          %v3771 = vadd.f32 %v3223, %v3671
          %v3772 = vadd.f32 %v3224, %v3672
          %v3773 = vadd.f32 %v3225, %v3673
          %v3774 = vadd.f32 %v3226, %v3666
          %v3775 = vadd.f32 %v3227, %v3667
          %v3776 = vadd.f32 %v3228, %v3668
          %v3777 = vadd.f32 %v3229, %v3669
          %v3778 = vadd.f32 %v3230, %v3662
          %v3779 = vadd.f32 %v3231, %v3663
          %v3780 = vadd.f32 %v3232, %v3664
          %v3781 = vadd.f32 %v3233, %v3665
          %v3782 = vadd.f32 %v3234, %v3658
          %v3783 = vadd.f32 %v3235, %v3659
          %v3784 = vadd.f32 %v3236, %v3660
          %v3785 = vadd.f32 %v3237, %v3661
          %v3786 = vadd.f32 %v3238, %v3654
          %v3787 = vadd.f32 %v3239, %v3655
          %v3788 = vadd.f32 %v3240, %v3656
          %v3789 = vadd.f32 %v3241, %v3657
          %v3790 = vadd.f32 %v3242, %v3650
          %v3791 = vadd.f32 %v3243, %v3651
          %v3792 = vadd.f32 %v3244, %v3652
          %v3793 = vadd.f32 %v3245, %v3653
          %v3794 = vadd.f32 %v3246, %v3646
          %v3795 = vadd.f32 %v3247, %v3647
          %v3796 = vadd.f32 %v3248, %v3648
          %v3797 = vadd.f32 %v3249, %v3649
          %v3798 = vadd.f32 %v3250, %v3642
          %v3799 = vadd.f32 %v3251, %v3643
          %v3800 = vadd.f32 %v3252, %v3644
          %v3801 = vadd.f32 %v3253, %v3645
          %v3802 = vadd.f32 %v3254, %v3638
          %v3803 = vadd.f32 %v3255, %v3639
          %v3804 = vadd.f32 %v3256, %v3640
          %v3805 = vadd.f32 %v3257, %v3641
          %v3806 = vadd.f32 %v3258, %v3634
          %v3807 = vadd.f32 %v3259, %v3635
          %v3808 = vadd.f32 %v3260, %v3636
          %v3809 = vadd.f32 %v3261, %v3637
          %v3810 = vadd.f32 %v3262, %v3630
          %v3811 = vadd.f32 %v3263, %v3631
          %v3812 = vadd.f32 %v3264, %v3632
          %v3813 = vadd.f32 %v3265, %v3633
          %v3814 = vadd.f32 %v3266, %v3626
          %v3815 = vadd.f32 %v3267, %v3627
          %v3816 = vadd.f32 %v3268, %v3628
          %v3817 = vadd.f32 %v3269, %v3629
          %v3818 = vadd.f32 %v3270, %v3622
          %v3819 = vadd.f32 %v3271, %v3623
          %v3820 = vadd.f32 %v3272, %v3624
          %v3821 = vadd.f32 %v3273, %v3625
          %v3822 = vadd.f32 %v3274, %v3618
          %v3823 = vadd.f32 %v3275, %v3619
          %v3824 = vadd.f32 %v3276, %v3620
          %v3825 = vadd.f32 %v3277, %v3621
          %v3826 = vadd.f32 %v3278, %v3614
          %v3827 = vadd.f32 %v3279, %v3615
          %v3828 = vadd.f32 %v3280, %v3616
          %v3829 = vadd.f32 %v3281, %v3617
          %v3830 = vadd.f32 %v3282, %v3610
          %v3831 = vadd.f32 %v3283, %v3611
          %v3832 = vadd.f32 %v3284, %v3612
          %v3833 = vadd.f32 %v3285, %v3613
          %v3834 = vadd.f32 %v3286, %v3606
          %v3835 = vadd.f32 %v3287, %v3607
          %v3836 = vadd.f32 %v3288, %v3608
          %v3837 = vadd.f32 %v3289, %v3609
          %v3838 = vadd.f32 %v3290, %v3602
          %v3839 = vadd.f32 %v3291, %v3603
          %v3840 = vadd.f32 %v3292, %v3604
          %v3841 = vadd.f32 %v3293, %v3605
          %v3842 = vadd.f32 %v3294, %v3598
          %v3843 = vadd.f32 %v3295, %v3599
          %v3844 = vadd.f32 %v3296, %v3600
          %v3845 = vadd.f32 %v3297, %v3601
          %v3846 = vadd.f32 %v3298, %v3594
          %v3847 = vadd.f32 %v3299, %v3595
          %v3848 = vadd.f32 %v3300, %v3596
          %v3849 = vadd.f32 %v3301, %v3597
          %v3850 = vlaneseq
          %v3851 = vshrl.u32 %v3850, 7
          %v3852 = vsub.s32 2, %v3851
          %v3853 = vrot.slane %v278, %v3852
          %v3854 = vlaneseq
          %v3855 = vshrl.u32 %v3854, 7
          %v3856 = vsub.s32 6, %v3855
          %v3857 = vrot.slane %v278, %v3856
          %v3858 = vlaneseq
          %v3859 = vshrl.u32 %v3858, 7
          %v3860 = vsub.s32 2, %v3859
          %v3861 = vrot.slane %v279, %v3860
          %v3862 = vlaneseq
          %v3863 = vshrl.u32 %v3862, 7
          %v3864 = vsub.s32 6, %v3863
          %v3865 = vrot.slane %v279, %v3864
          %v3870 = vlaneseq
          %v3871 = vshrl.u32 %v3870, 7
          %v3872 = vsub.s32 2, %v3871
          %v3873 = vrot.slane %v3853, %v3872
          %v3874 = vlaneseq
          %v3875 = vshrl.u32 %v3874, 7
          %v3876 = vsub.s32 2, %v3875
          %v3877 = vrot.slane %v3857, %v3876
          %v3878 = vlaneseq
          %v3879 = vshrl.u32 %v3878, 7
          %v3880 = vsub.s32 2, %v3879
          %v3881 = vrot.slane %v3861, %v3880
          %v3882 = vlaneseq
          %v3883 = vshrl.u32 %v3882, 7
          %v3884 = vsub.s32 2, %v3883
          %v3885 = vrot.slane %v3865, %v3884
          %v3886 = vmul.f32 %v3873, %v3722
          %v3887 = vmul.f32 %v3877, %v3723
          %v3888 = vmul.f32 %v3881, %v3724
          %v3889 = vmul.f32 %v3885, %v3725
          %v3890 = vmul.f32 %v3873, %v3726
          %v3891 = vmul.f32 %v3877, %v3727
          %v3892 = vmul.f32 %v3881, %v3728
          %v3893 = vmul.f32 %v3885, %v3729
          %v3894 = vmul.f32 %v3873, %v3730
          %v3895 = vmul.f32 %v3877, %v3731
          %v3896 = vmul.f32 %v3881, %v3732
          %v3897 = vmul.f32 %v3885, %v3733
          %v3898 = vmul.f32 %v3873, %v3734
          %v3899 = vmul.f32 %v3877, %v3735
          %v3900 = vmul.f32 %v3881, %v3736
          %v3901 = vmul.f32 %v3885, %v3737
          %v3902 = vmul.f32 %v3873, %v3738
          %v3903 = vmul.f32 %v3877, %v3739
          %v3904 = vmul.f32 %v3881, %v3740
          %v3905 = vmul.f32 %v3885, %v3741
          %v3906 = vmul.f32 %v3873, %v3742
          %v3907 = vmul.f32 %v3877, %v3743
          %v3908 = vmul.f32 %v3881, %v3744
          %v3909 = vmul.f32 %v3885, %v3745
          %v3910 = vmul.f32 %v3873, %v3746
          %v3911 = vmul.f32 %v3877, %v3747
          %v3912 = vmul.f32 %v3881, %v3748
          %v3913 = vmul.f32 %v3885, %v3749
          %v3914 = vmul.f32 %v3873, %v3750
          %v3915 = vmul.f32 %v3877, %v3751
          %v3916 = vmul.f32 %v3881, %v3752
          %v3917 = vmul.f32 %v3885, %v3753
          %v3918 = vmul.f32 %v3873, %v3754
          %v3919 = vmul.f32 %v3877, %v3755
          %v3920 = vmul.f32 %v3881, %v3756
          %v3921 = vmul.f32 %v3885, %v3757
          %v3922 = vmul.f32 %v3873, %v3758
          %v3923 = vmul.f32 %v3877, %v3759
          %v3924 = vmul.f32 %v3881, %v3760
          %v3925 = vmul.f32 %v3885, %v3761
          %v3926 = vmul.f32 %v3873, %v3762
          %v3927 = vmul.f32 %v3877, %v3763
          %v3928 = vmul.f32 %v3881, %v3764
          %v3929 = vmul.f32 %v3885, %v3765
          %v3930 = vmul.f32 %v3873, %v3766
          %v3931 = vmul.f32 %v3877, %v3767
          %v3932 = vmul.f32 %v3881, %v3768
          %v3933 = vmul.f32 %v3885, %v3769
          %v3934 = vmul.f32 %v3873, %v3770
          %v3935 = vmul.f32 %v3877, %v3771
          %v3936 = vmul.f32 %v3881, %v3772
          %v3937 = vmul.f32 %v3885, %v3773
          %v3938 = vmul.f32 %v3873, %v3774
          %v3939 = vmul.f32 %v3877, %v3775
          %v3940 = vmul.f32 %v3881, %v3776
          %v3941 = vmul.f32 %v3885, %v3777
          %v3942 = vmul.f32 %v3873, %v3778
          %v3943 = vmul.f32 %v3877, %v3779
          %v3944 = vmul.f32 %v3881, %v3780
          %v3945 = vmul.f32 %v3885, %v3781
          %v3946 = vmul.f32 %v3873, %v3782
          %v3947 = vmul.f32 %v3877, %v3783
          %v3948 = vmul.f32 %v3881, %v3784
          %v3949 = vmul.f32 %v3885, %v3785
          %v3950 = vmul.f32 %v3873, %v3786
          %v3951 = vmul.f32 %v3877, %v3787
          %v3952 = vmul.f32 %v3881, %v3788
          %v3953 = vmul.f32 %v3885, %v3789
          %v3954 = vmul.f32 %v3873, %v3790
          %v3955 = vmul.f32 %v3877, %v3791
          %v3956 = vmul.f32 %v3881, %v3792
          %v3957 = vmul.f32 %v3885, %v3793
          %v3958 = vmul.f32 %v3873, %v3794
          %v3959 = vmul.f32 %v3877, %v3795
          %v3960 = vmul.f32 %v3881, %v3796
          %v3961 = vmul.f32 %v3885, %v3797
          %v3962 = vmul.f32 %v3873, %v3798
          %v3963 = vmul.f32 %v3877, %v3799
          %v3964 = vmul.f32 %v3881, %v3800
          %v3965 = vmul.f32 %v3885, %v3801
          %v3966 = vmul.f32 %v3873, %v3802
          %v3967 = vmul.f32 %v3877, %v3803
          %v3968 = vmul.f32 %v3881, %v3804
          %v3969 = vmul.f32 %v3885, %v3805
          %v3970 = vmul.f32 %v3873, %v3806
          %v3971 = vmul.f32 %v3877, %v3807
          %v3972 = vmul.f32 %v3881, %v3808
          %v3973 = vmul.f32 %v3885, %v3809
          %v3974 = vmul.f32 %v3873, %v3810
          %v3975 = vmul.f32 %v3877, %v3811
          %v3976 = vmul.f32 %v3881, %v3812
          %v3977 = vmul.f32 %v3885, %v3813
          %v3978 = vmul.f32 %v3873, %v3814
          %v3979 = vmul.f32 %v3877, %v3815
          %v3980 = vmul.f32 %v3881, %v3816
          %v3981 = vmul.f32 %v3885, %v3817
          %v3982 = vmul.f32 %v3873, %v3818
          %v3983 = vmul.f32 %v3877, %v3819
          %v3984 = vmul.f32 %v3881, %v3820
          %v3985 = vmul.f32 %v3885, %v3821
          %v3986 = vmul.f32 %v3873, %v3822
          %v3987 = vmul.f32 %v3877, %v3823
          %v3988 = vmul.f32 %v3881, %v3824
          %v3989 = vmul.f32 %v3885, %v3825
          %v3990 = vmul.f32 %v3873, %v3826
          %v3991 = vmul.f32 %v3877, %v3827
          %v3992 = vmul.f32 %v3881, %v3828
          %v3993 = vmul.f32 %v3885, %v3829
          %v3994 = vmul.f32 %v3873, %v3830
          %v3995 = vmul.f32 %v3877, %v3831
          %v3996 = vmul.f32 %v3881, %v3832
          %v3997 = vmul.f32 %v3885, %v3833
          %v3998 = vmul.f32 %v3873, %v3834
          %v3999 = vmul.f32 %v3877, %v3835
          %v4000 = vmul.f32 %v3881, %v3836
          %v4001 = vmul.f32 %v3885, %v3837
          %v4002 = vmul.f32 %v3873, %v3838
          %v4003 = vmul.f32 %v3877, %v3839
          %v4004 = vmul.f32 %v3881, %v3840
          %v4005 = vmul.f32 %v3885, %v3841
          %v4006 = vmul.f32 %v3873, %v3842
          %v4007 = vmul.f32 %v3877, %v3843
          %v4008 = vmul.f32 %v3881, %v3844
          %v4009 = vmul.f32 %v3885, %v3845
          %v4010 = vmul.f32 %v3873, %v3846
          %v4011 = vmul.f32 %v3877, %v3847
          %v4012 = vmul.f32 %v3881, %v3848
          %v4013 = vmul.f32 %v3885, %v3849
          %v4014 = vlaneseq
          %v4015 = vshrl.u32 %v4014, 7
          %v4016 = vsub.s32 2, %v4015
          %v4017 = vrot.slane %v270, %v4016
          %v4018 = vlaneseq
          %v4019 = vshrl.u32 %v4018, 7
          %v4020 = vsub.s32 6, %v4019
          %v4021 = vrot.slane %v270, %v4020
          %v4022 = vlaneseq
          %v4023 = vshrl.u32 %v4022, 7
          %v4024 = vsub.s32 2, %v4023
          %v4025 = vrot.slane %v271, %v4024
          %v4026 = vlaneseq
          %v4027 = vshrl.u32 %v4026, 7
          %v4028 = vsub.s32 6, %v4027
          %v4029 = vrot.slane %v271, %v4028
          %v4034 = vlaneseq
          %v4035 = vshrl.u32 %v4034, 7
          %v4036 = vsub.s32 2, %v4035
          %v4037 = vrot.slane %v4017, %v4036
          %v4038 = vlaneseq
          %v4039 = vshrl.u32 %v4038, 7
          %v4040 = vsub.s32 2, %v4039
          %v4041 = vrot.slane %v4021, %v4040
          %v4042 = vlaneseq
          %v4043 = vshrl.u32 %v4042, 7
          %v4044 = vsub.s32 2, %v4043
          %v4045 = vrot.slane %v4025, %v4044
          %v4046 = vlaneseq
          %v4047 = vshrl.u32 %v4046, 7
          %v4048 = vsub.s32 2, %v4047
          %v4049 = vrot.slane %v4029, %v4048
          %v4050 = vmul.f32 %v4037, %v3842
          %v4051 = vmul.f32 %v4041, %v3843
          %v4052 = vmul.f32 %v4045, %v3844
          %v4053 = vmul.f32 %v4049, %v3845
          %v4054 = vmul.f32 %v4037, %v3846
          %v4055 = vmul.f32 %v4041, %v3847
          %v4056 = vmul.f32 %v4045, %v3848
          %v4057 = vmul.f32 %v4049, %v3849
          %v4058 = vmul.f32 %v4037, %v3722
          %v4059 = vmul.f32 %v4041, %v3723
          %v4060 = vmul.f32 %v4045, %v3724
          %v4061 = vmul.f32 %v4049, %v3725
          %v4062 = vmul.f32 %v4037, %v3726
          %v4063 = vmul.f32 %v4041, %v3727
          %v4064 = vmul.f32 %v4045, %v3728
          %v4065 = vmul.f32 %v4049, %v3729
          %v4066 = vmul.f32 %v4037, %v3730
          %v4067 = vmul.f32 %v4041, %v3731
          %v4068 = vmul.f32 %v4045, %v3732
          %v4069 = vmul.f32 %v4049, %v3733
          %v4070 = vmul.f32 %v4037, %v3734
          %v4071 = vmul.f32 %v4041, %v3735
          %v4072 = vmul.f32 %v4045, %v3736
          %v4073 = vmul.f32 %v4049, %v3737
          %v4074 = vmul.f32 %v4037, %v3738
          %v4075 = vmul.f32 %v4041, %v3739
          %v4076 = vmul.f32 %v4045, %v3740
          %v4077 = vmul.f32 %v4049, %v3741
          %v4078 = vmul.f32 %v4037, %v3742
          %v4079 = vmul.f32 %v4041, %v3743
          %v4080 = vmul.f32 %v4045, %v3744
          %v4081 = vmul.f32 %v4049, %v3745
          %v4082 = vmul.f32 %v4037, %v3746
          %v4083 = vmul.f32 %v4041, %v3747
          %v4084 = vmul.f32 %v4045, %v3748
          %v4085 = vmul.f32 %v4049, %v3749
          %v4086 = vmul.f32 %v4037, %v3750
          %v4087 = vmul.f32 %v4041, %v3751
          %v4088 = vmul.f32 %v4045, %v3752
          %v4089 = vmul.f32 %v4049, %v3753
          %v4090 = vmul.f32 %v4037, %v3754
          %v4091 = vmul.f32 %v4041, %v3755
          %v4092 = vmul.f32 %v4045, %v3756
          %v4093 = vmul.f32 %v4049, %v3757
          %v4094 = vmul.f32 %v4037, %v3758
          %v4095 = vmul.f32 %v4041, %v3759
          %v4096 = vmul.f32 %v4045, %v3760
          %v4097 = vmul.f32 %v4049, %v3761
          %v4098 = vmul.f32 %v4037, %v3762
          %v4099 = vmul.f32 %v4041, %v3763
          %v4100 = vmul.f32 %v4045, %v3764
          %v4101 = vmul.f32 %v4049, %v3765
          %v4102 = vmul.f32 %v4037, %v3766
          %v4103 = vmul.f32 %v4041, %v3767
          %v4104 = vmul.f32 %v4045, %v3768
          %v4105 = vmul.f32 %v4049, %v3769
          %v4106 = vmul.f32 %v4037, %v3770
          %v4107 = vmul.f32 %v4041, %v3771
          %v4108 = vmul.f32 %v4045, %v3772
          %v4109 = vmul.f32 %v4049, %v3773
          %v4110 = vmul.f32 %v4037, %v3774
          %v4111 = vmul.f32 %v4041, %v3775
          %v4112 = vmul.f32 %v4045, %v3776
          %v4113 = vmul.f32 %v4049, %v3777
          %v4114 = vmul.f32 %v4037, %v3778
          %v4115 = vmul.f32 %v4041, %v3779
          %v4116 = vmul.f32 %v4045, %v3780
          %v4117 = vmul.f32 %v4049, %v3781
          %v4118 = vmul.f32 %v4037, %v3782
          %v4119 = vmul.f32 %v4041, %v3783
          %v4120 = vmul.f32 %v4045, %v3784
          %v4121 = vmul.f32 %v4049, %v3785
          %v4122 = vmul.f32 %v4037, %v3786
          %v4123 = vmul.f32 %v4041, %v3787
          %v4124 = vmul.f32 %v4045, %v3788
          %v4125 = vmul.f32 %v4049, %v3789
          %v4126 = vmul.f32 %v4037, %v3790
          %v4127 = vmul.f32 %v4041, %v3791
          %v4128 = vmul.f32 %v4045, %v3792
          %v4129 = vmul.f32 %v4049, %v3793
          %v4130 = vmul.f32 %v4037, %v3794
          %v4131 = vmul.f32 %v4041, %v3795
          %v4132 = vmul.f32 %v4045, %v3796
          %v4133 = vmul.f32 %v4049, %v3797
          %v4134 = vmul.f32 %v4037, %v3798
          %v4135 = vmul.f32 %v4041, %v3799
          %v4136 = vmul.f32 %v4045, %v3800
          %v4137 = vmul.f32 %v4049, %v3801
          %v4138 = vmul.f32 %v4037, %v3802
          %v4139 = vmul.f32 %v4041, %v3803
          %v4140 = vmul.f32 %v4045, %v3804
          %v4141 = vmul.f32 %v4049, %v3805
          %v4142 = vmul.f32 %v4037, %v3806
          %v4143 = vmul.f32 %v4041, %v3807
          %v4144 = vmul.f32 %v4045, %v3808
          %v4145 = vmul.f32 %v4049, %v3809
          %v4146 = vmul.f32 %v4037, %v3810
          %v4147 = vmul.f32 %v4041, %v3811
          %v4148 = vmul.f32 %v4045, %v3812
          %v4149 = vmul.f32 %v4049, %v3813
          %v4150 = vmul.f32 %v4037, %v3814
          %v4151 = vmul.f32 %v4041, %v3815
          %v4152 = vmul.f32 %v4045, %v3816
          %v4153 = vmul.f32 %v4049, %v3817
          %v4154 = vmul.f32 %v4037, %v3818
          %v4155 = vmul.f32 %v4041, %v3819
          %v4156 = vmul.f32 %v4045, %v3820
          %v4157 = vmul.f32 %v4049, %v3821
          %v4158 = vmul.f32 %v4037, %v3822
          %v4159 = vmul.f32 %v4041, %v3823
          %v4160 = vmul.f32 %v4045, %v3824
          %v4161 = vmul.f32 %v4049, %v3825
          %v4162 = vmul.f32 %v4037, %v3826
          %v4163 = vmul.f32 %v4041, %v3827
          %v4164 = vmul.f32 %v4045, %v3828
          %v4165 = vmul.f32 %v4049, %v3829
          %v4166 = vmul.f32 %v4037, %v3830
          %v4167 = vmul.f32 %v4041, %v3831
          %v4168 = vmul.f32 %v4045, %v3832
          %v4169 = vmul.f32 %v4049, %v3833
          %v4170 = vmul.f32 %v4037, %v3834
          %v4171 = vmul.f32 %v4041, %v3835
          %v4172 = vmul.f32 %v4045, %v3836
          %v4173 = vmul.f32 %v4049, %v3837
          %v4174 = vmul.f32 %v4037, %v3838
          %v4175 = vmul.f32 %v4041, %v3839
          %v4176 = vmul.f32 %v4045, %v3840
          %v4177 = vmul.f32 %v4049, %v3841
          %v4178 = vadd.f32 %v3886, %v4050
          %v4179 = vadd.f32 %v3887, %v4051
          %v4180 = vadd.f32 %v3888, %v4052
          %v4181 = vadd.f32 %v3889, %v4053
          %v4182 = vadd.f32 %v3890, %v4054
          %v4183 = vadd.f32 %v3891, %v4055
          %v4184 = vadd.f32 %v3892, %v4056
          %v4185 = vadd.f32 %v3893, %v4057
          %v4186 = vadd.f32 %v3894, %v4058
          %v4187 = vadd.f32 %v3895, %v4059
          %v4188 = vadd.f32 %v3896, %v4060
          %v4189 = vadd.f32 %v3897, %v4061
          %v4190 = vadd.f32 %v3898, %v4062
          %v4191 = vadd.f32 %v3899, %v4063
          %v4192 = vadd.f32 %v3900, %v4064
          %v4193 = vadd.f32 %v3901, %v4065
          %v4194 = vadd.f32 %v3902, %v4066
          %v4195 = vadd.f32 %v3903, %v4067
          %v4196 = vadd.f32 %v3904, %v4068
          %v4197 = vadd.f32 %v3905, %v4069
          %v4198 = vadd.f32 %v3906, %v4070
          %v4199 = vadd.f32 %v3907, %v4071
          %v4200 = vadd.f32 %v3908, %v4072
          %v4201 = vadd.f32 %v3909, %v4073
          %v4202 = vadd.f32 %v3910, %v4074
          %v4203 = vadd.f32 %v3911, %v4075
          %v4204 = vadd.f32 %v3912, %v4076
          %v4205 = vadd.f32 %v3913, %v4077
          %v4206 = vadd.f32 %v3914, %v4078
          %v4207 = vadd.f32 %v3915, %v4079
          %v4208 = vadd.f32 %v3916, %v4080
          %v4209 = vadd.f32 %v3917, %v4081
          %v4210 = vadd.f32 %v3918, %v4082
          %v4211 = vadd.f32 %v3919, %v4083
          %v4212 = vadd.f32 %v3920, %v4084
          %v4213 = vadd.f32 %v3921, %v4085
          %v4214 = vadd.f32 %v3922, %v4086
          %v4215 = vadd.f32 %v3923, %v4087
          %v4216 = vadd.f32 %v3924, %v4088
          %v4217 = vadd.f32 %v3925, %v4089
          %v4218 = vadd.f32 %v3926, %v4090
          %v4219 = vadd.f32 %v3927, %v4091
          %v4220 = vadd.f32 %v3928, %v4092
          %v4221 = vadd.f32 %v3929, %v4093
          %v4222 = vadd.f32 %v3930, %v4094
          %v4223 = vadd.f32 %v3931, %v4095
          %v4224 = vadd.f32 %v3932, %v4096
          %v4225 = vadd.f32 %v3933, %v4097
          %v4226 = vadd.f32 %v3934, %v4098
          %v4227 = vadd.f32 %v3935, %v4099
          %v4228 = vadd.f32 %v3936, %v4100
          %v4229 = vadd.f32 %v3937, %v4101
          %v4230 = vadd.f32 %v3938, %v4102
          %v4231 = vadd.f32 %v3939, %v4103
          %v4232 = vadd.f32 %v3940, %v4104
          %v4233 = vadd.f32 %v3941, %v4105
          %v4234 = vadd.f32 %v3942, %v4106
          %v4235 = vadd.f32 %v3943, %v4107
          %v4236 = vadd.f32 %v3944, %v4108
          %v4237 = vadd.f32 %v3945, %v4109
          %v4238 = vadd.f32 %v3946, %v4110
          %v4239 = vadd.f32 %v3947, %v4111
          %v4240 = vadd.f32 %v3948, %v4112
          %v4241 = vadd.f32 %v3949, %v4113
          %v4242 = vadd.f32 %v3950, %v4114
          %v4243 = vadd.f32 %v3951, %v4115
          %v4244 = vadd.f32 %v3952, %v4116
          %v4245 = vadd.f32 %v3953, %v4117
          %v4246 = vadd.f32 %v3954, %v4118
          %v4247 = vadd.f32 %v3955, %v4119
          %v4248 = vadd.f32 %v3956, %v4120
          %v4249 = vadd.f32 %v3957, %v4121
          %v4250 = vadd.f32 %v3958, %v4122
          %v4251 = vadd.f32 %v3959, %v4123
          %v4252 = vadd.f32 %v3960, %v4124
          %v4253 = vadd.f32 %v3961, %v4125
          %v4254 = vadd.f32 %v3962, %v4126
          %v4255 = vadd.f32 %v3963, %v4127
          %v4256 = vadd.f32 %v3964, %v4128
          %v4257 = vadd.f32 %v3965, %v4129
          %v4258 = vadd.f32 %v3966, %v4130
          %v4259 = vadd.f32 %v3967, %v4131
          %v4260 = vadd.f32 %v3968, %v4132
          %v4261 = vadd.f32 %v3969, %v4133
          %v4262 = vadd.f32 %v3970, %v4134
          %v4263 = vadd.f32 %v3971, %v4135
          %v4264 = vadd.f32 %v3972, %v4136
          %v4265 = vadd.f32 %v3973, %v4137
          %v4266 = vadd.f32 %v3974, %v4138
          %v4267 = vadd.f32 %v3975, %v4139
          %v4268 = vadd.f32 %v3976, %v4140
          %v4269 = vadd.f32 %v3977, %v4141
          %v4270 = vadd.f32 %v3978, %v4142
          %v4271 = vadd.f32 %v3979, %v4143
          %v4272 = vadd.f32 %v3980, %v4144
          %v4273 = vadd.f32 %v3981, %v4145
          %v4274 = vadd.f32 %v3982, %v4146
          %v4275 = vadd.f32 %v3983, %v4147
          %v4276 = vadd.f32 %v3984, %v4148
          %v4277 = vadd.f32 %v3985, %v4149
          %v4278 = vadd.f32 %v3986, %v4150
          %v4279 = vadd.f32 %v3987, %v4151
          %v4280 = vadd.f32 %v3988, %v4152
          %v4281 = vadd.f32 %v3989, %v4153
          %v4282 = vadd.f32 %v3990, %v4154
          %v4283 = vadd.f32 %v3991, %v4155
          %v4284 = vadd.f32 %v3992, %v4156
          %v4285 = vadd.f32 %v3993, %v4157
          %v4286 = vadd.f32 %v3994, %v4158
          %v4287 = vadd.f32 %v3995, %v4159
          %v4288 = vadd.f32 %v3996, %v4160
          %v4289 = vadd.f32 %v3997, %v4161
          %v4290 = vadd.f32 %v3998, %v4162
          %v4291 = vadd.f32 %v3999, %v4163
          %v4292 = vadd.f32 %v4000, %v4164
          %v4293 = vadd.f32 %v4001, %v4165
          %v4294 = vadd.f32 %v4002, %v4166
          %v4295 = vadd.f32 %v4003, %v4167
          %v4296 = vadd.f32 %v4004, %v4168
          %v4297 = vadd.f32 %v4005, %v4169
          %v4298 = vadd.f32 %v4006, %v4170
          %v4299 = vadd.f32 %v4007, %v4171
          %v4300 = vadd.f32 %v4008, %v4172
          %v4301 = vadd.f32 %v4009, %v4173
          %v4302 = vadd.f32 %v4010, %v4174
          %v4303 = vadd.f32 %v4011, %v4175
          %v4304 = vadd.f32 %v4012, %v4176
          %v4305 = vadd.f32 %v4013, %v4177
          %v4306 = vadd.f32 %v1522, %v4178
          %v4307 = vadd.f32 %v1523, %v4179
          %v4308 = vadd.f32 %v1524, %v4180
          %v4309 = vadd.f32 %v1525, %v4181
          %v4310 = vadd.f32 %v1526, %v4182
          %v4311 = vadd.f32 %v1527, %v4183
          %v4312 = vadd.f32 %v1528, %v4184
          %v4313 = vadd.f32 %v1529, %v4185
          %v4314 = vadd.f32 %v1530, %v4186
          %v4315 = vadd.f32 %v1531, %v4187
          %v4316 = vadd.f32 %v1532, %v4188
          %v4317 = vadd.f32 %v1533, %v4189
          %v4318 = vadd.f32 %v1534, %v4190
          %v4319 = vadd.f32 %v1535, %v4191
          %v4320 = vadd.f32 %v1536, %v4192
          %v4321 = vadd.f32 %v1537, %v4193
          %v4322 = vadd.f32 %v1538, %v4194
          %v4323 = vadd.f32 %v1539, %v4195
          %v4324 = vadd.f32 %v1540, %v4196
          %v4325 = vadd.f32 %v1541, %v4197
          %v4326 = vadd.f32 %v1542, %v4198
          %v4327 = vadd.f32 %v1543, %v4199
          %v4328 = vadd.f32 %v1544, %v4200
          %v4329 = vadd.f32 %v1545, %v4201
          %v4330 = vadd.f32 %v1546, %v4202
          %v4331 = vadd.f32 %v1547, %v4203
          %v4332 = vadd.f32 %v1548, %v4204
          %v4333 = vadd.f32 %v1549, %v4205
          %v4334 = vadd.f32 %v1550, %v4206
          %v4335 = vadd.f32 %v1551, %v4207
          %v4336 = vadd.f32 %v1552, %v4208
          %v4337 = vadd.f32 %v1553, %v4209
          %v4338 = vadd.f32 %v1554, %v4210
          %v4339 = vadd.f32 %v1555, %v4211
          %v4340 = vadd.f32 %v1556, %v4212
          %v4341 = vadd.f32 %v1557, %v4213
          %v4342 = vadd.f32 %v1558, %v4214
          %v4343 = vadd.f32 %v1559, %v4215
          %v4344 = vadd.f32 %v1560, %v4216
          %v4345 = vadd.f32 %v1561, %v4217
          %v4346 = vadd.f32 %v1562, %v4218
          %v4347 = vadd.f32 %v1563, %v4219
          %v4348 = vadd.f32 %v1564, %v4220
          %v4349 = vadd.f32 %v1565, %v4221
          %v4350 = vadd.f32 %v1566, %v4222
          %v4351 = vadd.f32 %v1567, %v4223
          %v4352 = vadd.f32 %v1568, %v4224
          %v4353 = vadd.f32 %v1569, %v4225
          %v4354 = vadd.f32 %v1570, %v4226
          %v4355 = vadd.f32 %v1571, %v4227
          %v4356 = vadd.f32 %v1572, %v4228
          %v4357 = vadd.f32 %v1573, %v4229
          %v4358 = vadd.f32 %v1574, %v4230
          %v4359 = vadd.f32 %v1575, %v4231
          %v4360 = vadd.f32 %v1576, %v4232
          %v4361 = vadd.f32 %v1577, %v4233
          %v4362 = vadd.f32 %v1578, %v4234
          %v4363 = vadd.f32 %v1579, %v4235
          %v4364 = vadd.f32 %v1580, %v4236
          %v4365 = vadd.f32 %v1581, %v4237
          %v4366 = vadd.f32 %v1582, %v4238
          %v4367 = vadd.f32 %v1583, %v4239
          %v4368 = vadd.f32 %v1584, %v4240
          %v4369 = vadd.f32 %v1585, %v4241
          %v4370 = vadd.f32 %v1586, %v4242
          %v4371 = vadd.f32 %v1587, %v4243
          %v4372 = vadd.f32 %v1588, %v4244
          %v4373 = vadd.f32 %v1589, %v4245
          %v4374 = vadd.f32 %v1590, %v4246
          %v4375 = vadd.f32 %v1591, %v4247
          %v4376 = vadd.f32 %v1592, %v4248
          %v4377 = vadd.f32 %v1593, %v4249
          %v4378 = vadd.f32 %v1594, %v4250
          %v4379 = vadd.f32 %v1595, %v4251
          %v4380 = vadd.f32 %v1596, %v4252
          %v4381 = vadd.f32 %v1597, %v4253
          %v4382 = vadd.f32 %v1598, %v4254
          %v4383 = vadd.f32 %v1599, %v4255
          %v4384 = vadd.f32 %v1600, %v4256
          %v4385 = vadd.f32 %v1601, %v4257
          %v4386 = vadd.f32 %v1602, %v4258
          %v4387 = vadd.f32 %v1603, %v4259
          %v4388 = vadd.f32 %v1604, %v4260
          %v4389 = vadd.f32 %v1605, %v4261
          %v4390 = vadd.f32 %v1606, %v4262
          %v4391 = vadd.f32 %v1607, %v4263
          %v4392 = vadd.f32 %v1608, %v4264
          %v4393 = vadd.f32 %v1609, %v4265
          %v4394 = vadd.f32 %v1610, %v4266
          %v4395 = vadd.f32 %v1611, %v4267
          %v4396 = vadd.f32 %v1612, %v4268
          %v4397 = vadd.f32 %v1613, %v4269
          %v4398 = vadd.f32 %v1614, %v4270
          %v4399 = vadd.f32 %v1615, %v4271
          %v4400 = vadd.f32 %v1616, %v4272
          %v4401 = vadd.f32 %v1617, %v4273
          %v4402 = vadd.f32 %v1618, %v4274
          %v4403 = vadd.f32 %v1619, %v4275
          %v4404 = vadd.f32 %v1620, %v4276
          %v4405 = vadd.f32 %v1621, %v4277
          %v4406 = vadd.f32 %v1622, %v4278
          %v4407 = vadd.f32 %v1623, %v4279
          %v4408 = vadd.f32 %v1624, %v4280
          %v4409 = vadd.f32 %v1625, %v4281
          %v4410 = vadd.f32 %v1626, %v4282
          %v4411 = vadd.f32 %v1627, %v4283
          %v4412 = vadd.f32 %v1628, %v4284
          %v4413 = vadd.f32 %v1629, %v4285
          %v4414 = vadd.f32 %v1630, %v4286
          %v4415 = vadd.f32 %v1631, %v4287
          %v4416 = vadd.f32 %v1632, %v4288
          %v4417 = vadd.f32 %v1633, %v4289
          %v4418 = vadd.f32 %v1634, %v4290
          %v4419 = vadd.f32 %v1635, %v4291
          %v4420 = vadd.f32 %v1636, %v4292
          %v4421 = vadd.f32 %v1637, %v4293
          %v4422 = vadd.f32 %v1638, %v4294
          %v4423 = vadd.f32 %v1639, %v4295
          %v4424 = vadd.f32 %v1640, %v4296
          %v4425 = vadd.f32 %v1641, %v4297
          %v4426 = vadd.f32 %v1642, %v4298
          %v4427 = vadd.f32 %v1643, %v4299
          %v4428 = vadd.f32 %v1644, %v4300
          %v4429 = vadd.f32 %v1645, %v4301
          %v4430 = vadd.f32 %v1646, %v4302
          %v4431 = vadd.f32 %v1647, %v4303
          %v4432 = vadd.f32 %v1648, %v4304
          %v4433 = vadd.f32 %v1649, %v4305
          %v4434 = vlaneseq
          %v4435 = vshrl.u32 %v4434, 7
          %v4436 = vsub.s32 3, %v4435
          %v4437 = vrot.slane %v268, %v4436
          %v4438 = vlaneseq
          %v4439 = vshrl.u32 %v4438, 7
          %v4440 = vsub.s32 7, %v4439
          %v4441 = vrot.slane %v268, %v4440
          %v4442 = vlaneseq
          %v4443 = vshrl.u32 %v4442, 7
          %v4444 = vsub.s32 3, %v4443
          %v4445 = vrot.slane %v269, %v4444
          %v4446 = vlaneseq
          %v4447 = vshrl.u32 %v4446, 7
          %v4448 = vsub.s32 7, %v4447
          %v4449 = vrot.slane %v269, %v4448
          %v4450 = vlaneseq
          %v4451 = vshrl.u32 %v4450, 7
          %v4452 = vsub.s32 3, %v4451
          %v4453 = vrot.slane %v4437, %v4452
          %v4454 = vlaneseq
          %v4455 = vshrl.u32 %v4454, 7
          %v4456 = vsub.s32 3, %v4455
          %v4457 = vrot.slane %v4441, %v4456
          %v4458 = vlaneseq
          %v4459 = vshrl.u32 %v4458, 7
          %v4460 = vsub.s32 3, %v4459
          %v4461 = vrot.slane %v4445, %v4460
          %v4462 = vlaneseq
          %v4463 = vshrl.u32 %v4462, 7
          %v4464 = vsub.s32 3, %v4463
          %v4465 = vrot.slane %v4449, %v4464
          %vm4466 = vcmp.eq.s32.totalorder %v281, %v4453
          %vm4467 = vcmp.eq.s32.totalorder %v281, %v4457
          %vm4468 = vcmp.eq.s32.totalorder %v281, %v4461
          %vm4469 = vcmp.eq.s32.totalorder %v281, %v4465
          %vm4470 = vcmp.eq.s32.totalorder %v282, %v4453
          %vm4471 = vcmp.eq.s32.totalorder %v282, %v4457
          %vm4472 = vcmp.eq.s32.totalorder %v282, %v4461
          %vm4473 = vcmp.eq.s32.totalorder %v282, %v4465
          %vm4474 = vcmp.eq.s32.totalorder %v283, %v4453
          %vm4475 = vcmp.eq.s32.totalorder %v283, %v4457
          %vm4476 = vcmp.eq.s32.totalorder %v283, %v4461
          %vm4477 = vcmp.eq.s32.totalorder %v283, %v4465
          %vm4478 = vcmp.eq.s32.totalorder %v284, %v4453
          %vm4479 = vcmp.eq.s32.totalorder %v284, %v4457
          %vm4480 = vcmp.eq.s32.totalorder %v284, %v4461
          %vm4481 = vcmp.eq.s32.totalorder %v284, %v4465
          %vm4482 = vcmp.eq.s32.totalorder %v285, %v4453
          %vm4483 = vcmp.eq.s32.totalorder %v285, %v4457
          %vm4484 = vcmp.eq.s32.totalorder %v285, %v4461
          %vm4485 = vcmp.eq.s32.totalorder %v285, %v4465
          %vm4486 = vcmp.eq.s32.totalorder %v286, %v4453
          %vm4487 = vcmp.eq.s32.totalorder %v286, %v4457
          %vm4488 = vcmp.eq.s32.totalorder %v286, %v4461
          %vm4489 = vcmp.eq.s32.totalorder %v286, %v4465
          %vm4490 = vcmp.eq.s32.totalorder %v287, %v4453
          %vm4491 = vcmp.eq.s32.totalorder %v287, %v4457
          %vm4492 = vcmp.eq.s32.totalorder %v287, %v4461
          %vm4493 = vcmp.eq.s32.totalorder %v287, %v4465
          %vm4494 = vcmp.eq.s32.totalorder %v288, %v4453
          %vm4495 = vcmp.eq.s32.totalorder %v288, %v4457
          %vm4496 = vcmp.eq.s32.totalorder %v288, %v4461
          %vm4497 = vcmp.eq.s32.totalorder %v288, %v4465
          %vm4498 = vcmp.eq.s32.totalorder %v289, %v4453
          %vm4499 = vcmp.eq.s32.totalorder %v289, %v4457
          %vm4500 = vcmp.eq.s32.totalorder %v289, %v4461
          %vm4501 = vcmp.eq.s32.totalorder %v289, %v4465
          %vm4502 = vcmp.eq.s32.totalorder %v290, %v4453
          %vm4503 = vcmp.eq.s32.totalorder %v290, %v4457
          %vm4504 = vcmp.eq.s32.totalorder %v290, %v4461
          %vm4505 = vcmp.eq.s32.totalorder %v290, %v4465
          %vm4506 = vcmp.eq.s32.totalorder %v291, %v4453
          %vm4507 = vcmp.eq.s32.totalorder %v291, %v4457
          %vm4508 = vcmp.eq.s32.totalorder %v291, %v4461
          %vm4509 = vcmp.eq.s32.totalorder %v291, %v4465
          %vm4510 = vcmp.eq.s32.totalorder %v292, %v4453
          %vm4511 = vcmp.eq.s32.totalorder %v292, %v4457
          %vm4512 = vcmp.eq.s32.totalorder %v292, %v4461
          %vm4513 = vcmp.eq.s32.totalorder %v292, %v4465
          %vm4514 = vcmp.eq.s32.totalorder %v293, %v4453
          %vm4515 = vcmp.eq.s32.totalorder %v293, %v4457
          %vm4516 = vcmp.eq.s32.totalorder %v293, %v4461
          %vm4517 = vcmp.eq.s32.totalorder %v293, %v4465
          %vm4518 = vcmp.eq.s32.totalorder %v294, %v4453
          %vm4519 = vcmp.eq.s32.totalorder %v294, %v4457
          %vm4520 = vcmp.eq.s32.totalorder %v294, %v4461
          %vm4521 = vcmp.eq.s32.totalorder %v294, %v4465
          %vm4522 = vcmp.eq.s32.totalorder %v295, %v4453
          %vm4523 = vcmp.eq.s32.totalorder %v295, %v4457
          %vm4524 = vcmp.eq.s32.totalorder %v295, %v4461
          %vm4525 = vcmp.eq.s32.totalorder %v295, %v4465
          %vm4526 = vcmp.eq.s32.totalorder %v296, %v4453
          %vm4527 = vcmp.eq.s32.totalorder %v296, %v4457
          %vm4528 = vcmp.eq.s32.totalorder %v296, %v4461
          %vm4529 = vcmp.eq.s32.totalorder %v296, %v4465
          %vm4530 = vcmp.eq.s32.totalorder %v297, %v4453
          %vm4531 = vcmp.eq.s32.totalorder %v297, %v4457
          %vm4532 = vcmp.eq.s32.totalorder %v297, %v4461
          %vm4533 = vcmp.eq.s32.totalorder %v297, %v4465
          %vm4534 = vcmp.eq.s32.totalorder %v298, %v4453
          %vm4535 = vcmp.eq.s32.totalorder %v298, %v4457
          %vm4536 = vcmp.eq.s32.totalorder %v298, %v4461
          %vm4537 = vcmp.eq.s32.totalorder %v298, %v4465
          %vm4538 = vcmp.eq.s32.totalorder %v299, %v4453
          %vm4539 = vcmp.eq.s32.totalorder %v299, %v4457
          %vm4540 = vcmp.eq.s32.totalorder %v299, %v4461
          %vm4541 = vcmp.eq.s32.totalorder %v299, %v4465
          %vm4542 = vcmp.eq.s32.totalorder %v300, %v4453
          %vm4543 = vcmp.eq.s32.totalorder %v300, %v4457
          %vm4544 = vcmp.eq.s32.totalorder %v300, %v4461
          %vm4545 = vcmp.eq.s32.totalorder %v300, %v4465
          %vm4546 = vcmp.eq.s32.totalorder %v301, %v4453
          %vm4547 = vcmp.eq.s32.totalorder %v301, %v4457
          %vm4548 = vcmp.eq.s32.totalorder %v301, %v4461
          %vm4549 = vcmp.eq.s32.totalorder %v301, %v4465
          %vm4550 = vcmp.eq.s32.totalorder %v302, %v4453
          %vm4551 = vcmp.eq.s32.totalorder %v302, %v4457
          %vm4552 = vcmp.eq.s32.totalorder %v302, %v4461
          %vm4553 = vcmp.eq.s32.totalorder %v302, %v4465
          %vm4554 = vcmp.eq.s32.totalorder %v303, %v4453
          %vm4555 = vcmp.eq.s32.totalorder %v303, %v4457
          %vm4556 = vcmp.eq.s32.totalorder %v303, %v4461
          %vm4557 = vcmp.eq.s32.totalorder %v303, %v4465
          %vm4558 = vcmp.eq.s32.totalorder %v304, %v4453
          %vm4559 = vcmp.eq.s32.totalorder %v304, %v4457
          %vm4560 = vcmp.eq.s32.totalorder %v304, %v4461
          %vm4561 = vcmp.eq.s32.totalorder %v304, %v4465
          %vm4562 = vcmp.eq.s32.totalorder %v305, %v4453
          %vm4563 = vcmp.eq.s32.totalorder %v305, %v4457
          %vm4564 = vcmp.eq.s32.totalorder %v305, %v4461
          %vm4565 = vcmp.eq.s32.totalorder %v305, %v4465
          %vm4566 = vcmp.eq.s32.totalorder %v306, %v4453
          %vm4567 = vcmp.eq.s32.totalorder %v306, %v4457
          %vm4568 = vcmp.eq.s32.totalorder %v306, %v4461
          %vm4569 = vcmp.eq.s32.totalorder %v306, %v4465
          %vm4570 = vcmp.eq.s32.totalorder %v307, %v4453
          %vm4571 = vcmp.eq.s32.totalorder %v307, %v4457
          %vm4572 = vcmp.eq.s32.totalorder %v307, %v4461
          %vm4573 = vcmp.eq.s32.totalorder %v307, %v4465
          %vm4574 = vcmp.eq.s32.totalorder %v308, %v4453
          %vm4575 = vcmp.eq.s32.totalorder %v308, %v4457
          %vm4576 = vcmp.eq.s32.totalorder %v308, %v4461
          %vm4577 = vcmp.eq.s32.totalorder %v308, %v4465
          %vm4578 = vcmp.eq.s32.totalorder %v309, %v4453
          %vm4579 = vcmp.eq.s32.totalorder %v309, %v4457
          %vm4580 = vcmp.eq.s32.totalorder %v309, %v4461
          %vm4581 = vcmp.eq.s32.totalorder %v309, %v4465
          %vm4582 = vcmp.eq.s32.totalorder %v310, %v4453
          %vm4583 = vcmp.eq.s32.totalorder %v310, %v4457
          %vm4584 = vcmp.eq.s32.totalorder %v310, %v4461
          %vm4585 = vcmp.eq.s32.totalorder %v310, %v4465
          %vm4586 = vcmp.eq.s32.totalorder %v311, %v4453
          %vm4587 = vcmp.eq.s32.totalorder %v311, %v4457
          %vm4588 = vcmp.eq.s32.totalorder %v311, %v4461
          %vm4589 = vcmp.eq.s32.totalorder %v311, %v4465
          %vm4590 = vcmp.eq.s32.totalorder %v312, %v4453
          %vm4591 = vcmp.eq.s32.totalorder %v312, %v4457
          %vm4592 = vcmp.eq.s32.totalorder %v312, %v4461
          %vm4593 = vcmp.eq.s32.totalorder %v312, %v4465
          %v4594 = vlaneseq
          %v4595 = vshrl.u32 %v4594, 7
          %v4596 = vsub.s32 3, %v4595
          %v4597 = vrot.slane %v276, %v4596
          %v4598 = vlaneseq
          %v4599 = vshrl.u32 %v4598, 7
          %v4600 = vsub.s32 7, %v4599
          %v4601 = vrot.slane %v276, %v4600
          %v4602 = vlaneseq
          %v4603 = vshrl.u32 %v4602, 7
          %v4604 = vsub.s32 3, %v4603
          %v4605 = vrot.slane %v277, %v4604
          %v4606 = vlaneseq
          %v4607 = vshrl.u32 %v4606, 7
          %v4608 = vsub.s32 7, %v4607
          %v4609 = vrot.slane %v277, %v4608
          %v4614 = vlaneseq
          %v4615 = vshrl.u32 %v4614, 7
          %v4616 = vsub.s32 3, %v4615
          %v4617 = vrot.slane %v4597, %v4616
          %v4618 = vlaneseq
          %v4619 = vshrl.u32 %v4618, 7
          %v4620 = vsub.s32 3, %v4619
          %v4621 = vrot.slane %v4601, %v4620
          %v4622 = vlaneseq
          %v4623 = vshrl.u32 %v4622, 7
          %v4624 = vsub.s32 3, %v4623
          %v4625 = vrot.slane %v4605, %v4624
          %v4626 = vlaneseq
          %v4627 = vshrl.u32 %v4626, 7
          %v4628 = vsub.s32 3, %v4627
          %v4629 = vrot.slane %v4609, %v4628
          %v4630 = vsel %vm4466, %v4617, 0.0
          %v4631 = vsel %vm4467, %v4621, 0.0
          %v4632 = vsel %vm4468, %v4625, 0.0
          %v4633 = vsel %vm4469, %v4629, 0.0
          %v4634 = vsel %vm4470, %v4617, 0.0
          %v4635 = vsel %vm4471, %v4621, 0.0
          %v4636 = vsel %vm4472, %v4625, 0.0
          %v4637 = vsel %vm4473, %v4629, 0.0
          %v4638 = vsel %vm4474, %v4617, 0.0
          %v4639 = vsel %vm4475, %v4621, 0.0
          %v4640 = vsel %vm4476, %v4625, 0.0
          %v4641 = vsel %vm4477, %v4629, 0.0
          %v4642 = vsel %vm4478, %v4617, 0.0
          %v4643 = vsel %vm4479, %v4621, 0.0
          %v4644 = vsel %vm4480, %v4625, 0.0
          %v4645 = vsel %vm4481, %v4629, 0.0
          %v4646 = vsel %vm4482, %v4617, 0.0
          %v4647 = vsel %vm4483, %v4621, 0.0
          %v4648 = vsel %vm4484, %v4625, 0.0
          %v4649 = vsel %vm4485, %v4629, 0.0
          %v4650 = vsel %vm4486, %v4617, 0.0
          %v4651 = vsel %vm4487, %v4621, 0.0
          %v4652 = vsel %vm4488, %v4625, 0.0
          %v4653 = vsel %vm4489, %v4629, 0.0
          %v4654 = vsel %vm4490, %v4617, 0.0
          %v4655 = vsel %vm4491, %v4621, 0.0
          %v4656 = vsel %vm4492, %v4625, 0.0
          %v4657 = vsel %vm4493, %v4629, 0.0
          %v4658 = vsel %vm4494, %v4617, 0.0
          %v4659 = vsel %vm4495, %v4621, 0.0
          %v4660 = vsel %vm4496, %v4625, 0.0
          %v4661 = vsel %vm4497, %v4629, 0.0
          %v4662 = vsel %vm4498, %v4617, 0.0
          %v4663 = vsel %vm4499, %v4621, 0.0
          %v4664 = vsel %vm4500, %v4625, 0.0
          %v4665 = vsel %vm4501, %v4629, 0.0
          %v4666 = vsel %vm4502, %v4617, 0.0
          %v4667 = vsel %vm4503, %v4621, 0.0
          %v4668 = vsel %vm4504, %v4625, 0.0
          %v4669 = vsel %vm4505, %v4629, 0.0
          %v4670 = vsel %vm4506, %v4617, 0.0
          %v4671 = vsel %vm4507, %v4621, 0.0
          %v4672 = vsel %vm4508, %v4625, 0.0
          %v4673 = vsel %vm4509, %v4629, 0.0
          %v4674 = vsel %vm4510, %v4617, 0.0
          %v4675 = vsel %vm4511, %v4621, 0.0
          %v4676 = vsel %vm4512, %v4625, 0.0
          %v4677 = vsel %vm4513, %v4629, 0.0
          %v4678 = vsel %vm4514, %v4617, 0.0
          %v4679 = vsel %vm4515, %v4621, 0.0
          %v4680 = vsel %vm4516, %v4625, 0.0
          %v4681 = vsel %vm4517, %v4629, 0.0
          %v4682 = vsel %vm4518, %v4617, 0.0
          %v4683 = vsel %vm4519, %v4621, 0.0
          %v4684 = vsel %vm4520, %v4625, 0.0
          %v4685 = vsel %vm4521, %v4629, 0.0
          %v4686 = vsel %vm4522, %v4617, 0.0
          %v4687 = vsel %vm4523, %v4621, 0.0
          %v4688 = vsel %vm4524, %v4625, 0.0
          %v4689 = vsel %vm4525, %v4629, 0.0
          %v4690 = vsel %vm4526, %v4617, 0.0
          %v4691 = vsel %vm4527, %v4621, 0.0
          %v4692 = vsel %vm4528, %v4625, 0.0
          %v4693 = vsel %vm4529, %v4629, 0.0
          %v4694 = vsel %vm4530, %v4617, 0.0
          %v4695 = vsel %vm4531, %v4621, 0.0
          %v4696 = vsel %vm4532, %v4625, 0.0
          %v4697 = vsel %vm4533, %v4629, 0.0
          %v4698 = vsel %vm4534, %v4617, 0.0
          %v4699 = vsel %vm4535, %v4621, 0.0
          %v4700 = vsel %vm4536, %v4625, 0.0
          %v4701 = vsel %vm4537, %v4629, 0.0
          %v4702 = vsel %vm4538, %v4617, 0.0
          %v4703 = vsel %vm4539, %v4621, 0.0
          %v4704 = vsel %vm4540, %v4625, 0.0
          %v4705 = vsel %vm4541, %v4629, 0.0
          %v4706 = vsel %vm4542, %v4617, 0.0
          %v4707 = vsel %vm4543, %v4621, 0.0
          %v4708 = vsel %vm4544, %v4625, 0.0
          %v4709 = vsel %vm4545, %v4629, 0.0
          %v4710 = vsel %vm4546, %v4617, 0.0
          %v4711 = vsel %vm4547, %v4621, 0.0
          %v4712 = vsel %vm4548, %v4625, 0.0
          %v4713 = vsel %vm4549, %v4629, 0.0
          %v4714 = vsel %vm4550, %v4617, 0.0
          %v4715 = vsel %vm4551, %v4621, 0.0
          %v4716 = vsel %vm4552, %v4625, 0.0
          %v4717 = vsel %vm4553, %v4629, 0.0
          %v4718 = vsel %vm4554, %v4617, 0.0
          %v4719 = vsel %vm4555, %v4621, 0.0
          %v4720 = vsel %vm4556, %v4625, 0.0
          %v4721 = vsel %vm4557, %v4629, 0.0
          %v4722 = vsel %vm4558, %v4617, 0.0
          %v4723 = vsel %vm4559, %v4621, 0.0
          %v4724 = vsel %vm4560, %v4625, 0.0
          %v4725 = vsel %vm4561, %v4629, 0.0
          %v4726 = vsel %vm4562, %v4617, 0.0
          %v4727 = vsel %vm4563, %v4621, 0.0
          %v4728 = vsel %vm4564, %v4625, 0.0
          %v4729 = vsel %vm4565, %v4629, 0.0
          %v4730 = vsel %vm4566, %v4617, 0.0
          %v4731 = vsel %vm4567, %v4621, 0.0
          %v4732 = vsel %vm4568, %v4625, 0.0
          %v4733 = vsel %vm4569, %v4629, 0.0
          %v4734 = vsel %vm4570, %v4617, 0.0
          %v4735 = vsel %vm4571, %v4621, 0.0
          %v4736 = vsel %vm4572, %v4625, 0.0
          %v4737 = vsel %vm4573, %v4629, 0.0
          %v4738 = vsel %vm4574, %v4617, 0.0
          %v4739 = vsel %vm4575, %v4621, 0.0
          %v4740 = vsel %vm4576, %v4625, 0.0
          %v4741 = vsel %vm4577, %v4629, 0.0
          %v4742 = vsel %vm4578, %v4617, 0.0
          %v4743 = vsel %vm4579, %v4621, 0.0
          %v4744 = vsel %vm4580, %v4625, 0.0
          %v4745 = vsel %vm4581, %v4629, 0.0
          %v4746 = vsel %vm4582, %v4617, 0.0
          %v4747 = vsel %vm4583, %v4621, 0.0
          %v4748 = vsel %vm4584, %v4625, 0.0
          %v4749 = vsel %vm4585, %v4629, 0.0
          %v4750 = vsel %vm4586, %v4617, 0.0
          %v4751 = vsel %vm4587, %v4621, 0.0
          %v4752 = vsel %vm4588, %v4625, 0.0
          %v4753 = vsel %vm4589, %v4629, 0.0
          %v4754 = vsel %vm4590, %v4617, 0.0
          %v4755 = vsel %vm4591, %v4621, 0.0
          %v4756 = vsel %vm4592, %v4625, 0.0
          %v4757 = vsel %vm4593, %v4629, 0.0
          %v4758 = vlaneseq
          %v4759 = vshrl.u32 %v4758, 7
          %v4760 = vsub.s32 3, %v4759
          %v4761 = vrot.slane %v272, %v4760
          %v4762 = vlaneseq
          %v4763 = vshrl.u32 %v4762, 7
          %v4764 = vsub.s32 7, %v4763
          %v4765 = vrot.slane %v272, %v4764
          %v4766 = vlaneseq
          %v4767 = vshrl.u32 %v4766, 7
          %v4768 = vsub.s32 3, %v4767
          %v4769 = vrot.slane %v273, %v4768
          %v4770 = vlaneseq
          %v4771 = vshrl.u32 %v4770, 7
          %v4772 = vsub.s32 7, %v4771
          %v4773 = vrot.slane %v273, %v4772
          %v4778 = vlaneseq
          %v4779 = vshrl.u32 %v4778, 7
          %v4780 = vsub.s32 3, %v4779
          %v4781 = vrot.slane %v4761, %v4780
          %v4782 = vlaneseq
          %v4783 = vshrl.u32 %v4782, 7
          %v4784 = vsub.s32 3, %v4783
          %v4785 = vrot.slane %v4765, %v4784
          %v4786 = vlaneseq
          %v4787 = vshrl.u32 %v4786, 7
          %v4788 = vsub.s32 3, %v4787
          %v4789 = vrot.slane %v4769, %v4788
          %v4790 = vlaneseq
          %v4791 = vshrl.u32 %v4790, 7
          %v4792 = vsub.s32 3, %v4791
          %v4793 = vrot.slane %v4773, %v4792
          %v4794 = vsel %vm4466, %v4781, 0.0
          %v4795 = vsel %vm4467, %v4785, 0.0
          %v4796 = vsel %vm4468, %v4789, 0.0
          %v4797 = vsel %vm4469, %v4793, 0.0
          %v4798 = vsel %vm4470, %v4781, 0.0
          %v4799 = vsel %vm4471, %v4785, 0.0
          %v4800 = vsel %vm4472, %v4789, 0.0
          %v4801 = vsel %vm4473, %v4793, 0.0
          %v4802 = vsel %vm4474, %v4781, 0.0
          %v4803 = vsel %vm4475, %v4785, 0.0
          %v4804 = vsel %vm4476, %v4789, 0.0
          %v4805 = vsel %vm4477, %v4793, 0.0
          %v4806 = vsel %vm4478, %v4781, 0.0
          %v4807 = vsel %vm4479, %v4785, 0.0
          %v4808 = vsel %vm4480, %v4789, 0.0
          %v4809 = vsel %vm4481, %v4793, 0.0
          %v4810 = vsel %vm4482, %v4781, 0.0
          %v4811 = vsel %vm4483, %v4785, 0.0
          %v4812 = vsel %vm4484, %v4789, 0.0
          %v4813 = vsel %vm4485, %v4793, 0.0
          %v4814 = vsel %vm4486, %v4781, 0.0
          %v4815 = vsel %vm4487, %v4785, 0.0
          %v4816 = vsel %vm4488, %v4789, 0.0
          %v4817 = vsel %vm4489, %v4793, 0.0
          %v4818 = vsel %vm4490, %v4781, 0.0
          %v4819 = vsel %vm4491, %v4785, 0.0
          %v4820 = vsel %vm4492, %v4789, 0.0
          %v4821 = vsel %vm4493, %v4793, 0.0
          %v4822 = vsel %vm4494, %v4781, 0.0
          %v4823 = vsel %vm4495, %v4785, 0.0
          %v4824 = vsel %vm4496, %v4789, 0.0
          %v4825 = vsel %vm4497, %v4793, 0.0
          %v4826 = vsel %vm4498, %v4781, 0.0
          %v4827 = vsel %vm4499, %v4785, 0.0
          %v4828 = vsel %vm4500, %v4789, 0.0
          %v4829 = vsel %vm4501, %v4793, 0.0
          %v4830 = vsel %vm4502, %v4781, 0.0
          %v4831 = vsel %vm4503, %v4785, 0.0
          %v4832 = vsel %vm4504, %v4789, 0.0
          %v4833 = vsel %vm4505, %v4793, 0.0
          %v4834 = vsel %vm4506, %v4781, 0.0
          %v4835 = vsel %vm4507, %v4785, 0.0
          %v4836 = vsel %vm4508, %v4789, 0.0
          %v4837 = vsel %vm4509, %v4793, 0.0
          %v4838 = vsel %vm4510, %v4781, 0.0
          %v4839 = vsel %vm4511, %v4785, 0.0
          %v4840 = vsel %vm4512, %v4789, 0.0
          %v4841 = vsel %vm4513, %v4793, 0.0
          %v4842 = vsel %vm4514, %v4781, 0.0
          %v4843 = vsel %vm4515, %v4785, 0.0
          %v4844 = vsel %vm4516, %v4789, 0.0
          %v4845 = vsel %vm4517, %v4793, 0.0
          %v4846 = vsel %vm4518, %v4781, 0.0
          %v4847 = vsel %vm4519, %v4785, 0.0
          %v4848 = vsel %vm4520, %v4789, 0.0
          %v4849 = vsel %vm4521, %v4793, 0.0
          %v4850 = vsel %vm4522, %v4781, 0.0
          %v4851 = vsel %vm4523, %v4785, 0.0
          %v4852 = vsel %vm4524, %v4789, 0.0
          %v4853 = vsel %vm4525, %v4793, 0.0
          %v4854 = vsel %vm4526, %v4781, 0.0
          %v4855 = vsel %vm4527, %v4785, 0.0
          %v4856 = vsel %vm4528, %v4789, 0.0
          %v4857 = vsel %vm4529, %v4793, 0.0
          %v4858 = vsel %vm4530, %v4781, 0.0
          %v4859 = vsel %vm4531, %v4785, 0.0
          %v4860 = vsel %vm4532, %v4789, 0.0
          %v4861 = vsel %vm4533, %v4793, 0.0
          %v4862 = vsel %vm4534, %v4781, 0.0
          %v4863 = vsel %vm4535, %v4785, 0.0
          %v4864 = vsel %vm4536, %v4789, 0.0
          %v4865 = vsel %vm4537, %v4793, 0.0
          %v4866 = vsel %vm4538, %v4781, 0.0
          %v4867 = vsel %vm4539, %v4785, 0.0
          %v4868 = vsel %vm4540, %v4789, 0.0
          %v4869 = vsel %vm4541, %v4793, 0.0
          %v4870 = vsel %vm4542, %v4781, 0.0
          %v4871 = vsel %vm4543, %v4785, 0.0
          %v4872 = vsel %vm4544, %v4789, 0.0
          %v4873 = vsel %vm4545, %v4793, 0.0
          %v4874 = vsel %vm4546, %v4781, 0.0
          %v4875 = vsel %vm4547, %v4785, 0.0
          %v4876 = vsel %vm4548, %v4789, 0.0
          %v4877 = vsel %vm4549, %v4793, 0.0
          %v4878 = vsel %vm4550, %v4781, 0.0
          %v4879 = vsel %vm4551, %v4785, 0.0
          %v4880 = vsel %vm4552, %v4789, 0.0
          %v4881 = vsel %vm4553, %v4793, 0.0
          %v4882 = vsel %vm4554, %v4781, 0.0
          %v4883 = vsel %vm4555, %v4785, 0.0
          %v4884 = vsel %vm4556, %v4789, 0.0
          %v4885 = vsel %vm4557, %v4793, 0.0
          %v4886 = vsel %vm4558, %v4781, 0.0
          %v4887 = vsel %vm4559, %v4785, 0.0
          %v4888 = vsel %vm4560, %v4789, 0.0
          %v4889 = vsel %vm4561, %v4793, 0.0
          %v4890 = vsel %vm4562, %v4781, 0.0
          %v4891 = vsel %vm4563, %v4785, 0.0
          %v4892 = vsel %vm4564, %v4789, 0.0
          %v4893 = vsel %vm4565, %v4793, 0.0
          %v4894 = vsel %vm4566, %v4781, 0.0
          %v4895 = vsel %vm4567, %v4785, 0.0
          %v4896 = vsel %vm4568, %v4789, 0.0
          %v4897 = vsel %vm4569, %v4793, 0.0
          %v4898 = vsel %vm4570, %v4781, 0.0
          %v4899 = vsel %vm4571, %v4785, 0.0
          %v4900 = vsel %vm4572, %v4789, 0.0
          %v4901 = vsel %vm4573, %v4793, 0.0
          %v4902 = vsel %vm4574, %v4781, 0.0
          %v4903 = vsel %vm4575, %v4785, 0.0
          %v4904 = vsel %vm4576, %v4789, 0.0
          %v4905 = vsel %vm4577, %v4793, 0.0
          %v4906 = vsel %vm4578, %v4781, 0.0
          %v4907 = vsel %vm4579, %v4785, 0.0
          %v4908 = vsel %vm4580, %v4789, 0.0
          %v4909 = vsel %vm4581, %v4793, 0.0
          %v4910 = vsel %vm4582, %v4781, 0.0
          %v4911 = vsel %vm4583, %v4785, 0.0
          %v4912 = vsel %vm4584, %v4789, 0.0
          %v4913 = vsel %vm4585, %v4793, 0.0
          %v4914 = vsel %vm4586, %v4781, 0.0
          %v4915 = vsel %vm4587, %v4785, 0.0
          %v4916 = vsel %vm4588, %v4789, 0.0
          %v4917 = vsel %vm4589, %v4793, 0.0
          %v4918 = vsel %vm4590, %v4781, 0.0
          %v4919 = vsel %vm4591, %v4785, 0.0
          %v4920 = vsel %vm4592, %v4789, 0.0
          %v4921 = vsel %vm4593, %v4793, 0.0
          %v4922 = vrot.slane %v4794, 7
          %v4923 = vrot.slane %v4795, 7
          %v4924 = vrot.slane %v4796, 7
          %v4925 = vrot.slane %v4797, 7
          %v4926 = vrot.slane %v4798, 7
          %v4927 = vrot.slane %v4799, 7
          %v4928 = vrot.slane %v4800, 7
          %v4929 = vrot.slane %v4801, 7
          %v4930 = vrot.slane %v4802, 7
          %v4931 = vrot.slane %v4803, 7
          %v4932 = vrot.slane %v4804, 7
          %v4933 = vrot.slane %v4805, 7
          %v4934 = vrot.slane %v4806, 7
          %v4935 = vrot.slane %v4807, 7
          %v4936 = vrot.slane %v4808, 7
          %v4937 = vrot.slane %v4809, 7
          %v4938 = vrot.slane %v4810, 7
          %v4939 = vrot.slane %v4811, 7
          %v4940 = vrot.slane %v4812, 7
          %v4941 = vrot.slane %v4813, 7
          %v4942 = vrot.slane %v4814, 7
          %v4943 = vrot.slane %v4815, 7
          %v4944 = vrot.slane %v4816, 7
          %v4945 = vrot.slane %v4817, 7
          %v4946 = vrot.slane %v4818, 7
          %v4947 = vrot.slane %v4819, 7
          %v4948 = vrot.slane %v4820, 7
          %v4949 = vrot.slane %v4821, 7
          %v4950 = vrot.slane %v4822, 7
          %v4951 = vrot.slane %v4823, 7
          %v4952 = vrot.slane %v4824, 7
          %v4953 = vrot.slane %v4825, 7
          %v4954 = vrot.slane %v4826, 7
          %v4955 = vrot.slane %v4827, 7
          %v4956 = vrot.slane %v4828, 7
          %v4957 = vrot.slane %v4829, 7
          %v4958 = vrot.slane %v4830, 7
          %v4959 = vrot.slane %v4831, 7
          %v4960 = vrot.slane %v4832, 7
          %v4961 = vrot.slane %v4833, 7
          %v4962 = vrot.slane %v4834, 7
          %v4963 = vrot.slane %v4835, 7
          %v4964 = vrot.slane %v4836, 7
          %v4965 = vrot.slane %v4837, 7
          %v4966 = vrot.slane %v4838, 7
          %v4967 = vrot.slane %v4839, 7
          %v4968 = vrot.slane %v4840, 7
          %v4969 = vrot.slane %v4841, 7
          %v4970 = vrot.slane %v4842, 7
          %v4971 = vrot.slane %v4843, 7
          %v4972 = vrot.slane %v4844, 7
          %v4973 = vrot.slane %v4845, 7
          %v4974 = vrot.slane %v4846, 7
          %v4975 = vrot.slane %v4847, 7
          %v4976 = vrot.slane %v4848, 7
          %v4977 = vrot.slane %v4849, 7
          %v4978 = vrot.slane %v4850, 7
          %v4979 = vrot.slane %v4851, 7
          %v4980 = vrot.slane %v4852, 7
          %v4981 = vrot.slane %v4853, 7
          %v4982 = vrot.slane %v4854, 7
          %v4983 = vrot.slane %v4855, 7
          %v4984 = vrot.slane %v4856, 7
          %v4985 = vrot.slane %v4857, 7
          %v4986 = vrot.slane %v4858, 7
          %v4987 = vrot.slane %v4859, 7
          %v4988 = vrot.slane %v4860, 7
          %v4989 = vrot.slane %v4861, 7
          %v4990 = vrot.slane %v4862, 7
          %v4991 = vrot.slane %v4863, 7
          %v4992 = vrot.slane %v4864, 7
          %v4993 = vrot.slane %v4865, 7
          %v4994 = vrot.slane %v4866, 7
          %v4995 = vrot.slane %v4867, 7
          %v4996 = vrot.slane %v4868, 7
          %v4997 = vrot.slane %v4869, 7
          %v4998 = vrot.slane %v4870, 7
          %v4999 = vrot.slane %v4871, 7
          %v5000 = vrot.slane %v4872, 7
          %v5001 = vrot.slane %v4873, 7
          %v5002 = vrot.slane %v4874, 7
          %v5003 = vrot.slane %v4875, 7
          %v5004 = vrot.slane %v4876, 7
          %v5005 = vrot.slane %v4877, 7
          %v5006 = vrot.slane %v4878, 7
          %v5007 = vrot.slane %v4879, 7
          %v5008 = vrot.slane %v4880, 7
          %v5009 = vrot.slane %v4881, 7
          %v5010 = vrot.slane %v4882, 7
          %v5011 = vrot.slane %v4883, 7
          %v5012 = vrot.slane %v4884, 7
          %v5013 = vrot.slane %v4885, 7
          %v5014 = vrot.slane %v4886, 7
          %v5015 = vrot.slane %v4887, 7
          %v5016 = vrot.slane %v4888, 7
          %v5017 = vrot.slane %v4889, 7
          %v5018 = vrot.slane %v4890, 7
          %v5019 = vrot.slane %v4891, 7
          %v5020 = vrot.slane %v4892, 7
          %v5021 = vrot.slane %v4893, 7
          %v5022 = vrot.slane %v4894, 7
          %v5023 = vrot.slane %v4895, 7
          %v5024 = vrot.slane %v4896, 7
          %v5025 = vrot.slane %v4897, 7
          %v5026 = vrot.slane %v4898, 7
          %v5027 = vrot.slane %v4899, 7
          %v5028 = vrot.slane %v4900, 7
          %v5029 = vrot.slane %v4901, 7
          %v5030 = vrot.slane %v4902, 7
          %v5031 = vrot.slane %v4903, 7
          %v5032 = vrot.slane %v4904, 7
          %v5033 = vrot.slane %v4905, 7
          %v5034 = vrot.slane %v4906, 7
          %v5035 = vrot.slane %v4907, 7
          %v5036 = vrot.slane %v4908, 7
          %v5037 = vrot.slane %v4909, 7
          %v5038 = vrot.slane %v4910, 7
          %v5039 = vrot.slane %v4911, 7
          %v5040 = vrot.slane %v4912, 7
          %v5041 = vrot.slane %v4913, 7
          %v5042 = vrot.slane %v4914, 7
          %v5043 = vrot.slane %v4915, 7
          %v5044 = vrot.slane %v4916, 7
          %v5045 = vrot.slane %v4917, 7
          %v5046 = vrot.slane %v4918, 7
          %v5047 = vrot.slane %v4919, 7
          %v5048 = vrot.slane %v4920, 7
          %v5049 = vrot.slane %v4921, 7
          %v5050 = vsel %vm933, %v5042, %v5046
          %v5051 = vsel %vm933, %v5043, %v5047
          %v5052 = vsel %vm933, %v5044, %v5048
          %v5053 = vsel %vm933, %v5045, %v5049
          %v5054 = vsel %vm933, %v5038, %v5042
          %v5055 = vsel %vm933, %v5039, %v5043
          %v5056 = vsel %vm933, %v5040, %v5044
          %v5057 = vsel %vm933, %v5041, %v5045
          %v5058 = vsel %vm933, %v5034, %v5038
          %v5059 = vsel %vm933, %v5035, %v5039
          %v5060 = vsel %vm933, %v5036, %v5040
          %v5061 = vsel %vm933, %v5037, %v5041
          %v5062 = vsel %vm933, %v5030, %v5034
          %v5063 = vsel %vm933, %v5031, %v5035
          %v5064 = vsel %vm933, %v5032, %v5036
          %v5065 = vsel %vm933, %v5033, %v5037
          %v5066 = vsel %vm933, %v5026, %v5030
          %v5067 = vsel %vm933, %v5027, %v5031
          %v5068 = vsel %vm933, %v5028, %v5032
          %v5069 = vsel %vm933, %v5029, %v5033
          %v5070 = vsel %vm933, %v5022, %v5026
          %v5071 = vsel %vm933, %v5023, %v5027
          %v5072 = vsel %vm933, %v5024, %v5028
          %v5073 = vsel %vm933, %v5025, %v5029
          %v5074 = vsel %vm933, %v5018, %v5022
          %v5075 = vsel %vm933, %v5019, %v5023
          %v5076 = vsel %vm933, %v5020, %v5024
          %v5077 = vsel %vm933, %v5021, %v5025
          %v5078 = vsel %vm933, %v5014, %v5018
          %v5079 = vsel %vm933, %v5015, %v5019
          %v5080 = vsel %vm933, %v5016, %v5020
          %v5081 = vsel %vm933, %v5017, %v5021
          %v5082 = vsel %vm933, %v5010, %v5014
          %v5083 = vsel %vm933, %v5011, %v5015
          %v5084 = vsel %vm933, %v5012, %v5016
          %v5085 = vsel %vm933, %v5013, %v5017
          %v5086 = vsel %vm933, %v5006, %v5010
          %v5087 = vsel %vm933, %v5007, %v5011
          %v5088 = vsel %vm933, %v5008, %v5012
          %v5089 = vsel %vm933, %v5009, %v5013
          %v5090 = vsel %vm933, %v5002, %v5006
          %v5091 = vsel %vm933, %v5003, %v5007
          %v5092 = vsel %vm933, %v5004, %v5008
          %v5093 = vsel %vm933, %v5005, %v5009
          %v5094 = vsel %vm933, %v4998, %v5002
          %v5095 = vsel %vm933, %v4999, %v5003
          %v5096 = vsel %vm933, %v5000, %v5004
          %v5097 = vsel %vm933, %v5001, %v5005
          %v5098 = vsel %vm933, %v4994, %v4998
          %v5099 = vsel %vm933, %v4995, %v4999
          %v5100 = vsel %vm933, %v4996, %v5000
          %v5101 = vsel %vm933, %v4997, %v5001
          %v5102 = vsel %vm933, %v4990, %v4994
          %v5103 = vsel %vm933, %v4991, %v4995
          %v5104 = vsel %vm933, %v4992, %v4996
          %v5105 = vsel %vm933, %v4993, %v4997
          %v5106 = vsel %vm933, %v4986, %v4990
          %v5107 = vsel %vm933, %v4987, %v4991
          %v5108 = vsel %vm933, %v4988, %v4992
          %v5109 = vsel %vm933, %v4989, %v4993
          %v5110 = vsel %vm933, %v4982, %v4986
          %v5111 = vsel %vm933, %v4983, %v4987
          %v5112 = vsel %vm933, %v4984, %v4988
          %v5113 = vsel %vm933, %v4985, %v4989
          %v5114 = vsel %vm933, %v4978, %v4982
          %v5115 = vsel %vm933, %v4979, %v4983
          %v5116 = vsel %vm933, %v4980, %v4984
          %v5117 = vsel %vm933, %v4981, %v4985
          %v5118 = vsel %vm933, %v4974, %v4978
          %v5119 = vsel %vm933, %v4975, %v4979
          %v5120 = vsel %vm933, %v4976, %v4980
          %v5121 = vsel %vm933, %v4977, %v4981
          %v5122 = vsel %vm933, %v4970, %v4974
          %v5123 = vsel %vm933, %v4971, %v4975
          %v5124 = vsel %vm933, %v4972, %v4976
          %v5125 = vsel %vm933, %v4973, %v4977
          %v5126 = vsel %vm933, %v4966, %v4970
          %v5127 = vsel %vm933, %v4967, %v4971
          %v5128 = vsel %vm933, %v4968, %v4972
          %v5129 = vsel %vm933, %v4969, %v4973
          %v5130 = vsel %vm933, %v4962, %v4966
          %v5131 = vsel %vm933, %v4963, %v4967
          %v5132 = vsel %vm933, %v4964, %v4968
          %v5133 = vsel %vm933, %v4965, %v4969
          %v5134 = vsel %vm933, %v4958, %v4962
          %v5135 = vsel %vm933, %v4959, %v4963
          %v5136 = vsel %vm933, %v4960, %v4964
          %v5137 = vsel %vm933, %v4961, %v4965
          %v5138 = vsel %vm933, %v4954, %v4958
          %v5139 = vsel %vm933, %v4955, %v4959
          %v5140 = vsel %vm933, %v4956, %v4960
          %v5141 = vsel %vm933, %v4957, %v4961
          %v5142 = vsel %vm933, %v4950, %v4954
          %v5143 = vsel %vm933, %v4951, %v4955
          %v5144 = vsel %vm933, %v4952, %v4956
          %v5145 = vsel %vm933, %v4953, %v4957
          %v5146 = vsel %vm933, %v4946, %v4950
          %v5147 = vsel %vm933, %v4947, %v4951
          %v5148 = vsel %vm933, %v4948, %v4952
          %v5149 = vsel %vm933, %v4949, %v4953
          %v5150 = vsel %vm933, %v4942, %v4946
          %v5151 = vsel %vm933, %v4943, %v4947
          %v5152 = vsel %vm933, %v4944, %v4948
          %v5153 = vsel %vm933, %v4945, %v4949
          %v5154 = vsel %vm933, %v4938, %v4942
          %v5155 = vsel %vm933, %v4939, %v4943
          %v5156 = vsel %vm933, %v4940, %v4944
          %v5157 = vsel %vm933, %v4941, %v4945
          %v5158 = vsel %vm933, %v4934, %v4938
          %v5159 = vsel %vm933, %v4935, %v4939
          %v5160 = vsel %vm933, %v4936, %v4940
          %v5161 = vsel %vm933, %v4937, %v4941
          %v5162 = vsel %vm933, %v4930, %v4934
          %v5163 = vsel %vm933, %v4931, %v4935
          %v5164 = vsel %vm933, %v4932, %v4936
          %v5165 = vsel %vm933, %v4933, %v4937
          %v5166 = vsel %vm933, %v4926, %v4930
          %v5167 = vsel %vm933, %v4927, %v4931
          %v5168 = vsel %vm933, %v4928, %v4932
          %v5169 = vsel %vm933, %v4929, %v4933
          %v5170 = vsel %vm933, %v4922, %v4926
          %v5171 = vsel %vm933, %v4923, %v4927
          %v5172 = vsel %vm933, %v4924, %v4928
          %v5173 = vsel %vm933, %v4925, %v4929
          %v5174 = vsel %vm933, %v5046, %v4922
          %v5175 = vsel %vm933, %v5047, %v4923
          %v5176 = vsel %vm933, %v5048, %v4924
          %v5177 = vsel %vm933, %v5049, %v4925
          %v5178 = vadd.f32 %v4630, %v5174
          %v5179 = vadd.f32 %v4631, %v5175
          %v5180 = vadd.f32 %v4632, %v5176
          %v5181 = vadd.f32 %v4633, %v5177
          %v5182 = vadd.f32 %v4634, %v5170
          %v5183 = vadd.f32 %v4635, %v5171
          %v5184 = vadd.f32 %v4636, %v5172
          %v5185 = vadd.f32 %v4637, %v5173
          %v5186 = vadd.f32 %v4638, %v5166
          %v5187 = vadd.f32 %v4639, %v5167
          %v5188 = vadd.f32 %v4640, %v5168
          %v5189 = vadd.f32 %v4641, %v5169
          %v5190 = vadd.f32 %v4642, %v5162
          %v5191 = vadd.f32 %v4643, %v5163
          %v5192 = vadd.f32 %v4644, %v5164
          %v5193 = vadd.f32 %v4645, %v5165
          %v5194 = vadd.f32 %v4646, %v5158
          %v5195 = vadd.f32 %v4647, %v5159
          %v5196 = vadd.f32 %v4648, %v5160
          %v5197 = vadd.f32 %v4649, %v5161
          %v5198 = vadd.f32 %v4650, %v5154
          %v5199 = vadd.f32 %v4651, %v5155
          %v5200 = vadd.f32 %v4652, %v5156
          %v5201 = vadd.f32 %v4653, %v5157
          %v5202 = vadd.f32 %v4654, %v5150
          %v5203 = vadd.f32 %v4655, %v5151
          %v5204 = vadd.f32 %v4656, %v5152
          %v5205 = vadd.f32 %v4657, %v5153
          %v5206 = vadd.f32 %v4658, %v5146
          %v5207 = vadd.f32 %v4659, %v5147
          %v5208 = vadd.f32 %v4660, %v5148
          %v5209 = vadd.f32 %v4661, %v5149
          %v5210 = vadd.f32 %v4662, %v5142
          %v5211 = vadd.f32 %v4663, %v5143
          %v5212 = vadd.f32 %v4664, %v5144
          %v5213 = vadd.f32 %v4665, %v5145
          %v5214 = vadd.f32 %v4666, %v5138
          %v5215 = vadd.f32 %v4667, %v5139
          %v5216 = vadd.f32 %v4668, %v5140
          %v5217 = vadd.f32 %v4669, %v5141
          %v5218 = vadd.f32 %v4670, %v5134
          %v5219 = vadd.f32 %v4671, %v5135
          %v5220 = vadd.f32 %v4672, %v5136
          %v5221 = vadd.f32 %v4673, %v5137
          %v5222 = vadd.f32 %v4674, %v5130
          %v5223 = vadd.f32 %v4675, %v5131
          %v5224 = vadd.f32 %v4676, %v5132
          %v5225 = vadd.f32 %v4677, %v5133
          %v5226 = vadd.f32 %v4678, %v5126
          %v5227 = vadd.f32 %v4679, %v5127
          %v5228 = vadd.f32 %v4680, %v5128
          %v5229 = vadd.f32 %v4681, %v5129
          %v5230 = vadd.f32 %v4682, %v5122
          %v5231 = vadd.f32 %v4683, %v5123
          %v5232 = vadd.f32 %v4684, %v5124
          %v5233 = vadd.f32 %v4685, %v5125
          %v5234 = vadd.f32 %v4686, %v5118
          %v5235 = vadd.f32 %v4687, %v5119
          %v5236 = vadd.f32 %v4688, %v5120
          %v5237 = vadd.f32 %v4689, %v5121
          %v5238 = vadd.f32 %v4690, %v5114
          %v5239 = vadd.f32 %v4691, %v5115
          %v5240 = vadd.f32 %v4692, %v5116
          %v5241 = vadd.f32 %v4693, %v5117
          %v5242 = vadd.f32 %v4694, %v5110
          %v5243 = vadd.f32 %v4695, %v5111
          %v5244 = vadd.f32 %v4696, %v5112
          %v5245 = vadd.f32 %v4697, %v5113
          %v5246 = vadd.f32 %v4698, %v5106
          %v5247 = vadd.f32 %v4699, %v5107
          %v5248 = vadd.f32 %v4700, %v5108
          %v5249 = vadd.f32 %v4701, %v5109
          %v5250 = vadd.f32 %v4702, %v5102
          %v5251 = vadd.f32 %v4703, %v5103
          %v5252 = vadd.f32 %v4704, %v5104
          %v5253 = vadd.f32 %v4705, %v5105
          %v5254 = vadd.f32 %v4706, %v5098
          %v5255 = vadd.f32 %v4707, %v5099
          %v5256 = vadd.f32 %v4708, %v5100
          %v5257 = vadd.f32 %v4709, %v5101
          %v5258 = vadd.f32 %v4710, %v5094
          %v5259 = vadd.f32 %v4711, %v5095
          %v5260 = vadd.f32 %v4712, %v5096
          %v5261 = vadd.f32 %v4713, %v5097
          %v5262 = vadd.f32 %v4714, %v5090
          %v5263 = vadd.f32 %v4715, %v5091
          %v5264 = vadd.f32 %v4716, %v5092
          %v5265 = vadd.f32 %v4717, %v5093
          %v5266 = vadd.f32 %v4718, %v5086
          %v5267 = vadd.f32 %v4719, %v5087
          %v5268 = vadd.f32 %v4720, %v5088
          %v5269 = vadd.f32 %v4721, %v5089
          %v5270 = vadd.f32 %v4722, %v5082
          %v5271 = vadd.f32 %v4723, %v5083
          %v5272 = vadd.f32 %v4724, %v5084
          %v5273 = vadd.f32 %v4725, %v5085
          %v5274 = vadd.f32 %v4726, %v5078
          %v5275 = vadd.f32 %v4727, %v5079
          %v5276 = vadd.f32 %v4728, %v5080
          %v5277 = vadd.f32 %v4729, %v5081
          %v5278 = vadd.f32 %v4730, %v5074
          %v5279 = vadd.f32 %v4731, %v5075
          %v5280 = vadd.f32 %v4732, %v5076
          %v5281 = vadd.f32 %v4733, %v5077
          %v5282 = vadd.f32 %v4734, %v5070
          %v5283 = vadd.f32 %v4735, %v5071
          %v5284 = vadd.f32 %v4736, %v5072
          %v5285 = vadd.f32 %v4737, %v5073
          %v5286 = vadd.f32 %v4738, %v5066
          %v5287 = vadd.f32 %v4739, %v5067
          %v5288 = vadd.f32 %v4740, %v5068
          %v5289 = vadd.f32 %v4741, %v5069
          %v5290 = vadd.f32 %v4742, %v5062
          %v5291 = vadd.f32 %v4743, %v5063
          %v5292 = vadd.f32 %v4744, %v5064
          %v5293 = vadd.f32 %v4745, %v5065
          %v5294 = vadd.f32 %v4746, %v5058
          %v5295 = vadd.f32 %v4747, %v5059
          %v5296 = vadd.f32 %v4748, %v5060
          %v5297 = vadd.f32 %v4749, %v5061
          %v5298 = vadd.f32 %v4750, %v5054
          %v5299 = vadd.f32 %v4751, %v5055
          %v5300 = vadd.f32 %v4752, %v5056
          %v5301 = vadd.f32 %v4753, %v5057
          %v5302 = vadd.f32 %v4754, %v5050
          %v5303 = vadd.f32 %v4755, %v5051
          %v5304 = vadd.f32 %v4756, %v5052
          %v5305 = vadd.f32 %v4757, %v5053
          %v5306 = vlaneseq
          %v5307 = vshrl.u32 %v5306, 7
          %v5308 = vsub.s32 3, %v5307
          %v5309 = vrot.slane %v278, %v5308
          %v5310 = vlaneseq
          %v5311 = vshrl.u32 %v5310, 7
          %v5312 = vsub.s32 7, %v5311
          %v5313 = vrot.slane %v278, %v5312
          %v5314 = vlaneseq
          %v5315 = vshrl.u32 %v5314, 7
          %v5316 = vsub.s32 3, %v5315
          %v5317 = vrot.slane %v279, %v5316
          %v5318 = vlaneseq
          %v5319 = vshrl.u32 %v5318, 7
          %v5320 = vsub.s32 7, %v5319
          %v5321 = vrot.slane %v279, %v5320
          %v5326 = vlaneseq
          %v5327 = vshrl.u32 %v5326, 7
          %v5328 = vsub.s32 3, %v5327
          %v5329 = vrot.slane %v5309, %v5328
          %v5330 = vlaneseq
          %v5331 = vshrl.u32 %v5330, 7
          %v5332 = vsub.s32 3, %v5331
          %v5333 = vrot.slane %v5313, %v5332
          %v5334 = vlaneseq
          %v5335 = vshrl.u32 %v5334, 7
          %v5336 = vsub.s32 3, %v5335
          %v5337 = vrot.slane %v5317, %v5336
          %v5338 = vlaneseq
          %v5339 = vshrl.u32 %v5338, 7
          %v5340 = vsub.s32 3, %v5339
          %v5341 = vrot.slane %v5321, %v5340
          %v5342 = vmul.f32 %v5329, %v5178
          %v5343 = vmul.f32 %v5333, %v5179
          %v5344 = vmul.f32 %v5337, %v5180
          %v5345 = vmul.f32 %v5341, %v5181
          %v5346 = vmul.f32 %v5329, %v5182
          %v5347 = vmul.f32 %v5333, %v5183
          %v5348 = vmul.f32 %v5337, %v5184
          %v5349 = vmul.f32 %v5341, %v5185
          %v5350 = vmul.f32 %v5329, %v5186
          %v5351 = vmul.f32 %v5333, %v5187
          %v5352 = vmul.f32 %v5337, %v5188
          %v5353 = vmul.f32 %v5341, %v5189
          %v5354 = vmul.f32 %v5329, %v5190
          %v5355 = vmul.f32 %v5333, %v5191
          %v5356 = vmul.f32 %v5337, %v5192
          %v5357 = vmul.f32 %v5341, %v5193
          %v5358 = vmul.f32 %v5329, %v5194
          %v5359 = vmul.f32 %v5333, %v5195
          %v5360 = vmul.f32 %v5337, %v5196
          %v5361 = vmul.f32 %v5341, %v5197
          %v5362 = vmul.f32 %v5329, %v5198
          %v5363 = vmul.f32 %v5333, %v5199
          %v5364 = vmul.f32 %v5337, %v5200
          %v5365 = vmul.f32 %v5341, %v5201
          %v5366 = vmul.f32 %v5329, %v5202
          %v5367 = vmul.f32 %v5333, %v5203
          %v5368 = vmul.f32 %v5337, %v5204
          %v5369 = vmul.f32 %v5341, %v5205
          %v5370 = vmul.f32 %v5329, %v5206
          %v5371 = vmul.f32 %v5333, %v5207
          %v5372 = vmul.f32 %v5337, %v5208
          %v5373 = vmul.f32 %v5341, %v5209
          %v5374 = vmul.f32 %v5329, %v5210
          %v5375 = vmul.f32 %v5333, %v5211
          %v5376 = vmul.f32 %v5337, %v5212
          %v5377 = vmul.f32 %v5341, %v5213
          %v5378 = vmul.f32 %v5329, %v5214
          %v5379 = vmul.f32 %v5333, %v5215
          %v5380 = vmul.f32 %v5337, %v5216
          %v5381 = vmul.f32 %v5341, %v5217
          %v5382 = vmul.f32 %v5329, %v5218
          %v5383 = vmul.f32 %v5333, %v5219
          %v5384 = vmul.f32 %v5337, %v5220
          %v5385 = vmul.f32 %v5341, %v5221
          %v5386 = vmul.f32 %v5329, %v5222
          %v5387 = vmul.f32 %v5333, %v5223
          %v5388 = vmul.f32 %v5337, %v5224
          %v5389 = vmul.f32 %v5341, %v5225
          %v5390 = vmul.f32 %v5329, %v5226
          %v5391 = vmul.f32 %v5333, %v5227
          %v5392 = vmul.f32 %v5337, %v5228
          %v5393 = vmul.f32 %v5341, %v5229
          %v5394 = vmul.f32 %v5329, %v5230
          %v5395 = vmul.f32 %v5333, %v5231
          %v5396 = vmul.f32 %v5337, %v5232
          %v5397 = vmul.f32 %v5341, %v5233
          %v5398 = vmul.f32 %v5329, %v5234
          %v5399 = vmul.f32 %v5333, %v5235
          %v5400 = vmul.f32 %v5337, %v5236
          %v5401 = vmul.f32 %v5341, %v5237
          %v5402 = vmul.f32 %v5329, %v5238
          %v5403 = vmul.f32 %v5333, %v5239
          %v5404 = vmul.f32 %v5337, %v5240
          %v5405 = vmul.f32 %v5341, %v5241
          %v5406 = vmul.f32 %v5329, %v5242
          %v5407 = vmul.f32 %v5333, %v5243
          %v5408 = vmul.f32 %v5337, %v5244
          %v5409 = vmul.f32 %v5341, %v5245
          %v5410 = vmul.f32 %v5329, %v5246
          %v5411 = vmul.f32 %v5333, %v5247
          %v5412 = vmul.f32 %v5337, %v5248
          %v5413 = vmul.f32 %v5341, %v5249
          %v5414 = vmul.f32 %v5329, %v5250
          %v5415 = vmul.f32 %v5333, %v5251
          %v5416 = vmul.f32 %v5337, %v5252
          %v5417 = vmul.f32 %v5341, %v5253
          %v5418 = vmul.f32 %v5329, %v5254
          %v5419 = vmul.f32 %v5333, %v5255
          %v5420 = vmul.f32 %v5337, %v5256
          %v5421 = vmul.f32 %v5341, %v5257
          %v5422 = vmul.f32 %v5329, %v5258
          %v5423 = vmul.f32 %v5333, %v5259
          %v5424 = vmul.f32 %v5337, %v5260
          %v5425 = vmul.f32 %v5341, %v5261
          %v5426 = vmul.f32 %v5329, %v5262
          %v5427 = vmul.f32 %v5333, %v5263
          %v5428 = vmul.f32 %v5337, %v5264
          %v5429 = vmul.f32 %v5341, %v5265
          %v5430 = vmul.f32 %v5329, %v5266
          %v5431 = vmul.f32 %v5333, %v5267
          %v5432 = vmul.f32 %v5337, %v5268
          %v5433 = vmul.f32 %v5341, %v5269
          %v5434 = vmul.f32 %v5329, %v5270
          %v5435 = vmul.f32 %v5333, %v5271
          %v5436 = vmul.f32 %v5337, %v5272
          %v5437 = vmul.f32 %v5341, %v5273
          %v5438 = vmul.f32 %v5329, %v5274
          %v5439 = vmul.f32 %v5333, %v5275
          %v5440 = vmul.f32 %v5337, %v5276
          %v5441 = vmul.f32 %v5341, %v5277
          %v5442 = vmul.f32 %v5329, %v5278
          %v5443 = vmul.f32 %v5333, %v5279
          %v5444 = vmul.f32 %v5337, %v5280
          %v5445 = vmul.f32 %v5341, %v5281
          %v5446 = vmul.f32 %v5329, %v5282
          %v5447 = vmul.f32 %v5333, %v5283
          %v5448 = vmul.f32 %v5337, %v5284
          %v5449 = vmul.f32 %v5341, %v5285
          %v5450 = vmul.f32 %v5329, %v5286
          %v5451 = vmul.f32 %v5333, %v5287
          %v5452 = vmul.f32 %v5337, %v5288
          %v5453 = vmul.f32 %v5341, %v5289
          %v5454 = vmul.f32 %v5329, %v5290
          %v5455 = vmul.f32 %v5333, %v5291
          %v5456 = vmul.f32 %v5337, %v5292
          %v5457 = vmul.f32 %v5341, %v5293
          %v5458 = vmul.f32 %v5329, %v5294
          %v5459 = vmul.f32 %v5333, %v5295
          %v5460 = vmul.f32 %v5337, %v5296
          %v5461 = vmul.f32 %v5341, %v5297
          %v5462 = vmul.f32 %v5329, %v5298
          %v5463 = vmul.f32 %v5333, %v5299
          %v5464 = vmul.f32 %v5337, %v5300
          %v5465 = vmul.f32 %v5341, %v5301
          %v5466 = vmul.f32 %v5329, %v5302
          %v5467 = vmul.f32 %v5333, %v5303
          %v5468 = vmul.f32 %v5337, %v5304
          %v5469 = vmul.f32 %v5341, %v5305
          %v5470 = vlaneseq
          %v5471 = vshrl.u32 %v5470, 7
          %v5472 = vsub.s32 3, %v5471
          %v5473 = vrot.slane %v270, %v5472
          %v5474 = vlaneseq
          %v5475 = vshrl.u32 %v5474, 7
          %v5476 = vsub.s32 7, %v5475
          %v5477 = vrot.slane %v270, %v5476
          %v5478 = vlaneseq
          %v5479 = vshrl.u32 %v5478, 7
          %v5480 = vsub.s32 3, %v5479
          %v5481 = vrot.slane %v271, %v5480
          %v5482 = vlaneseq
          %v5483 = vshrl.u32 %v5482, 7
          %v5484 = vsub.s32 7, %v5483
          %v5485 = vrot.slane %v271, %v5484
          %v5490 = vlaneseq
          %v5491 = vshrl.u32 %v5490, 7
          %v5492 = vsub.s32 3, %v5491
          %v5493 = vrot.slane %v5473, %v5492
          %v5494 = vlaneseq
          %v5495 = vshrl.u32 %v5494, 7
          %v5496 = vsub.s32 3, %v5495
          %v5497 = vrot.slane %v5477, %v5496
          %v5498 = vlaneseq
          %v5499 = vshrl.u32 %v5498, 7
          %v5500 = vsub.s32 3, %v5499
          %v5501 = vrot.slane %v5481, %v5500
          %v5502 = vlaneseq
          %v5503 = vshrl.u32 %v5502, 7
          %v5504 = vsub.s32 3, %v5503
          %v5505 = vrot.slane %v5485, %v5504
          %v5506 = vmul.f32 %v5493, %v5298
          %v5507 = vmul.f32 %v5497, %v5299
          %v5508 = vmul.f32 %v5501, %v5300
          %v5509 = vmul.f32 %v5505, %v5301
          %v5510 = vmul.f32 %v5493, %v5302
          %v5511 = vmul.f32 %v5497, %v5303
          %v5512 = vmul.f32 %v5501, %v5304
          %v5513 = vmul.f32 %v5505, %v5305
          %v5514 = vmul.f32 %v5493, %v5178
          %v5515 = vmul.f32 %v5497, %v5179
          %v5516 = vmul.f32 %v5501, %v5180
          %v5517 = vmul.f32 %v5505, %v5181
          %v5518 = vmul.f32 %v5493, %v5182
          %v5519 = vmul.f32 %v5497, %v5183
          %v5520 = vmul.f32 %v5501, %v5184
          %v5521 = vmul.f32 %v5505, %v5185
          %v5522 = vmul.f32 %v5493, %v5186
          %v5523 = vmul.f32 %v5497, %v5187
          %v5524 = vmul.f32 %v5501, %v5188
          %v5525 = vmul.f32 %v5505, %v5189
          %v5526 = vmul.f32 %v5493, %v5190
          %v5527 = vmul.f32 %v5497, %v5191
          %v5528 = vmul.f32 %v5501, %v5192
          %v5529 = vmul.f32 %v5505, %v5193
          %v5530 = vmul.f32 %v5493, %v5194
          %v5531 = vmul.f32 %v5497, %v5195
          %v5532 = vmul.f32 %v5501, %v5196
          %v5533 = vmul.f32 %v5505, %v5197
          %v5534 = vmul.f32 %v5493, %v5198
          %v5535 = vmul.f32 %v5497, %v5199
          %v5536 = vmul.f32 %v5501, %v5200
          %v5537 = vmul.f32 %v5505, %v5201
          %v5538 = vmul.f32 %v5493, %v5202
          %v5539 = vmul.f32 %v5497, %v5203
          %v5540 = vmul.f32 %v5501, %v5204
          %v5541 = vmul.f32 %v5505, %v5205
          %v5542 = vmul.f32 %v5493, %v5206
          %v5543 = vmul.f32 %v5497, %v5207
          %v5544 = vmul.f32 %v5501, %v5208
          %v5545 = vmul.f32 %v5505, %v5209
          %v5546 = vmul.f32 %v5493, %v5210
          %v5547 = vmul.f32 %v5497, %v5211
          %v5548 = vmul.f32 %v5501, %v5212
          %v5549 = vmul.f32 %v5505, %v5213
          %v5550 = vmul.f32 %v5493, %v5214
          %v5551 = vmul.f32 %v5497, %v5215
          %v5552 = vmul.f32 %v5501, %v5216
          %v5553 = vmul.f32 %v5505, %v5217
          %v5554 = vmul.f32 %v5493, %v5218
          %v5555 = vmul.f32 %v5497, %v5219
          %v5556 = vmul.f32 %v5501, %v5220
          %v5557 = vmul.f32 %v5505, %v5221
          %v5558 = vmul.f32 %v5493, %v5222
          %v5559 = vmul.f32 %v5497, %v5223
          %v5560 = vmul.f32 %v5501, %v5224
          %v5561 = vmul.f32 %v5505, %v5225
          %v5562 = vmul.f32 %v5493, %v5226
          %v5563 = vmul.f32 %v5497, %v5227
          %v5564 = vmul.f32 %v5501, %v5228
          %v5565 = vmul.f32 %v5505, %v5229
          %v5566 = vmul.f32 %v5493, %v5230
          %v5567 = vmul.f32 %v5497, %v5231
          %v5568 = vmul.f32 %v5501, %v5232
          %v5569 = vmul.f32 %v5505, %v5233
          %v5570 = vmul.f32 %v5493, %v5234
          %v5571 = vmul.f32 %v5497, %v5235
          %v5572 = vmul.f32 %v5501, %v5236
          %v5573 = vmul.f32 %v5505, %v5237
          %v5574 = vmul.f32 %v5493, %v5238
          %v5575 = vmul.f32 %v5497, %v5239
          %v5576 = vmul.f32 %v5501, %v5240
          %v5577 = vmul.f32 %v5505, %v5241
          %v5578 = vmul.f32 %v5493, %v5242
          %v5579 = vmul.f32 %v5497, %v5243
          %v5580 = vmul.f32 %v5501, %v5244
          %v5581 = vmul.f32 %v5505, %v5245
          %v5582 = vmul.f32 %v5493, %v5246
          %v5583 = vmul.f32 %v5497, %v5247
          %v5584 = vmul.f32 %v5501, %v5248
          %v5585 = vmul.f32 %v5505, %v5249
          %v5586 = vmul.f32 %v5493, %v5250
          %v5587 = vmul.f32 %v5497, %v5251
          %v5588 = vmul.f32 %v5501, %v5252
          %v5589 = vmul.f32 %v5505, %v5253
          %v5590 = vmul.f32 %v5493, %v5254
          %v5591 = vmul.f32 %v5497, %v5255
          %v5592 = vmul.f32 %v5501, %v5256
          %v5593 = vmul.f32 %v5505, %v5257
          %v5594 = vmul.f32 %v5493, %v5258
          %v5595 = vmul.f32 %v5497, %v5259
          %v5596 = vmul.f32 %v5501, %v5260
          %v5597 = vmul.f32 %v5505, %v5261
          %v5598 = vmul.f32 %v5493, %v5262
          %v5599 = vmul.f32 %v5497, %v5263
          %v5600 = vmul.f32 %v5501, %v5264
          %v5601 = vmul.f32 %v5505, %v5265
          %v5602 = vmul.f32 %v5493, %v5266
          %v5603 = vmul.f32 %v5497, %v5267
          %v5604 = vmul.f32 %v5501, %v5268
          %v5605 = vmul.f32 %v5505, %v5269
          %v5606 = vmul.f32 %v5493, %v5270
          %v5607 = vmul.f32 %v5497, %v5271
          %v5608 = vmul.f32 %v5501, %v5272
          %v5609 = vmul.f32 %v5505, %v5273
          %v5610 = vmul.f32 %v5493, %v5274
          %v5611 = vmul.f32 %v5497, %v5275
          %v5612 = vmul.f32 %v5501, %v5276
          %v5613 = vmul.f32 %v5505, %v5277
          %v5614 = vmul.f32 %v5493, %v5278
          %v5615 = vmul.f32 %v5497, %v5279
          %v5616 = vmul.f32 %v5501, %v5280
          %v5617 = vmul.f32 %v5505, %v5281
          %v5618 = vmul.f32 %v5493, %v5282
          %v5619 = vmul.f32 %v5497, %v5283
          %v5620 = vmul.f32 %v5501, %v5284
          %v5621 = vmul.f32 %v5505, %v5285
          %v5622 = vmul.f32 %v5493, %v5286
          %v5623 = vmul.f32 %v5497, %v5287
          %v5624 = vmul.f32 %v5501, %v5288
          %v5625 = vmul.f32 %v5505, %v5289
          %v5626 = vmul.f32 %v5493, %v5290
          %v5627 = vmul.f32 %v5497, %v5291
          %v5628 = vmul.f32 %v5501, %v5292
          %v5629 = vmul.f32 %v5505, %v5293
          %v5630 = vmul.f32 %v5493, %v5294
          %v5631 = vmul.f32 %v5497, %v5295
          %v5632 = vmul.f32 %v5501, %v5296
          %v5633 = vmul.f32 %v5505, %v5297
          %v5634 = vadd.f32 %v5342, %v5506
          %v5635 = vadd.f32 %v5343, %v5507
          %v5636 = vadd.f32 %v5344, %v5508
          %v5637 = vadd.f32 %v5345, %v5509
          %v5638 = vadd.f32 %v5346, %v5510
          %v5639 = vadd.f32 %v5347, %v5511
          %v5640 = vadd.f32 %v5348, %v5512
          %v5641 = vadd.f32 %v5349, %v5513
          %v5642 = vadd.f32 %v5350, %v5514
          %v5643 = vadd.f32 %v5351, %v5515
          %v5644 = vadd.f32 %v5352, %v5516
          %v5645 = vadd.f32 %v5353, %v5517
          %v5646 = vadd.f32 %v5354, %v5518
          %v5647 = vadd.f32 %v5355, %v5519
          %v5648 = vadd.f32 %v5356, %v5520
          %v5649 = vadd.f32 %v5357, %v5521
          %v5650 = vadd.f32 %v5358, %v5522
          %v5651 = vadd.f32 %v5359, %v5523
          %v5652 = vadd.f32 %v5360, %v5524
          %v5653 = vadd.f32 %v5361, %v5525
          %v5654 = vadd.f32 %v5362, %v5526
          %v5655 = vadd.f32 %v5363, %v5527
          %v5656 = vadd.f32 %v5364, %v5528
          %v5657 = vadd.f32 %v5365, %v5529
          %v5658 = vadd.f32 %v5366, %v5530
          %v5659 = vadd.f32 %v5367, %v5531
          %v5660 = vadd.f32 %v5368, %v5532
          %v5661 = vadd.f32 %v5369, %v5533
          %v5662 = vadd.f32 %v5370, %v5534
          %v5663 = vadd.f32 %v5371, %v5535
          %v5664 = vadd.f32 %v5372, %v5536
          %v5665 = vadd.f32 %v5373, %v5537
          %v5666 = vadd.f32 %v5374, %v5538
          %v5667 = vadd.f32 %v5375, %v5539
          %v5668 = vadd.f32 %v5376, %v5540
          %v5669 = vadd.f32 %v5377, %v5541
          %v5670 = vadd.f32 %v5378, %v5542
          %v5671 = vadd.f32 %v5379, %v5543
          %v5672 = vadd.f32 %v5380, %v5544
          %v5673 = vadd.f32 %v5381, %v5545
          %v5674 = vadd.f32 %v5382, %v5546
          %v5675 = vadd.f32 %v5383, %v5547
          %v5676 = vadd.f32 %v5384, %v5548
          %v5677 = vadd.f32 %v5385, %v5549
          %v5678 = vadd.f32 %v5386, %v5550
          %v5679 = vadd.f32 %v5387, %v5551
          %v5680 = vadd.f32 %v5388, %v5552
          %v5681 = vadd.f32 %v5389, %v5553
          %v5682 = vadd.f32 %v5390, %v5554
          %v5683 = vadd.f32 %v5391, %v5555
          %v5684 = vadd.f32 %v5392, %v5556
          %v5685 = vadd.f32 %v5393, %v5557
          %v5686 = vadd.f32 %v5394, %v5558
          %v5687 = vadd.f32 %v5395, %v5559
          %v5688 = vadd.f32 %v5396, %v5560
          %v5689 = vadd.f32 %v5397, %v5561
          %v5690 = vadd.f32 %v5398, %v5562
          %v5691 = vadd.f32 %v5399, %v5563
          %v5692 = vadd.f32 %v5400, %v5564
          %v5693 = vadd.f32 %v5401, %v5565
          %v5694 = vadd.f32 %v5402, %v5566
          %v5695 = vadd.f32 %v5403, %v5567
          %v5696 = vadd.f32 %v5404, %v5568
          %v5697 = vadd.f32 %v5405, %v5569
          %v5698 = vadd.f32 %v5406, %v5570
          %v5699 = vadd.f32 %v5407, %v5571
          %v5700 = vadd.f32 %v5408, %v5572
          %v5701 = vadd.f32 %v5409, %v5573
          %v5702 = vadd.f32 %v5410, %v5574
          %v5703 = vadd.f32 %v5411, %v5575
          %v5704 = vadd.f32 %v5412, %v5576
          %v5705 = vadd.f32 %v5413, %v5577
          %v5706 = vadd.f32 %v5414, %v5578
          %v5707 = vadd.f32 %v5415, %v5579
          %v5708 = vadd.f32 %v5416, %v5580
          %v5709 = vadd.f32 %v5417, %v5581
          %v5710 = vadd.f32 %v5418, %v5582
          %v5711 = vadd.f32 %v5419, %v5583
          %v5712 = vadd.f32 %v5420, %v5584
          %v5713 = vadd.f32 %v5421, %v5585
          %v5714 = vadd.f32 %v5422, %v5586
          %v5715 = vadd.f32 %v5423, %v5587
          %v5716 = vadd.f32 %v5424, %v5588
          %v5717 = vadd.f32 %v5425, %v5589
          %v5718 = vadd.f32 %v5426, %v5590
          %v5719 = vadd.f32 %v5427, %v5591
          %v5720 = vadd.f32 %v5428, %v5592
          %v5721 = vadd.f32 %v5429, %v5593
          %v5722 = vadd.f32 %v5430, %v5594
          %v5723 = vadd.f32 %v5431, %v5595
          %v5724 = vadd.f32 %v5432, %v5596
          %v5725 = vadd.f32 %v5433, %v5597
          %v5726 = vadd.f32 %v5434, %v5598
          %v5727 = vadd.f32 %v5435, %v5599
          %v5728 = vadd.f32 %v5436, %v5600
          %v5729 = vadd.f32 %v5437, %v5601
          %v5730 = vadd.f32 %v5438, %v5602
          %v5731 = vadd.f32 %v5439, %v5603
          %v5732 = vadd.f32 %v5440, %v5604
          %v5733 = vadd.f32 %v5441, %v5605
          %v5734 = vadd.f32 %v5442, %v5606
          %v5735 = vadd.f32 %v5443, %v5607
          %v5736 = vadd.f32 %v5444, %v5608
          %v5737 = vadd.f32 %v5445, %v5609
          %v5738 = vadd.f32 %v5446, %v5610
          %v5739 = vadd.f32 %v5447, %v5611
          %v5740 = vadd.f32 %v5448, %v5612
          %v5741 = vadd.f32 %v5449, %v5613
          %v5742 = vadd.f32 %v5450, %v5614
          %v5743 = vadd.f32 %v5451, %v5615
          %v5744 = vadd.f32 %v5452, %v5616
          %v5745 = vadd.f32 %v5453, %v5617
          %v5746 = vadd.f32 %v5454, %v5618
          %v5747 = vadd.f32 %v5455, %v5619
          %v5748 = vadd.f32 %v5456, %v5620
          %v5749 = vadd.f32 %v5457, %v5621
          %v5750 = vadd.f32 %v5458, %v5622
          %v5751 = vadd.f32 %v5459, %v5623
          %v5752 = vadd.f32 %v5460, %v5624
          %v5753 = vadd.f32 %v5461, %v5625
          %v5754 = vadd.f32 %v5462, %v5626
          %v5755 = vadd.f32 %v5463, %v5627
          %v5756 = vadd.f32 %v5464, %v5628
          %v5757 = vadd.f32 %v5465, %v5629
          %v5758 = vadd.f32 %v5466, %v5630
          %v5759 = vadd.f32 %v5467, %v5631
          %v5760 = vadd.f32 %v5468, %v5632
          %v5761 = vadd.f32 %v5469, %v5633
          %v5762 = vadd.f32 %v2850, %v5634
          %v5763 = vadd.f32 %v2851, %v5635
          %v5764 = vadd.f32 %v2852, %v5636
          %v5765 = vadd.f32 %v2853, %v5637
          %v5766 = vadd.f32 %v2854, %v5638
          %v5767 = vadd.f32 %v2855, %v5639
          %v5768 = vadd.f32 %v2856, %v5640
          %v5769 = vadd.f32 %v2857, %v5641
          %v5770 = vadd.f32 %v2858, %v5642
          %v5771 = vadd.f32 %v2859, %v5643
          %v5772 = vadd.f32 %v2860, %v5644
          %v5773 = vadd.f32 %v2861, %v5645
          %v5774 = vadd.f32 %v2862, %v5646
          %v5775 = vadd.f32 %v2863, %v5647
          %v5776 = vadd.f32 %v2864, %v5648
          %v5777 = vadd.f32 %v2865, %v5649
          %v5778 = vadd.f32 %v2866, %v5650
          %v5779 = vadd.f32 %v2867, %v5651
          %v5780 = vadd.f32 %v2868, %v5652
          %v5781 = vadd.f32 %v2869, %v5653
          %v5782 = vadd.f32 %v2870, %v5654
          %v5783 = vadd.f32 %v2871, %v5655
          %v5784 = vadd.f32 %v2872, %v5656
          %v5785 = vadd.f32 %v2873, %v5657
          %v5786 = vadd.f32 %v2874, %v5658
          %v5787 = vadd.f32 %v2875, %v5659
          %v5788 = vadd.f32 %v2876, %v5660
          %v5789 = vadd.f32 %v2877, %v5661
          %v5790 = vadd.f32 %v2878, %v5662
          %v5791 = vadd.f32 %v2879, %v5663
          %v5792 = vadd.f32 %v2880, %v5664
          %v5793 = vadd.f32 %v2881, %v5665
          %v5794 = vadd.f32 %v2882, %v5666
          %v5795 = vadd.f32 %v2883, %v5667
          %v5796 = vadd.f32 %v2884, %v5668
          %v5797 = vadd.f32 %v2885, %v5669
          %v5798 = vadd.f32 %v2886, %v5670
          %v5799 = vadd.f32 %v2887, %v5671
          %v5800 = vadd.f32 %v2888, %v5672
          %v5801 = vadd.f32 %v2889, %v5673
          %v5802 = vadd.f32 %v2890, %v5674
          %v5803 = vadd.f32 %v2891, %v5675
          %v5804 = vadd.f32 %v2892, %v5676
          %v5805 = vadd.f32 %v2893, %v5677
          %v5806 = vadd.f32 %v2894, %v5678
          %v5807 = vadd.f32 %v2895, %v5679
          %v5808 = vadd.f32 %v2896, %v5680
          %v5809 = vadd.f32 %v2897, %v5681
          %v5810 = vadd.f32 %v2898, %v5682
          %v5811 = vadd.f32 %v2899, %v5683
          %v5812 = vadd.f32 %v2900, %v5684
          %v5813 = vadd.f32 %v2901, %v5685
          %v5814 = vadd.f32 %v2902, %v5686
          %v5815 = vadd.f32 %v2903, %v5687
          %v5816 = vadd.f32 %v2904, %v5688
          %v5817 = vadd.f32 %v2905, %v5689
          %v5818 = vadd.f32 %v2906, %v5690
          %v5819 = vadd.f32 %v2907, %v5691
          %v5820 = vadd.f32 %v2908, %v5692
          %v5821 = vadd.f32 %v2909, %v5693
          %v5822 = vadd.f32 %v2910, %v5694
          %v5823 = vadd.f32 %v2911, %v5695
          %v5824 = vadd.f32 %v2912, %v5696
          %v5825 = vadd.f32 %v2913, %v5697
          %v5826 = vadd.f32 %v2914, %v5698
          %v5827 = vadd.f32 %v2915, %v5699
          %v5828 = vadd.f32 %v2916, %v5700
          %v5829 = vadd.f32 %v2917, %v5701
          %v5830 = vadd.f32 %v2918, %v5702
          %v5831 = vadd.f32 %v2919, %v5703
          %v5832 = vadd.f32 %v2920, %v5704
          %v5833 = vadd.f32 %v2921, %v5705
          %v5834 = vadd.f32 %v2922, %v5706
          %v5835 = vadd.f32 %v2923, %v5707
          %v5836 = vadd.f32 %v2924, %v5708
          %v5837 = vadd.f32 %v2925, %v5709
          %v5838 = vadd.f32 %v2926, %v5710
          %v5839 = vadd.f32 %v2927, %v5711
          %v5840 = vadd.f32 %v2928, %v5712
          %v5841 = vadd.f32 %v2929, %v5713
          %v5842 = vadd.f32 %v2930, %v5714
          %v5843 = vadd.f32 %v2931, %v5715
          %v5844 = vadd.f32 %v2932, %v5716
          %v5845 = vadd.f32 %v2933, %v5717
          %v5846 = vadd.f32 %v2934, %v5718
          %v5847 = vadd.f32 %v2935, %v5719
          %v5848 = vadd.f32 %v2936, %v5720
          %v5849 = vadd.f32 %v2937, %v5721
          %v5850 = vadd.f32 %v2938, %v5722
          %v5851 = vadd.f32 %v2939, %v5723
          %v5852 = vadd.f32 %v2940, %v5724
          %v5853 = vadd.f32 %v2941, %v5725
          %v5854 = vadd.f32 %v2942, %v5726
          %v5855 = vadd.f32 %v2943, %v5727
          %v5856 = vadd.f32 %v2944, %v5728
          %v5857 = vadd.f32 %v2945, %v5729
          %v5858 = vadd.f32 %v2946, %v5730
          %v5859 = vadd.f32 %v2947, %v5731
          %v5860 = vadd.f32 %v2948, %v5732
          %v5861 = vadd.f32 %v2949, %v5733
          %v5862 = vadd.f32 %v2950, %v5734
          %v5863 = vadd.f32 %v2951, %v5735
          %v5864 = vadd.f32 %v2952, %v5736
          %v5865 = vadd.f32 %v2953, %v5737
          %v5866 = vadd.f32 %v2954, %v5738
          %v5867 = vadd.f32 %v2955, %v5739
          %v5868 = vadd.f32 %v2956, %v5740
          %v5869 = vadd.f32 %v2957, %v5741
          %v5870 = vadd.f32 %v2958, %v5742
          %v5871 = vadd.f32 %v2959, %v5743
          %v5872 = vadd.f32 %v2960, %v5744
          %v5873 = vadd.f32 %v2961, %v5745
          %v5874 = vadd.f32 %v2962, %v5746
          %v5875 = vadd.f32 %v2963, %v5747
          %v5876 = vadd.f32 %v2964, %v5748
          %v5877 = vadd.f32 %v2965, %v5749
          %v5878 = vadd.f32 %v2966, %v5750
          %v5879 = vadd.f32 %v2967, %v5751
          %v5880 = vadd.f32 %v2968, %v5752
          %v5881 = vadd.f32 %v2969, %v5753
          %v5882 = vadd.f32 %v2970, %v5754
          %v5883 = vadd.f32 %v2971, %v5755
          %v5884 = vadd.f32 %v2972, %v5756
          %v5885 = vadd.f32 %v2973, %v5757
          %v5886 = vadd.f32 %v2974, %v5758
          %v5887 = vadd.f32 %v2975, %v5759
          %v5888 = vadd.f32 %v2976, %v5760
          %v5889 = vadd.f32 %v2977, %v5761
          %v5890 = vadd.f32 %v4306, %v5762
          %v5891 = vadd.f32 %v4307, %v5763
          %v5892 = vadd.f32 %v4308, %v5764
          %v5893 = vadd.f32 %v4309, %v5765
          %v5894 = vadd.f32 %v4310, %v5766
          %v5895 = vadd.f32 %v4311, %v5767
          %v5896 = vadd.f32 %v4312, %v5768
          %v5897 = vadd.f32 %v4313, %v5769
          %v5898 = vadd.f32 %v4314, %v5770
          %v5899 = vadd.f32 %v4315, %v5771
          %v5900 = vadd.f32 %v4316, %v5772
          %v5901 = vadd.f32 %v4317, %v5773
          %v5902 = vadd.f32 %v4318, %v5774
          %v5903 = vadd.f32 %v4319, %v5775
          %v5904 = vadd.f32 %v4320, %v5776
          %v5905 = vadd.f32 %v4321, %v5777
          %v5906 = vadd.f32 %v4322, %v5778
          %v5907 = vadd.f32 %v4323, %v5779
          %v5908 = vadd.f32 %v4324, %v5780
          %v5909 = vadd.f32 %v4325, %v5781
          %v5910 = vadd.f32 %v4326, %v5782
          %v5911 = vadd.f32 %v4327, %v5783
          %v5912 = vadd.f32 %v4328, %v5784
          %v5913 = vadd.f32 %v4329, %v5785
          %v5914 = vadd.f32 %v4330, %v5786
          %v5915 = vadd.f32 %v4331, %v5787
          %v5916 = vadd.f32 %v4332, %v5788
          %v5917 = vadd.f32 %v4333, %v5789
          %v5918 = vadd.f32 %v4334, %v5790
          %v5919 = vadd.f32 %v4335, %v5791
          %v5920 = vadd.f32 %v4336, %v5792
          %v5921 = vadd.f32 %v4337, %v5793
          %v5922 = vadd.f32 %v4338, %v5794
          %v5923 = vadd.f32 %v4339, %v5795
          %v5924 = vadd.f32 %v4340, %v5796
          %v5925 = vadd.f32 %v4341, %v5797
          %v5926 = vadd.f32 %v4342, %v5798
          %v5927 = vadd.f32 %v4343, %v5799
          %v5928 = vadd.f32 %v4344, %v5800
          %v5929 = vadd.f32 %v4345, %v5801
          %v5930 = vadd.f32 %v4346, %v5802
          %v5931 = vadd.f32 %v4347, %v5803
          %v5932 = vadd.f32 %v4348, %v5804
          %v5933 = vadd.f32 %v4349, %v5805
          %v5934 = vadd.f32 %v4350, %v5806
          %v5935 = vadd.f32 %v4351, %v5807
          %v5936 = vadd.f32 %v4352, %v5808
          %v5937 = vadd.f32 %v4353, %v5809
          %v5938 = vadd.f32 %v4354, %v5810
          %v5939 = vadd.f32 %v4355, %v5811
          %v5940 = vadd.f32 %v4356, %v5812
          %v5941 = vadd.f32 %v4357, %v5813
          %v5942 = vadd.f32 %v4358, %v5814
          %v5943 = vadd.f32 %v4359, %v5815
          %v5944 = vadd.f32 %v4360, %v5816
          %v5945 = vadd.f32 %v4361, %v5817
          %v5946 = vadd.f32 %v4362, %v5818
          %v5947 = vadd.f32 %v4363, %v5819
          %v5948 = vadd.f32 %v4364, %v5820
          %v5949 = vadd.f32 %v4365, %v5821
          %v5950 = vadd.f32 %v4366, %v5822
          %v5951 = vadd.f32 %v4367, %v5823
          %v5952 = vadd.f32 %v4368, %v5824
          %v5953 = vadd.f32 %v4369, %v5825
          %v5954 = vadd.f32 %v4370, %v5826
          %v5955 = vadd.f32 %v4371, %v5827
          %v5956 = vadd.f32 %v4372, %v5828
          %v5957 = vadd.f32 %v4373, %v5829
          %v5958 = vadd.f32 %v4374, %v5830
          %v5959 = vadd.f32 %v4375, %v5831
          %v5960 = vadd.f32 %v4376, %v5832
          %v5961 = vadd.f32 %v4377, %v5833
          %v5962 = vadd.f32 %v4378, %v5834
          %v5963 = vadd.f32 %v4379, %v5835
          %v5964 = vadd.f32 %v4380, %v5836
          %v5965 = vadd.f32 %v4381, %v5837
          %v5966 = vadd.f32 %v4382, %v5838
          %v5967 = vadd.f32 %v4383, %v5839
          %v5968 = vadd.f32 %v4384, %v5840
          %v5969 = vadd.f32 %v4385, %v5841
          %v5970 = vadd.f32 %v4386, %v5842
          %v5971 = vadd.f32 %v4387, %v5843
          %v5972 = vadd.f32 %v4388, %v5844
          %v5973 = vadd.f32 %v4389, %v5845
          %v5974 = vadd.f32 %v4390, %v5846
          %v5975 = vadd.f32 %v4391, %v5847
          %v5976 = vadd.f32 %v4392, %v5848
          %v5977 = vadd.f32 %v4393, %v5849
          %v5978 = vadd.f32 %v4394, %v5850
          %v5979 = vadd.f32 %v4395, %v5851
          %v5980 = vadd.f32 %v4396, %v5852
          %v5981 = vadd.f32 %v4397, %v5853
          %v5982 = vadd.f32 %v4398, %v5854
          %v5983 = vadd.f32 %v4399, %v5855
          %v5984 = vadd.f32 %v4400, %v5856
          %v5985 = vadd.f32 %v4401, %v5857
          %v5986 = vadd.f32 %v4402, %v5858
          %v5987 = vadd.f32 %v4403, %v5859
          %v5988 = vadd.f32 %v4404, %v5860
          %v5989 = vadd.f32 %v4405, %v5861
          %v5990 = vadd.f32 %v4406, %v5862
          %v5991 = vadd.f32 %v4407, %v5863
          %v5992 = vadd.f32 %v4408, %v5864
          %v5993 = vadd.f32 %v4409, %v5865
          %v5994 = vadd.f32 %v4410, %v5866
          %v5995 = vadd.f32 %v4411, %v5867
          %v5996 = vadd.f32 %v4412, %v5868
          %v5997 = vadd.f32 %v4413, %v5869
          %v5998 = vadd.f32 %v4414, %v5870
          %v5999 = vadd.f32 %v4415, %v5871
          %v6000 = vadd.f32 %v4416, %v5872
          %v6001 = vadd.f32 %v4417, %v5873
          %v6002 = vadd.f32 %v4418, %v5874
          %v6003 = vadd.f32 %v4419, %v5875
          %v6004 = vadd.f32 %v4420, %v5876
          %v6005 = vadd.f32 %v4421, %v5877
          %v6006 = vadd.f32 %v4422, %v5878
          %v6007 = vadd.f32 %v4423, %v5879
          %v6008 = vadd.f32 %v4424, %v5880
          %v6009 = vadd.f32 %v4425, %v5881
          %v6010 = vadd.f32 %v4426, %v5882
          %v6011 = vadd.f32 %v4427, %v5883
          %v6012 = vadd.f32 %v4428, %v5884
          %v6013 = vadd.f32 %v4429, %v5885
          %v6014 = vadd.f32 %v4430, %v5886
          %v6015 = vadd.f32 %v4431, %v5887
          %v6016 = vadd.f32 %v4432, %v5888
          %v6017 = vadd.f32 %v4433, %v5889
          %v6018 = vld [vmem:[%s261] sm:$0xf]
          %v6019 = vpack.c.bf16 %v5894, %v5890
          %v6020 = vpack.c.bf16 %v5895, %v5891
          %v6021 = vpack.c.bf16 %v5896, %v5892
          %v6022 = vpack.c.bf16 %v5897, %v5893
          %v6023 = vpack.c.bf16 %v5902, %v5898
          %v6024 = vpack.c.bf16 %v5903, %v5899
          %v6025 = vpack.c.bf16 %v5904, %v5900
          %v6026 = vpack.c.bf16 %v5905, %v5901
          %v6027 = vpack.c.bf16 %v5910, %v5906
          %v6028 = vpack.c.bf16 %v5911, %v5907
          %v6029 = vpack.c.bf16 %v5912, %v5908
          %v6030 = vpack.c.bf16 %v5913, %v5909
          %v6031 = vpack.c.bf16 %v5918, %v5914
          %v6032 = vpack.c.bf16 %v5919, %v5915
          %v6033 = vpack.c.bf16 %v5920, %v5916
          %v6034 = vpack.c.bf16 %v5921, %v5917
          %v6035 = vpack.c.bf16 %v5926, %v5922
          %v6036 = vpack.c.bf16 %v5927, %v5923
          %v6037 = vpack.c.bf16 %v5928, %v5924
          %v6038 = vpack.c.bf16 %v5929, %v5925
          %v6039 = vpack.c.bf16 %v5934, %v5930
          %v6040 = vpack.c.bf16 %v5935, %v5931
          %v6041 = vpack.c.bf16 %v5936, %v5932
          %v6042 = vpack.c.bf16 %v5937, %v5933
          %v6043 = vpack.c.bf16 %v5942, %v5938
          %v6044 = vpack.c.bf16 %v5943, %v5939
          %v6045 = vpack.c.bf16 %v5944, %v5940
          %v6046 = vpack.c.bf16 %v5945, %v5941
          %v6047 = vpack.c.bf16 %v5950, %v5946
          %v6048 = vpack.c.bf16 %v5951, %v5947
          %v6049 = vpack.c.bf16 %v5952, %v5948
          %v6050 = vpack.c.bf16 %v5953, %v5949
          %v6051 = vpack.c.bf16 %v5958, %v5954
          %v6052 = vpack.c.bf16 %v5959, %v5955
          %v6053 = vpack.c.bf16 %v5960, %v5956
          %v6054 = vpack.c.bf16 %v5961, %v5957
          %v6055 = vpack.c.bf16 %v5966, %v5962
          %v6056 = vpack.c.bf16 %v5967, %v5963
          %v6057 = vpack.c.bf16 %v5968, %v5964
          %v6058 = vpack.c.bf16 %v5969, %v5965
          %v6059 = vpack.c.bf16 %v5974, %v5970
          %v6060 = vpack.c.bf16 %v5975, %v5971
          %v6061 = vpack.c.bf16 %v5976, %v5972
          %v6062 = vpack.c.bf16 %v5977, %v5973
          %v6063 = vpack.c.bf16 %v5982, %v5978
          %v6064 = vpack.c.bf16 %v5983, %v5979
          %v6065 = vpack.c.bf16 %v5984, %v5980
          %v6066 = vpack.c.bf16 %v5985, %v5981
          %v6067 = vpack.c.bf16 %v5990, %v5986
          %v6068 = vpack.c.bf16 %v5991, %v5987
          %v6069 = vpack.c.bf16 %v5992, %v5988
          %v6070 = vpack.c.bf16 %v5993, %v5989
          %v6071 = vpack.c.bf16 %v5998, %v5994
          %v6072 = vpack.c.bf16 %v5999, %v5995
          %v6073 = vpack.c.bf16 %v6000, %v5996
          %v6074 = vpack.c.bf16 %v6001, %v5997
          %v6075 = vpack.c.bf16 %v6006, %v6002
          %v6076 = vpack.c.bf16 %v6007, %v6003
          %v6077 = vpack.c.bf16 %v6008, %v6004
          %v6078 = vpack.c.bf16 %v6009, %v6005
          %v6079 = vpack.c.bf16 %v6014, %v6010
          %v6080 = vpack.c.bf16 %v6015, %v6011
          %v6081 = vpack.c.bf16 %v6016, %v6012
          %v6082 = vpack.c.bf16 %v6017, %v6013
          %v6085 = vunpack.c.l.s4 1983009808
          %v6086 = vunpack.c.0.s8 %v6085
          %v6087 = vlaneseq
          %v6088 = vshrl.u32 %v6087, 7
          %v6089 = vsub.s32 %v6086, %v6088
          %v6090 = vrot.slane %v6018, %v6089
          %v6091 = vcombine.high %v6090, %v6090
          %6094 = vmatprep.subr.bf16.mxu0 %v6020
          %6095 = vmatpush1.bf16.msra.mxu0 %v6019
          %6096 = vmatprep.subr.bf16.mxu0 %v6024
          %6097 = vmatpush1.bf16.msra.mxu0 %v6023
          %6098 = vmatprep.subr.bf16.mxu0 %v6028
          %6099 = vmatpush1.bf16.msra.mxu0 %v6027
          %6100 = vmatprep.subr.bf16.mxu0 %v6032
          %6101 = vmatpush1.bf16.msra.mxu0 %v6031
          %6102 = vmatprep.subr.bf16.mxu0 %v6036
          %6103 = vmatpush1.bf16.msra.mxu0 %v6035
          %6104 = vmatprep.subr.bf16.mxu0 %v6040
          %6105 = vmatpush1.bf16.msra.mxu0 %v6039
          %6106 = vmatprep.subr.bf16.mxu0 %v6044
          %6107 = vmatpush1.bf16.msra.mxu0 %v6043
          %6108 = vmatprep.subr.bf16.mxu0 %v6048
          %6109 = vmatpush1.bf16.msra.mxu0 %v6047
          %6110 = vmatprep.subr.bf16.mxu0 %v6052
          %6111 = vmatpush1.bf16.msra.mxu0 %v6051
          %6112 = vmatprep.subr.bf16.mxu0 %v6056
          %6113 = vmatpush1.bf16.msra.mxu0 %v6055
          %6114 = vmatprep.subr.bf16.mxu0 %v6060
          %6115 = vmatpush1.bf16.msra.mxu0 %v6059
          %6116 = vmatprep.subr.bf16.mxu0 %v6064
          %6117 = vmatpush1.bf16.msra.mxu0 %v6063
          %6118 = vmatprep.subr.bf16.mxu0 %v6068
          %6119 = vmatpush1.bf16.msra.mxu0 %v6067
          %6120 = vmatprep.subr.bf16.mxu0 %v6072
          %6121 = vmatpush1.bf16.msra.mxu0 %v6071
          %6122 = vmatprep.subr.bf16.mxu0 %v6076
          %6123 = vmatpush1.bf16.msra.mxu0 %v6075
          %6124 = vmatprep.subr.bf16.mxu0 %v6080
          %6125 = vmatpush1.bf16.msra.mxu0 %v6079
          %6126 = vmatprep.mubr.bf16.mxu0 %v6091
          %6127 = vmatmul.mubr.bf16.gmra.mrb[0].mxu0 %v6090
          %v6128 = vpop.f32.mrb[0].mxu0
          %v6129 = vadd.f32 0.0, %v6128
          %v6130 = vpop.f32.mrb[0].mxu0
          %v6131 = vadd.f32 0.0, %v6130
          %v6132 = vpop.f32.mrb[0].mxu0
          %v6133 = vpop.f32.mrb[0].mxu0
          %6134 = vdwg.mxu0
          %6135 = vmatprep.subr.bf16.mxu0 %v6022
          %6136 = vmatpush1.bf16.msra.mxu0 %v6021
          %6137 = vmatprep.subr.bf16.mxu0 %v6026
          %6138 = vmatpush1.bf16.msra.mxu0 %v6025
          %6139 = vmatprep.subr.bf16.mxu0 %v6030
          %6140 = vmatpush1.bf16.msra.mxu0 %v6029
          %6141 = vmatprep.subr.bf16.mxu0 %v6034
          %6142 = vmatpush1.bf16.msra.mxu0 %v6033
          %6143 = vmatprep.subr.bf16.mxu0 %v6038
          %6144 = vmatpush1.bf16.msra.mxu0 %v6037
          %6145 = vmatprep.subr.bf16.mxu0 %v6042
          %6146 = vmatpush1.bf16.msra.mxu0 %v6041
          %6147 = vmatprep.subr.bf16.mxu0 %v6046
          %6148 = vmatpush1.bf16.msra.mxu0 %v6045
          %6149 = vmatprep.subr.bf16.mxu0 %v6050
          %6150 = vmatpush1.bf16.msra.mxu0 %v6049
          %6151 = vmatprep.subr.bf16.mxu0 %v6054
          %6152 = vmatpush1.bf16.msra.mxu0 %v6053
          %6153 = vmatprep.subr.bf16.mxu0 %v6058
          %6154 = vmatpush1.bf16.msra.mxu0 %v6057
          %6155 = vmatprep.subr.bf16.mxu0 %v6062
          %6156 = vmatpush1.bf16.msra.mxu0 %v6061
          %6157 = vmatprep.subr.bf16.mxu0 %v6066
          %6158 = vmatpush1.bf16.msra.mxu0 %v6065
          %6159 = vmatprep.subr.bf16.mxu0 %v6070
          %6160 = vmatpush1.bf16.msra.mxu0 %v6069
          %6161 = vmatprep.subr.bf16.mxu0 %v6074
          %6162 = vmatpush1.bf16.msra.mxu0 %v6073
          %6163 = vmatprep.subr.bf16.mxu0 %v6078
          %6164 = vmatpush1.bf16.msra.mxu0 %v6077
          %6165 = vmatprep.subr.bf16.mxu0 %v6082
          %6166 = vmatpush1.bf16.msra.mxu0 %v6081
          %6167 = vmatprep.mubr.bf16.mxu0 %v6091
          %6168 = vmatmul.mubr.bf16.gmra.mrb[0].mxu0 %v6090
          %v6169 = vpop.f32.mrb[0].mxu0
          %v6170 = vadd.f32 0.0, %v6169
          %v6171 = vpop.f32.mrb[0].mxu0
          %v6172 = vadd.f32 0.0, %v6171
          %v6173 = vpop.f32.mrb[0].mxu0
          %v6174 = vpop.f32.mrb[0].mxu0
          %6175 = vdwg.mxu0
          %v6180 = vcombine.low %v6129, %v6131
          %v6181 = vcombine.low %v6170, %v6172
          %6184 = vst [vmem:[%s255] sm:$0xff] %v6180
          %6185 = vst [vmem:[%s255 + $0x8] sm:$0xff] %v6181
        $region44: #{tpu_custom_call.1} parent=31 // pred_fallthru
          _
        %s6186 = sld [smem:[#allocation4]]
        %p6187 = scmp.ge.s32.totalorder %s32, %s6186
        // Predicated region
        $region45: #{tpu_custom_call.1} parent=31 // pred_check
          %p6188 = pneg %p6187
        $region46: #{tpu_custom_call.1} parent=31 // pred_check_branch
          %6190 = sbr.rel (%p6188) target = $region48
        $region47: #{tpu_custom_call.1} parent=31 // pred_region
          %6191 = vst [vmem:[%s255] sm:$0xff] 0.0
          %6192 = vst [vmem:[%s255 + $0x8] sm:$0xff] 0.0
        $region48: #{tpu_custom_call.1} parent=31 // pred_fallthru
          _
        %s6193 = sand.u32 %s120, 1
        %s6194 = scalar_lea.sflag [#allocation7], %s6193
        %s6195 = sand.u32 %s120, 1
        %s6196 = smul.addr %s6195, 16
        %s6197 = scalar_lea.vmem [#allocation10], %s6196
        // Predicated region
        $region49: #{tpu_custom_call.1} parent=31 // pred_check
          %p6198 = pneg %p130
        $region50: #{tpu_custom_call.1} parent=31 // pred_check_branch
          %6200 = sbr.rel (%p6198) target = $region52
        $region51: #{tpu_custom_call.1} parent=31 // pred_region
          %s6202 = ssub.s32 256, 256
          %6203 = vsyncadd %s6194, %s6202
          %s6204 = smul.addr %s32, 4
          %s6205 = smul.addr %s6204, 64
          %s6206 = scalar_lea.hbm %s5, %s6205
          %s6208 = sshll.u32 %s6197, 4
          %s6209 = int_to_ptr.vmem [resolvable:$true] %s6208
          %6211 = dma.vmem_to_hbm [thread:$0]  %s6209, 256, %s6206, %s6194
        $region52: #{tpu_custom_call.1} parent=31 // pred_fallthru
          _
      $region32: #{tpu_custom_call.1} parent=5 // pred_fallthru
        _
      %p6212 = scmp.le.s32.totalorder 2, %s27
      // Predicated region
      $region53: #{tpu_custom_call.1} parent=5 // pred_check
        %p6213 = pneg %p6212
      $region54: #{tpu_custom_call.1} parent=5 // pred_check_branch
        %6215 = sbr.rel (%p6213) target = $region56
      $region55: #{tpu_custom_call.1} parent=5 // pred_region
        %s6216 = ssub.s32 %s27, 2
        // Predicated region
        $region57: #{tpu_custom_call.1} parent=55 // pred_check
          %p6217 = pneg %p136
        $region58: #{tpu_custom_call.1} parent=55 // pred_check_branch
          %6219 = sbr.rel (%p6217) target = $region60
        $region59: #{tpu_custom_call.1} parent=55 // pred_region
          %s6220 = sand.u32 %s121, 1
          %s6221 = scalar_lea.sflag [#allocation7], %s6220
          %s6222 = sand.u32 %s121, 1
          %s6223 = smul.addr %s6222, 16
          %s6224 = scalar_lea.vmem [#allocation10], %s6223
          %6225 = dma.done %s6221, 256
        $region60: #{tpu_custom_call.1} parent=55 // pred_fallthru
          _
      $region56: #{tpu_custom_call.1} parent=5 // pred_fallthru
        _
    $region6: #{tpu_custom_call.1} parent=1 // loop_footer
      %s31 = sadd.s32 1, %s27
    $region7: #{tpu_custom_call.1} parent=1 // loop_footer_branch
      %26 = sbr.rel target = $region3
    $region8: #{tpu_custom_call.1} parent=1 // loop_exit
      _
    %6226 = vsyncpa [#allocation6], 1
    %s6227 = scalar_lea.sflag [#allocation6], 1
    %6228 = vsyncpa %s6227, 1
    %6229 = vsyncpa [#allocation9], 1
    %s6230 = scalar_lea.sflag [#allocation9], 1
    %6231 = vsyncpa %s6230, 1
    %6232 = vsyncpa [#allocation7], 1
    %s6233 = scalar_lea.sflag [#allocation7], 1
    %6234 = vsyncpa %s6233, 1

</llo_original>
